<compile_context>
chip_gen: v5e
topology: v5e:2x2
jax: 0.10.0
libtpu: 0.0.40
codegen_flags: <defaults>
</compile_context>

<pallas_src>
from functools import partial

import jax
import jax.numpy as jnp
from jax.experimental import pallas as pl
from jax.experimental.pallas import tpu as pltpu


TILE = 256  # MXU-native tile (v6e/v7x 2x256^2 MXU; also a multiple of v5e's 128).


# ------------------------------------------------------------------------------ kernels
def feat_transform_kernel(x_ref, w_ref, hw0_ref, seq_ref, *, hid_p):
    """One fused matmul: [HW_0 | seq_fts] = x @ [W_0 | W_fc^T].

    Kept in f32 (negligible FLOPs) so seq_fts retains f32 precision; HW_0 is stored
    bf16 because it is only ever consumed as an MXU input of the A@HW aggregation.
    """
    t = jnp.dot(x_ref[...], w_ref[...], preferred_element_type=jnp.float32)
    hw0_ref[...] = t[:, :hid_p].astype(hw0_ref.dtype)
    seq_ref[...] = t[:, hid_p:].astype(seq_ref.dtype)


def graphconv_kernel(*refs, relu, with_next):
    """Tiled GraphConv aggregation: out = act(A_hat @ HW + b) (+ fused HW_next).

    Grid = (row tiles i : "parallel", k reduction over A columns : "arbitrary").
    The f32 accumulator lives in VMEM scratch; bias/ReLU and the optional fused
    HW_next = act(...) @ W_next happen only on the last k step (pl.when finalize).
    All large matmuls use bf16 MXU inputs with f32 accumulation.
    """
    if with_next:
        a_ref, hw_ref, b_ref, wn_ref, h_ref, hwn_ref, acc_ref = refs
    else:
        a_ref, hw_ref, b_ref, h_ref, acc_ref = refs

    k = pl.program_id(1)

    @pl.when(k == 0)
    def _():
        acc_ref[...] = jnp.zeros_like(acc_ref)

    acc_ref[...] += jnp.dot(a_ref[...], hw_ref[...],
                            preferred_element_type=jnp.float32)

    @pl.when(k == pl.num_programs(1) - 1)
    def _():
        h = acc_ref[...] + b_ref[...]           # bias add / ReLU stay f32 (VPU)
        if relu:
            h = jnp.maximum(h, 0.0)
        h_ref[...] = h.astype(h_ref.dtype)
        if with_next:
            hwn_ref[...] = jnp.dot(h.astype(jnp.bfloat16), wn_ref[...],
                                   preferred_element_type=jnp.float32
                                   ).astype(hwn_ref.dtype)


# ------------------------------------------------------------------------------ wrappers
def _round_up(x, m):
    return ((x + m - 1) // m) * m


def _pad2(x, shape):
    """Zero-pad a 2-D array up to `shape` (no-op if already that shape)."""
    pr, pc = shape[0] - x.shape[0], shape[1] - x.shape[1]
    if pr == 0 and pc == 0:
        return x
    return jnp.pad(x, ((0, pr), (0, pc)))


def _feat_transform(x_p, w_cat_p, hid_p, tm):
    n_p, in_p = x_p.shape
    hw0, seq = pl.pallas_call(
        partial(feat_transform_kernel, hid_p=hid_p),
        out_shape=(jax.ShapeDtypeStruct((n_p, hid_p), jnp.bfloat16),
                   jax.ShapeDtypeStruct((n_p, hid_p), jnp.float32)),
        grid_spec=pltpu.PrefetchScalarGridSpec(
            num_scalar_prefetch=0,
            grid=(n_p // tm,),
            in_specs=[pl.BlockSpec((tm, in_p), lambda i: (i, 0)),
                      pl.BlockSpec((in_p, 2 * hid_p), lambda i: (0, 0))],
            out_specs=(pl.BlockSpec((tm, hid_p), lambda i: (i, 0)),
                       pl.BlockSpec((tm, hid_p), lambda i: (i, 0)))),
        compiler_params=pltpu.CompilerParams(dimension_semantics=("parallel",)),
    )(x_p, w_cat_p)
    return hw0, seq


def _graphconv(a_p, hw_p, bias_p, w_next_p, *, relu, tm, tk):
    """out = act(A_hat @ HW + bias); optionally also emits HW_next = act(...) @ W_next."""
    n_p = a_p.shape[0]
    d_out = bias_p.shape[1]
    with_next = w_next_p is not None
    grid = (n_p // tm, n_p // tk)

    in_specs = [
        # A_hat tile: the only large streamed operand (bf16, double-buffered by Pallas).
        # TODO(synk): raise to pipeline_mode=pl.Buffered(3) on v5e/v6e if DMA is exposed.
        pl.BlockSpec((tm, tk), lambda i, k: (i, k)),
        pl.BlockSpec((tk, hw_p.shape[1]), lambda i, k: (k, 0)),
        pl.BlockSpec((1, d_out), lambda i, k: (0, 0)),
    ]
    args = [a_p, hw_p, bias_p]
    out_shape = [jax.ShapeDtypeStruct((n_p, d_out), jnp.float32)]
    out_specs = [pl.BlockSpec((tm, d_out), lambda i, k: (i, 0))]

    extra_flops = extra_bytes = 0
    if with_next:
        hn = w_next_p.shape[1]
        in_specs.append(pl.BlockSpec(w_next_p.shape, lambda i, k: (0, 0)))
        args.append(w_next_p)
        out_shape.append(jax.ShapeDtypeStruct((n_p, hn), jnp.bfloat16))
        out_specs.append(pl.BlockSpec((tm, hn), lambda i, k: (i, 0)))
        extra_flops = 2 * n_p * w_next_p.shape[0] * hn
        extra_bytes = 2 * int(w_next_p.size) + 2 * n_p * hn

    cost = pl.CostEstimate(
        flops=2 * n_p * n_p * d_out + extra_flops,
        transcendentals=0,
        bytes_accessed=2 * int(a_p.size) + 2 * int(hw_p.size)
        + 4 * n_p * d_out + extra_bytes,
    )

    outs = pl.pallas_call(
        partial(graphconv_kernel, relu=relu, with_next=with_next),
        out_shape=tuple(out_shape),
        grid_spec=pltpu.PrefetchScalarGridSpec(
            num_scalar_prefetch=0,
            grid=grid,
            in_specs=in_specs,
            out_specs=tuple(out_specs),
            scratch_shapes=[pltpu.VMEM((tm, d_out), jnp.float32)],
        ),
        compiler_params=pltpu.CompilerParams(
            dimension_semantics=("parallel", "arbitrary")),
        cost_estimate=cost,
    )(*args)
    return (outs[0], outs[1]) if with_next else (outs[0], None)


def gcn_nc_forward(params, a_hat, features):
    n, in_dim = features.shape
    hidden_dim = params["layers"][0][0].shape[1]
    out_dim = params["w_out"].shape[1]
    n_layers = len(params["layers"])

    tm = tk = TILE
    n_p = _round_up(n, TILE)            # MXU-native / lane-dense node dim
    in_p = _round_up(in_dim, 128)
    hid_p = _round_up(hidden_dim, 128)
    out_p = _round_up(out_dim, 128)

    # A_hat: pad + single bf16 cast (half the HBM/VMEM bytes of the dominant operand).
    a_p = _pad2(a_hat, (n_p, n_p)).astype(jnp.bfloat16)
    x_p = _pad2(features, (n_p, in_p))

    # Fused [W_0 | W_fc^T]  (both (in, hid)) -> one matmul over x yields HW_0 and seq_fts.
    w0, _ = params["layers"][0]
    w_cat = jnp.concatenate([_pad2(w0, (in_p, hid_p)),
                             _pad2(params["w_fc_t"], (in_p, hid_p))], axis=1)

    biases = [_pad2(b.reshape(1, -1), (1, hid_p)) for (_, b) in params["layers"]]
    b_out_p = _pad2(params["b_out"].reshape(1, -1), (1, out_p))

    # Per-layer "next" weights (bf16): W_1 .. W_{L-1}, then W_out.
    next_ws = [_pad2(params["layers"][i][0], (hid_p, hid_p)).astype(jnp.bfloat16)
               for i in range(1, n_layers)]
    next_ws.append(_pad2(params["w_out"], (hid_p, out_p)).astype(jnp.bfloat16))

    # Stage 1: HW_0 (bf16) and seq_fts (f32) from one fused matmul over x.
    hw, seq_p = _feat_transform(x_p, w_cat, hid_p, tm)

    # Stage 2: hidden GraphConv stack; each call also produces the next layer's HW.
    # TODO(synk): train-mode Dropout between layers not implemented (eval -> identity).
    h_p = None
    for l in range(n_layers):
        h_p, hw = _graphconv(a_p, hw, biases[l], next_ws[l], relu=True, tm=tm, tk=tk)

    # Stage 3: output GraphConv (no activation).
    logits_p, _ = _graphconv(a_p, hw, b_out_p, None, relu=False, tm=tm, tk=tk)

    return (logits_p[:n, :out_dim], h_p[:n, :hidden_dim], seq_p[:n, :hidden_dim])


# ------------------------------------------------------------------------------ model
def glorot(key, shape):
    fan_in, fan_out = shape[0], shape[1]
    limit = (6.0 / (fan_in + fan_out)) ** 0.5
    return jax.random.uniform(key, shape, jnp.float32, -limit, limit)


def init_params(key, in_dim, hidden_dim, out_dim, n_layers):
    keys = jax.random.split(key, n_layers + 2)
    layers = [(glorot(keys[0], (in_dim, hidden_dim)),
               jnp.zeros((hidden_dim,), jnp.float32))]
    for i in range(1, n_layers):
        layers.append((glorot(keys[i], (hidden_dim, hidden_dim)),
                       jnp.zeros((hidden_dim,), jnp.float32)))
    w_out = glorot(keys[n_layers], (hidden_dim, out_dim))
    b_out = jnp.zeros((out_dim,), jnp.float32)
    w_fc_t = glorot(keys[n_layers + 1], (in_dim, hidden_dim))  # fc weight, pre-transposed
    return {"layers": layers, "w_out": w_out, "b_out": b_out, "w_fc_t": w_fc_t}


def build_normalized_adjacency(n):
    """Deterministic undirected graph (ring + chord), symmetric norm D^-1/2 A D^-1/2."""
    a = jnp.zeros((n, n), jnp.float32)
    idx = jnp.arange(n)
    a = a.at[idx, (idx + 1) % n].set(1.0)
    a = a.at[(idx + 1) % n, idx].set(1.0)
    a = a.at[idx, (idx + 3) % n].set(1.0)
    a = a.at[(idx + 3) % n, idx].set(1.0)
    deg = jnp.maximum(a.sum(axis=1), 1.0)
    d_inv_sqrt = 1.0 / jnp.sqrt(deg)
    return a * d_inv_sqrt[:, None] * d_inv_sqrt[None, :]


# ------------------------------------------------------------------------------ main
if __name__ == "__main__":
    N, IN_DIM, HIDDEN_DIM, OUT_DIM, N_LAYERS = 16, 8, 32, 4, 2

    key = jax.random.PRNGKey(0)
    k_feat, k_params = jax.random.split(key)

    features = jax.random.normal(k_feat, (N, IN_DIM), jnp.float32)
    a_hat = build_normalized_adjacency(N)
    params = init_params(k_params, IN_DIM, HIDDEN_DIM, OUT_DIM, N_LAYERS)

    fwd = jax.jit(gcn_nc_forward)
    logits, h, seq_fts = fwd(params, a_hat, features)
    jax.block_until_ready((logits, h, seq_fts))

    assert logits.shape == (N, OUT_DIM)
    assert h.shape == (N, HIDDEN_DIM)
    assert seq_fts.shape == (N, HIDDEN_DIM)

    # --- bf16-emulated reference (matches the kernel's dtype flow) ------------------
    bf = lambda t: t.astype(jnp.bfloat16)
    mm = lambda a, b: jnp.dot(a, b, preferred_element_type=jnp.float32)

    w0, _ = params["layers"][0]
    t = mm(features, jnp.concatenate([w0, params["w_fc_t"]], axis=1))
    seq_ref = t[:, HIDDEN_DIM:]
    hw_ref = bf(t[:, :HIDDEN_DIM])
    a_bf = bf(a_hat)
    next_ws_ref = [params["layers"][i][0] for i in range(1, N_LAYERS)] + [params["w_out"]]
    h_ref = None
    for l in range(N_LAYERS):
        b_l = params["layers"][l][1]
        h_ref = jnp.maximum(mm(a_bf, hw_ref) + b_l, 0.0)
        hw_ref = bf(mm(bf(h_ref), bf(next_ws_ref[l])))
    logits_ref = mm(a_bf, hw_ref) + params["b_out"]

    assert jnp.allclose(seq_fts, seq_ref, atol=1e-2, rtol=1e-2)
    assert jnp.allclose(h, h_ref, atol=1e-2, rtol=1e-2)
    assert jnp.allclose(logits, logits_ref, atol=1e-2, rtol=1e-2)

    # --- pure-f32 reference sanity check (loose: bf16 MXU inputs, f32 accumulation) --
    hf = features
    for (w, b) in params["layers"]:
        hf = jnp.maximum(a_hat @ (hf @ w) + b, 0.0)
    logits_f = a_hat @ (hf @ params["w_out"]) + params["b_out"]
    seq_f = features @ params["w_fc_t"]
    assert jnp.allclose(logits, logits_f, atol=5e-2, rtol=5e-2)
    assert jnp.allclose(h, hf, atol=5e-2, rtol=5e-2)
    assert jnp.allclose(seq_fts, seq_f, atol=5e-2, rtol=5e-2)

    print("KERNEL_OK")
</pallas_src>

<mosaic_0001>
module attributes {stable_mosaic.version = 11 : i64} {
  func.func @feat_transform_kernel(%arg0: i32, %arg1: memref<256x128xf32, #tpu.memory_space<vmem>>, %arg2: memref<128x256xf32, #tpu.memory_space<vmem>>, %arg3: memref<256x128xbf16, #tpu.memory_space<vmem>>, %arg4: memref<256x128xf32, #tpu.memory_space<vmem>>) attributes {dimension_semantics = [#tpu.dimension_semantics<parallel>], iteration_bounds = array<i64: 1>, scalar_prefetch = 0 : i64, scratch_operands = 0 : i64, tpu.core_type = #tpu.core_type<tc>, window_params = [{transform_indices = @transform_0, window_bounds = array<i64: 256, 128>}, {pipeline_mode = #tpu.pipeline_mode<synchronous>, transform_indices = @transform_1, window_bounds = array<i64: 128, 256>}, {transform_indices = @transform_2, window_bounds = array<i64: 256, 128>}, {transform_indices = @transform_3, window_bounds = array<i64: 256, 128>}]} {
    %c0 = arith.constant 0 : index
    %c0_0 = arith.constant 0 : index
    %0 = vector.load %arg1[%c0, %c0_0] : memref<256x128xf32, #tpu.memory_space<vmem>>, vector<256x128xf32>
    %c0_1 = arith.constant 0 : index
    %c0_2 = arith.constant 0 : index
    %1 = vector.load %arg2[%c0_1, %c0_2] : memref<128x256xf32, #tpu.memory_space<vmem>>, vector<128x256xf32>
    %cst = arith.constant dense<0.000000e+00> : vector<256x256xf32>
    %2 = tpu.matmul %0, %1, %cst {dimension_numbers = #tpu.dot_dimension_numbers<[1], [0], [0], [1], [0, 0, 1, 1], [], []>} : vector<256x128xf32>, vector<128x256xf32>, vector<256x256xf32> -> vector<256x256xf32>
    %3 = vector.extract_strided_slice %2 {offsets = [0, 0], sizes = [256, 128], strides = [1, 1]} : vector<256x256xf32> to vector<256x128xf32>
    %4 = arith.truncf %3 : vector<256x128xf32> to vector<256x128xbf16>
    %c0_3 = arith.constant 0 : index
    %c0_4 = arith.constant 0 : index
    %5 = vector.load %arg3[%c0_3, %c0_4] : memref<256x128xbf16, #tpu.memory_space<vmem>>, vector<256x128xbf16>
    tpu.vector_store %arg3[%c0_3, %c0_4], %4 {strides = array<i32>} : memref<256x128xbf16, #tpu.memory_space<vmem>>, vector<256x128xbf16>,
    %6 = vector.extract_strided_slice %2 {offsets = [0, 128], sizes = [256, 128], strides = [1, 1]} : vector<256x256xf32> to vector<256x128xf32>
    %c0_5 = arith.constant 0 : index
    %c0_6 = arith.constant 0 : index
    %7 = vector.load %arg4[%c0_5, %c0_6] : memref<256x128xf32, #tpu.memory_space<vmem>>, vector<256x128xf32>
    tpu.vector_store %arg4[%c0_5, %c0_6], %6 {strides = array<i32>} : memref<256x128xf32, #tpu.memory_space<vmem>>, vector<256x128xf32>,
    return
  }
  func.func @transform_0(%arg0: i32) -> (i32, i32) {
    %c0_i32 = arith.constant 0 : i32
    %c0_i32_0 = arith.constant 0 : i32
    return %arg0, %c0_i32 : i32, i32
  }
  func.func @transform_1(%arg0: i32) -> (i32, i32) {
    %c0_i32 = arith.constant 0 : i32
    %c0_i32_0 = arith.constant 0 : i32
    %c0_i32_1 = arith.constant 0 : i32
    return %c0_i32, %c0_i32_0 : i32, i32
  }
  func.func @transform_2(%arg0: i32) -> (i32, i32) {
    %c0_i32 = arith.constant 0 : i32
    %c0_i32_0 = arith.constant 0 : i32
    return %arg0, %c0_i32 : i32, i32
  }
  func.func @transform_3(%arg0: i32) -> (i32, i32) {
    %c0_i32 = arith.constant 0 : i32
    %c0_i32_0 = arith.constant 0 : i32
    return %arg0, %c0_i32 : i32, i32
  }
}

module attributes {stable_mosaic.version = 11 : i64} {
  func.func @graphconv_kernel(%arg0: i32, %arg1: i32, %arg2: memref<256x256xbf16, #tpu.memory_space<vmem>>, %arg3: memref<256x128xbf16, #tpu.memory_space<vmem>>, %arg4: memref<1x128xf32, #tpu.memory_space<vmem>>, %arg5: memref<128x128xbf16, #tpu.memory_space<vmem>>, %arg6: memref<256x128xf32, #tpu.memory_space<vmem>>, %arg7: memref<256x128xbf16, #tpu.memory_space<vmem>>, %arg8: memref<256x128xf32, #tpu.memory_space<vmem>>) attributes {dimension_semantics = [#tpu.dimension_semantics<parallel>, #tpu.dimension_semantics<arbitrary>], iteration_bounds = array<i64: 1, 1>, scalar_prefetch = 0 : i64, scratch_operands = 1 : i64, tpu.core_type = #tpu.core_type<tc>, window_params = [{transform_indices = @transform_0, window_bounds = array<i64: 256, 256>}, {transform_indices = @transform_1, window_bounds = array<i64: 256, 128>}, {pipeline_mode = #tpu.pipeline_mode<synchronous>, transform_indices = @transform_2, window_bounds = array<i64: 1, 128>}, {pipeline_mode = #tpu.pipeline_mode<synchronous>, transform_indices = @transform_3, window_bounds = array<i64: 128, 128>}, {transform_indices = @transform_4, window_bounds = array<i64: 256, 128>}, {transform_indices = @transform_5, window_bounds = array<i64: 256, 128>}]} {
    %c0_i32 = arith.constant 0 : i32
    %0 = arith.cmpi eq, %arg1, %c0_i32 : i32
    %1 = arith.extui %0 : i1 to i32
    %c0_i32_0 = arith.constant 0 : i32
    %2 = arith.cmpi ne, %1, %c0_i32_0 : i32
    scf.if %2 {
      %cst_10 = arith.constant 0.000000e+00 : f32
      %12 = vector.broadcast %cst_10 : f32 to vector<256x128xf32>
      %c0_11 = arith.constant 0 : index
      %c0_12 = arith.constant 0 : index
      %13 = vector.load %arg8[%c0_11, %c0_12] : memref<256x128xf32, #tpu.memory_space<vmem>>, vector<256x128xf32>
      tpu.vector_store %arg8[%c0_11, %c0_12], %12 {strides = array<i32>} : memref<256x128xf32, #tpu.memory_space<vmem>>, vector<256x128xf32>,
    } else {
    }
    %c0 = arith.constant 0 : index
    %c0_1 = arith.constant 0 : index
    %3 = vector.load %arg8[%c0, %c0_1] : memref<256x128xf32, #tpu.memory_space<vmem>>, vector<256x128xf32>
    %c0_2 = arith.constant 0 : index
    %c0_3 = arith.constant 0 : index
    %4 = vector.load %arg2[%c0_2, %c0_3] : memref<256x256xbf16, #tpu.memory_space<vmem>>, vector<256x256xbf16>
    %c0_4 = arith.constant 0 : index
    %c0_5 = arith.constant 0 : index
    %5 = vector.load %arg3[%c0_4, %c0_5] : memref<256x128xbf16, #tpu.memory_space<vmem>>, vector<256x128xbf16>
    %cst = arith.constant dense<0.000000e+00> : vector<256x128xf32>
    %6 = tpu.matmul %4, %5, %cst {dimension_numbers = #tpu.dot_dimension_numbers<[1], [0], [0], [1], [0, 0, 1, 1], [], []>} : vector<256x256xbf16>, vector<256x128xbf16>, vector<256x128xf32> -> vector<256x128xf32>
    %7 = arith.addf %3, %6 : vector<256x128xf32>
    %c0_6 = arith.constant 0 : index
    %c0_7 = arith.constant 0 : index
    %8 = vector.load %arg8[%c0_6, %c0_7] : memref<256x128xf32, #tpu.memory_space<vmem>>, vector<256x128xf32>
    tpu.vector_store %arg8[%c0_6, %c0_7], %7 {strides = array<i32>} : memref<256x128xf32, #tpu.memory_space<vmem>>, vector<256x128xf32>,
    %c0_i32_8 = arith.constant 0 : i32
    %9 = arith.cmpi eq, %arg1, %c0_i32_8 : i32
    %10 = arith.extui %9 : i1 to i32
    %c0_i32_9 = arith.constant 0 : i32
    %11 = arith.cmpi ne, %10, %c0_i32_9 : i32
    scf.if %11 {
      %c0_10 = arith.constant 0 : index
      %c0_11 = arith.constant 0 : index
      %12 = vector.load %arg8[%c0_10, %c0_11] : memref<256x128xf32, #tpu.memory_space<vmem>>, vector<256x128xf32>
      %c0_12 = arith.constant 0 : index
      %c0_13 = arith.constant 0 : index
      %13 = vector.load %arg4[%c0_12, %c0_13] : memref<1x128xf32, #tpu.memory_space<vmem>>, vector<1x128xf32>
      %14 = vector.broadcast %13 : vector<1x128xf32> to vector<256x128xf32>
      %15 = arith.addf %12, %14 : vector<256x128xf32>
      %cst_14 = arith.constant 0.000000e+00 : f32
      %16 = vector.broadcast %cst_14 : f32 to vector<256x128xf32>
      %17 = arith.maximumf %15, %16 : vector<256x128xf32>
      %c0_15 = arith.constant 0 : index
      %c0_16 = arith.constant 0 : index
      %18 = vector.load %arg6[%c0_15, %c0_16] : memref<256x128xf32, #tpu.memory_space<vmem>>, vector<256x128xf32>
      tpu.vector_store %arg6[%c0_15, %c0_16], %17 {strides = array<i32>} : memref<256x128xf32, #tpu.memory_space<vmem>>, vector<256x128xf32>,
      %19 = arith.truncf %17 : vector<256x128xf32> to vector<256x128xbf16>
      %c0_17 = arith.constant 0 : index
      %c0_18 = arith.constant 0 : index
      %20 = vector.load %arg5[%c0_17, %c0_18] : memref<128x128xbf16, #tpu.memory_space<vmem>>, vector<128x128xbf16>
      %cst_19 = arith.constant dense<0.000000e+00> : vector<256x128xf32>
      %21 = tpu.matmul %19, %20, %cst_19 {dimension_numbers = #tpu.dot_dimension_numbers<[1], [0], [0], [1], [0, 0, 1, 1], [], []>} : vector<256x128xbf16>, vector<128x128xbf16>, vector<256x128xf32> -> vector<256x128xf32>
      %22 = arith.truncf %21 : vector<256x128xf32> to vector<256x128xbf16>
      %c0_20 = arith.constant 0 : index
      %c0_21 = arith.constant 0 : index
      %23 = vector.load %arg7[%c0_20, %c0_21] : memref<256x128xbf16, #tpu.memory_space<vmem>>, vector<256x128xbf16>
      tpu.vector_store %arg7[%c0_20, %c0_21], %22 {strides = array<i32>} : memref<256x128xbf16, #tpu.memory_space<vmem>>, vector<256x128xbf16>,
    } else {
    }
    return
  }
  func.func @transform_0(%arg0: i32, %arg1: i32) -> (i32, i32) {
    %c0_i32 = arith.constant 0 : i32
    return %arg0, %arg1 : i32, i32
  }
  func.func @transform_1(%arg0: i32, %arg1: i32) -> (i32, i32) {
    %c0_i32 = arith.constant 0 : i32
    %c0_i32_0 = arith.constant 0 : i32
    return %arg1, %c0_i32 : i32, i32
  }
  func.func @transform_2(%arg0: i32, %arg1: i32) -> (i32, i32) {
    %c0_i32 = arith.constant 0 : i32
    %c0_i32_0 = arith.constant 0 : i32
    %c0_i32_1 = arith.constant 0 : i32
    return %c0_i32, %c0_i32_0 : i32, i32
  }
  func.func @transform_3(%arg0: i32, %arg1: i32) -> (i32, i32) {
    %c0_i32 = arith.constant 0 : i32
    %c0_i32_0 = arith.constant 0 : i32
    %c0_i32_1 = arith.constant 0 : i32
    return %c0_i32, %c0_i32_0 : i32, i32
  }
  func.func @transform_4(%arg0: i32, %arg1: i32) -> (i32, i32) {
    %c0_i32 = arith.constant 0 : i32
    %c0_i32_0 = arith.constant 0 : i32
    return %arg0, %c0_i32 : i32, i32
  }
  func.func @transform_5(%arg0: i32, %arg1: i32) -> (i32, i32) {
    %c0_i32 = arith.constant 0 : i32
    %c0_i32_0 = arith.constant 0 : i32
    return %arg0, %c0_i32 : i32, i32
  }
}

module attributes {stable_mosaic.version = 11 : i64} {
  func.func @graphconv_kernel(%arg0: i32, %arg1: i32, %arg2: memref<256x256xbf16, #tpu.memory_space<vmem>>, %arg3: memref<256x128xbf16, #tpu.memory_space<vmem>>, %arg4: memref<1x128xf32, #tpu.memory_space<vmem>>, %arg5: memref<128x128xbf16, #tpu.memory_space<vmem>>, %arg6: memref<256x128xf32, #tpu.memory_space<vmem>>, %arg7: memref<256x128xbf16, #tpu.memory_space<vmem>>, %arg8: memref<256x128xf32, #tpu.memory_space<vmem>>) attributes {dimension_semantics = [#tpu.dimension_semantics<parallel>, #tpu.dimension_semantics<arbitrary>], iteration_bounds = array<i64: 1, 1>, scalar_prefetch = 0 : i64, scratch_operands = 1 : i64, tpu.core_type = #tpu.core_type<tc>, window_params = [{transform_indices = @transform_0, window_bounds = array<i64: 256, 256>}, {transform_indices = @transform_1, window_bounds = array<i64: 256, 128>}, {pipeline_mode = #tpu.pipeline_mode<synchronous>, transform_indices = @transform_2, window_bounds = array<i64: 1, 128>}, {pipeline_mode = #tpu.pipeline_mode<synchronous>, transform_indices = @transform_3, window_bounds = array<i64: 128, 128>}, {transform_indices = @transform_4, window_bounds = array<i64: 256, 128>}, {transform_indices = @transform_5, window_bounds = array<i64: 256, 128>}]} {
    %c0_i32 = arith.constant 0 : i32
    %0 = arith.cmpi eq, %arg1, %c0_i32 : i32
    %1 = arith.extui %0 : i1 to i32
    %c0_i32_0 = arith.constant 0 : i32
    %2 = arith.cmpi ne, %1, %c0_i32_0 : i32
    scf.if %2 {
      %cst_10 = arith.constant 0.000000e+00 : f32
      %12 = vector.broadcast %cst_10 : f32 to vector<256x128xf32>
      %c0_11 = arith.constant 0 : index
      %c0_12 = arith.constant 0 : index
      %13 = vector.load %arg8[%c0_11, %c0_12] : memref<256x128xf32, #tpu.memory_space<vmem>>, vector<256x128xf32>
      tpu.vector_store %arg8[%c0_11, %c0_12], %12 {strides = array<i32>} : memref<256x128xf32, #tpu.memory_space<vmem>>, vector<256x128xf32>,
    } else {
    }
    %c0 = arith.constant 0 : index
    %c0_1 = arith.constant 0 : index
    %3 = vector.load %arg8[%c0, %c0_1] : memref<256x128xf32, #tpu.memory_space<vmem>>, vector<256x128xf32>
    %c0_2 = arith.constant 0 : index
    %c0_3 = arith.constant 0 : index
    %4 = vector.load %arg2[%c0_2, %c0_3] : memref<256x256xbf16, #tpu.memory_space<vmem>>, vector<256x256xbf16>
    %c0_4 = arith.constant 0 : index
    %c0_5 = arith.constant 0 : index
    %5 = vector.load %arg3[%c0_4, %c0_5] : memref<256x128xbf16, #tpu.memory_space<vmem>>, vector<256x128xbf16>
    %cst = arith.constant dense<0.000000e+00> : vector<256x128xf32>
    %6 = tpu.matmul %4, %5, %cst {dimension_numbers = #tpu.dot_dimension_numbers<[1], [0], [0], [1], [0, 0, 1, 1], [], []>} : vector<256x256xbf16>, vector<256x128xbf16>, vector<256x128xf32> -> vector<256x128xf32>
    %7 = arith.addf %3, %6 : vector<256x128xf32>
    %c0_6 = arith.constant 0 : index
    %c0_7 = arith.constant 0 : index
    %8 = vector.load %arg8[%c0_6, %c0_7] : memref<256x128xf32, #tpu.memory_space<vmem>>, vector<256x128xf32>
    tpu.vector_store %arg8[%c0_6, %c0_7], %7 {strides = array<i32>} : memref<256x128xf32, #tpu.memory_space<vmem>>, vector<256x128xf32>,
    %c0_i32_8 = arith.constant 0 : i32
    %9 = arith.cmpi eq, %arg1, %c0_i32_8 : i32
    %10 = arith.extui %9 : i1 to i32
    %c0_i32_9 = arith.constant 0 : i32
    %11 = arith.cmpi ne, %10, %c0_i32_9 : i32
    scf.if %11 {
      %c0_10 = arith.constant 0 : index
      %c0_11 = arith.constant 0 : index
      %12 = vector.load %arg8[%c0_10, %c0_11] : memref<256x128xf32, #tpu.memory_space<vmem>>, vector<256x128xf32>
      %c0_12 = arith.constant 0 : index
      %c0_13 = arith.constant 0 : index
      %13 = vector.load %arg4[%c0_12, %c0_13] : memref<1x128xf32, #tpu.memory_space<vmem>>, vector<1x128xf32>
      %14 = vector.broadcast %13 : vector<1x128xf32> to vector<256x128xf32>
      %15 = arith.addf %12, %14 : vector<256x128xf32>
      %cst_14 = arith.constant 0.000000e+00 : f32
      %16 = vector.broadcast %cst_14 : f32 to vector<256x128xf32>
      %17 = arith.maximumf %15, %16 : vector<256x128xf32>
      %c0_15 = arith.constant 0 : index
      %c0_16 = arith.constant 0 : index
      %18 = vector.load %arg6[%c0_15, %c0_16] : memref<256x128xf32, #tpu.memory_space<vmem>>, vector<256x128xf32>
      tpu.vector_store %arg6[%c0_15, %c0_16], %17 {strides = array<i32>} : memref<256x128xf32, #tpu.memory_space<vmem>>, vector<256x128xf32>,
      %19 = arith.truncf %17 : vector<256x128xf32> to vector<256x128xbf16>
      %c0_17 = arith.constant 0 : index
      %c0_18 = arith.constant 0 : index
      %20 = vector.load %arg5[%c0_17, %c0_18] : memref<128x128xbf16, #tpu.memory_space<vmem>>, vector<128x128xbf16>
      %cst_19 = arith.constant dense<0.000000e+00> : vector<256x128xf32>
      %21 = tpu.matmul %19, %20, %cst_19 {dimension_numbers = #tpu.dot_dimension_numbers<[1], [0], [0], [1], [0, 0, 1, 1], [], []>} : vector<256x128xbf16>, vector<128x128xbf16>, vector<256x128xf32> -> vector<256x128xf32>
      %22 = arith.truncf %21 : vector<256x128xf32> to vector<256x128xbf16>
      %c0_20 = arith.constant 0 : index
      %c0_21 = arith.constant 0 : index
      %23 = vector.load %arg7[%c0_20, %c0_21] : memref<256x128xbf16, #tpu.memory_space<vmem>>, vector<256x128xbf16>
      tpu.vector_store %arg7[%c0_20, %c0_21], %22 {strides = array<i32>} : memref<256x128xbf16, #tpu.memory_space<vmem>>, vector<256x128xbf16>,
    } else {
    }
    return
  }
  func.func @transform_0(%arg0: i32, %arg1: i32) -> (i32, i32) {
    %c0_i32 = arith.constant 0 : i32
    return %arg0, %arg1 : i32, i32
  }
  func.func @transform_1(%arg0: i32, %arg1: i32) -> (i32, i32) {
    %c0_i32 = arith.constant 0 : i32
    %c0_i32_0 = arith.constant 0 : i32
    return %arg1, %c0_i32 : i32, i32
  }
  func.func @transform_2(%arg0: i32, %arg1: i32) -> (i32, i32) {
    %c0_i32 = arith.constant 0 : i32
    %c0_i32_0 = arith.constant 0 : i32
    %c0_i32_1 = arith.constant 0 : i32
    return %c0_i32, %c0_i32_0 : i32, i32
  }
  func.func @transform_3(%arg0: i32, %arg1: i32) -> (i32, i32) {
    %c0_i32 = arith.constant 0 : i32
    %c0_i32_0 = arith.constant 0 : i32
    %c0_i32_1 = arith.constant 0 : i32
    return %c0_i32, %c0_i32_0 : i32, i32
  }
  func.func @transform_4(%arg0: i32, %arg1: i32) -> (i32, i32) {
    %c0_i32 = arith.constant 0 : i32
    %c0_i32_0 = arith.constant 0 : i32
    return %arg0, %c0_i32 : i32, i32
  }
  func.func @transform_5(%arg0: i32, %arg1: i32) -> (i32, i32) {
    %c0_i32 = arith.constant 0 : i32
    %c0_i32_0 = arith.constant 0 : i32
    return %arg0, %c0_i32 : i32, i32
  }
}

module attributes {stable_mosaic.version = 11 : i64} {
  func.func @graphconv_kernel(%arg0: i32, %arg1: i32, %arg2: memref<256x256xbf16, #tpu.memory_space<vmem>>, %arg3: memref<256x128xbf16, #tpu.memory_space<vmem>>, %arg4: memref<1x128xf32, #tpu.memory_space<vmem>>, %arg5: memref<256x128xf32, #tpu.memory_space<vmem>>, %arg6: memref<256x128xf32, #tpu.memory_space<vmem>>) attributes {dimension_semantics = [#tpu.dimension_semantics<parallel>, #tpu.dimension_semantics<arbitrary>], iteration_bounds = array<i64: 1, 1>, scalar_prefetch = 0 : i64, scratch_operands = 1 : i64, tpu.core_type = #tpu.core_type<tc>, window_params = [{transform_indices = @transform_0, window_bounds = array<i64: 256, 256>}, {transform_indices = @transform_1, window_bounds = array<i64: 256, 128>}, {pipeline_mode = #tpu.pipeline_mode<synchronous>, transform_indices = @transform_2, window_bounds = array<i64: 1, 128>}, {transform_indices = @transform_3, window_bounds = array<i64: 256, 128>}]} {
    %c0_i32 = arith.constant 0 : i32
    %0 = arith.cmpi eq, %arg1, %c0_i32 : i32
    %1 = arith.extui %0 : i1 to i32
    %c0_i32_0 = arith.constant 0 : i32
    %2 = arith.cmpi ne, %1, %c0_i32_0 : i32
    scf.if %2 {
      %cst_10 = arith.constant 0.000000e+00 : f32
      %12 = vector.broadcast %cst_10 : f32 to vector<256x128xf32>
      %c0_11 = arith.constant 0 : index
      %c0_12 = arith.constant 0 : index
      %13 = vector.load %arg6[%c0_11, %c0_12] : memref<256x128xf32, #tpu.memory_space<vmem>>, vector<256x128xf32>
      tpu.vector_store %arg6[%c0_11, %c0_12], %12 {strides = array<i32>} : memref<256x128xf32, #tpu.memory_space<vmem>>, vector<256x128xf32>,
    } else {
    }
    %c0 = arith.constant 0 : index
    %c0_1 = arith.constant 0 : index
    %3 = vector.load %arg6[%c0, %c0_1] : memref<256x128xf32, #tpu.memory_space<vmem>>, vector<256x128xf32>
    %c0_2 = arith.constant 0 : index
    %c0_3 = arith.constant 0 : index
    %4 = vector.load %arg2[%c0_2, %c0_3] : memref<256x256xbf16, #tpu.memory_space<vmem>>, vector<256x256xbf16>
    %c0_4 = arith.constant 0 : index
    %c0_5 = arith.constant 0 : index
    %5 = vector.load %arg3[%c0_4, %c0_5] : memref<256x128xbf16, #tpu.memory_space<vmem>>, vector<256x128xbf16>
    %cst = arith.constant dense<0.000000e+00> : vector<256x128xf32>
    %6 = tpu.matmul %4, %5, %cst {dimension_numbers = #tpu.dot_dimension_numbers<[1], [0], [0], [1], [0, 0, 1, 1], [], []>} : vector<256x256xbf16>, vector<256x128xbf16>, vector<256x128xf32> -> vector<256x128xf32>
    %7 = arith.addf %3, %6 : vector<256x128xf32>
    %c0_6 = arith.constant 0 : index
    %c0_7 = arith.constant 0 : index
    %8 = vector.load %arg6[%c0_6, %c0_7] : memref<256x128xf32, #tpu.memory_space<vmem>>, vector<256x128xf32>
    tpu.vector_store %arg6[%c0_6, %c0_7], %7 {strides = array<i32>} : memref<256x128xf32, #tpu.memory_space<vmem>>, vector<256x128xf32>,
    %c0_i32_8 = arith.constant 0 : i32
    %9 = arith.cmpi eq, %arg1, %c0_i32_8 : i32
    %10 = arith.extui %9 : i1 to i32
    %c0_i32_9 = arith.constant 0 : i32
    %11 = arith.cmpi ne, %10, %c0_i32_9 : i32
    scf.if %11 {
      %c0_10 = arith.constant 0 : index
      %c0_11 = arith.constant 0 : index
      %12 = vector.load %arg6[%c0_10, %c0_11] : memref<256x128xf32, #tpu.memory_space<vmem>>, vector<256x128xf32>
      %c0_12 = arith.constant 0 : index
      %c0_13 = arith.constant 0 : index
      %13 = vector.load %arg4[%c0_12, %c0_13] : memref<1x128xf32, #tpu.memory_space<vmem>>, vector<1x128xf32>
      %14 = vector.broadcast %13 : vector<1x128xf32> to vector<256x128xf32>
      %15 = arith.addf %12, %14 : vector<256x128xf32>
      %c0_14 = arith.constant 0 : index
      %c0_15 = arith.constant 0 : index
      %16 = vector.load %arg5[%c0_14, %c0_15] : memref<256x128xf32, #tpu.memory_space<vmem>>, vector<256x128xf32>
      tpu.vector_store %arg5[%c0_14, %c0_15], %15 {strides = array<i32>} : memref<256x128xf32, #tpu.memory_space<vmem>>, vector<256x128xf32>,
    } else {
    }
    return
  }
  func.func @transform_0(%arg0: i32, %arg1: i32) -> (i32, i32) {
    %c0_i32 = arith.constant 0 : i32
    return %arg0, %arg1 : i32, i32
  }
  func.func @transform_1(%arg0: i32, %arg1: i32) -> (i32, i32) {
    %c0_i32 = arith.constant 0 : i32
    %c0_i32_0 = arith.constant 0 : i32
    return %arg1, %c0_i32 : i32, i32
  }
  func.func @transform_2(%arg0: i32, %arg1: i32) -> (i32, i32) {
    %c0_i32 = arith.constant 0 : i32
    %c0_i32_0 = arith.constant 0 : i32
    %c0_i32_1 = arith.constant 0 : i32
    return %c0_i32, %c0_i32_0 : i32, i32
  }
  func.func @transform_3(%arg0: i32, %arg1: i32) -> (i32, i32) {
    %c0_i32 = arith.constant 0 : i32
    %c0_i32_0 = arith.constant 0 : i32
    return %arg0, %c0_i32 : i32, i32
  }
}

</mosaic_0001>

<llo_original>
// kernel: gcn_nc_forward.4
$region0: #{gcn_nc_forward.4}
  #allocation0 [shape = 'u32[]', space=smem, size = 0x4, offset = 0x4, fixed_abs, tag = 'smem constant byte address 0x4 - core index']
  #allocation1 [shape = 'u32[72,128]{1,0:T(1,128)}', space=vmem, size = 0x9000, scoped, tag = 'internal scratch']
  %s0 = inlined_call_operand.vmem [shape: f32[256,128], index: 0, kind: input, shape index: {}]
  %s1 = inlined_call_operand.vmem [shape: f32[128,256], index: 1, kind: input, shape index: {}]
  %s2 = inlined_call_operand.vmem [shape: bf16[256,128], index: 2, kind: output, shape index: {0}]
  %s3 = inlined_call_operand.vmem [shape: f32[256,128], index: 3, kind: output, shape index: {1}]
  %4 = xla_tuple %s2, %s3
  %s5 = sld [smem:[#allocation0]]
  $region26: #{gcn_nc_forward.4} parent=0
    _
  %s7 = ssub.s32 1, %s5
  %s8 = scalar_select 0, %s7, %s5
  // Predicated region
  $region2: #{gcn_nc_forward.4} parent=0 // pred_check
    _
  $region3: #{gcn_nc_forward.4} parent=0 // pred_check_branch
    %10 = sbr.rel (0) target = $region5
  $region4: #{gcn_nc_forward.4} parent=0 // pred_region
    _
  $region5: #{gcn_nc_forward.4} parent=0 // pred_fallthru
    _
  // Predicated region
  $region6: #{gcn_nc_forward.4} parent=0 // pred_check
    _
  $region7: #{gcn_nc_forward.4} parent=0 // pred_check_branch
    %12 = sbr.rel (0) target = $region9
  $region8: #{gcn_nc_forward.4} parent=0 // pred_region
    _
  $region9: #{gcn_nc_forward.4} parent=0 // pred_fallthru
    _
  %v13 = vld [vmem:[%s0] sm:$0xff]
  %v14 = vld [vmem:[%s0 + $0x8] sm:$0xff]
  %v15 = vld [vmem:[%s0 + $0x10] sm:$0xff]
  %v16 = vld [vmem:[%s0 + $0x18] sm:$0xff]
  %v17 = vld [vmem:[%s0 + $0x20] sm:$0xff]
  %v18 = vld [vmem:[%s0 + $0x28] sm:$0xff]
  %v19 = vld [vmem:[%s0 + $0x30] sm:$0xff]
  %v20 = vld [vmem:[%s0 + $0x38] sm:$0xff]
  %v21 = vld [vmem:[%s0 + $0x40] sm:$0xff]
  %v22 = vld [vmem:[%s0 + $0x48] sm:$0xff]
  %v23 = vld [vmem:[%s0 + $0x50] sm:$0xff]
  %v24 = vld [vmem:[%s0 + $0x58] sm:$0xff]
  %v25 = vld [vmem:[%s0 + $0x60] sm:$0xff]
  %v26 = vld [vmem:[%s0 + $0x68] sm:$0xff]
  %v27 = vld [vmem:[%s0 + $0x70] sm:$0xff]
  %v28 = vld [vmem:[%s0 + $0x78] sm:$0xff]
  %v29 = vld [vmem:[%s0 + $0x80] sm:$0xff]
  %v30 = vld [vmem:[%s0 + $0x88] sm:$0xff]
  %v31 = vld [vmem:[%s0 + $0x90] sm:$0xff]
  %v32 = vld [vmem:[%s0 + $0x98] sm:$0xff]
  %v33 = vld [vmem:[%s0 + $0xa0] sm:$0xff]
  %v34 = vld [vmem:[%s0 + $0xa8] sm:$0xff]
  %v35 = vld [vmem:[%s0 + $0xb0] sm:$0xff]
  %v36 = vld [vmem:[%s0 + $0xb8] sm:$0xff]
  %v37 = vld [vmem:[%s0 + $0xc0] sm:$0xff]
  %v38 = vld [vmem:[%s0 + $0xc8] sm:$0xff]
  %v39 = vld [vmem:[%s0 + $0xd0] sm:$0xff]
  %v40 = vld [vmem:[%s0 + $0xd8] sm:$0xff]
  %v41 = vld [vmem:[%s0 + $0xe0] sm:$0xff]
  %v42 = vld [vmem:[%s0 + $0xe8] sm:$0xff]
  %v43 = vld [vmem:[%s0 + $0xf0] sm:$0xff]
  %v44 = vld [vmem:[%s0 + $0xf8] sm:$0xff]
  %v45 = vld [vmem:[%s1] sm:$0xff]
  %v46 = vld [vmem:[%s1 + $0x8] sm:$0xff]
  %v47 = vld [vmem:[%s1 + $0x10] sm:$0xff]
  %v48 = vld [vmem:[%s1 + $0x18] sm:$0xff]
  %v49 = vld [vmem:[%s1 + $0x20] sm:$0xff]
  %v50 = vld [vmem:[%s1 + $0x28] sm:$0xff]
  %v51 = vld [vmem:[%s1 + $0x30] sm:$0xff]
  %v52 = vld [vmem:[%s1 + $0x38] sm:$0xff]
  %v53 = vld [vmem:[%s1 + $0x40] sm:$0xff]
  %v54 = vld [vmem:[%s1 + $0x48] sm:$0xff]
  %v55 = vld [vmem:[%s1 + $0x50] sm:$0xff]
  %v56 = vld [vmem:[%s1 + $0x58] sm:$0xff]
  %v57 = vld [vmem:[%s1 + $0x60] sm:$0xff]
  %v58 = vld [vmem:[%s1 + $0x68] sm:$0xff]
  %v59 = vld [vmem:[%s1 + $0x70] sm:$0xff]
  %v60 = vld [vmem:[%s1 + $0x78] sm:$0xff]
  %v61 = vld [vmem:[%s1 + $0x80] sm:$0xff]
  %v62 = vld [vmem:[%s1 + $0x88] sm:$0xff]
  %v63 = vld [vmem:[%s1 + $0x90] sm:$0xff]
  %v64 = vld [vmem:[%s1 + $0x98] sm:$0xff]
  %v65 = vld [vmem:[%s1 + $0xa0] sm:$0xff]
  %v66 = vld [vmem:[%s1 + $0xa8] sm:$0xff]
  %v67 = vld [vmem:[%s1 + $0xb0] sm:$0xff]
  %v68 = vld [vmem:[%s1 + $0xb8] sm:$0xff]
  %v69 = vld [vmem:[%s1 + $0xc0] sm:$0xff]
  %v70 = vld [vmem:[%s1 + $0xc8] sm:$0xff]
  %v71 = vld [vmem:[%s1 + $0xd0] sm:$0xff]
  %v72 = vld [vmem:[%s1 + $0xd8] sm:$0xff]
  %v73 = vld [vmem:[%s1 + $0xe0] sm:$0xff]
  %v74 = vld [vmem:[%s1 + $0xe8] sm:$0xff]
  %v75 = vld [vmem:[%s1 + $0xf0] sm:$0xff]
  %v76 = vld [vmem:[%s1 + $0xf8] sm:$0xff]
  %77 = vmatpush.msra.mxu0 %v75
  %78 = vmatpush.msra.mxu0 %v73
  %79 = vmatpush.msra.mxu0 %v71
  %80 = vmatpush.msra.mxu0 %v69
  %81 = vmatpush.msra.mxu0 %v67
  %82 = vmatpush.msra.mxu0 %v65
  %83 = vmatpush.msra.mxu0 %v63
  %84 = vmatpush.msra.mxu0 %v61
  %85 = vmatpush.msra.mxu0 %v59
  %86 = vmatpush.msra.mxu0 %v57
  %87 = vmatpush.msra.mxu0 %v55
  %88 = vmatpush.msra.mxu0 %v53
  %89 = vmatpush.msra.mxu0 %v51
  %90 = vmatpush.msra.mxu0 %v49
  %91 = vmatpush.msra.mxu0 %v47
  %92 = vmatpush.msra.mxu0 %v45
  %93 = vmatmul.f32.gmra.mxu0 %v13
  %v94 = vpop.f32.mrf.mxu0
  %v95 = vadd.f32 0.0, %v94
  %96 = vmatmul.f32.gmra.mxu0 %v14
  %v97 = vpop.f32.mrf.mxu0
  %v98 = vadd.f32 0.0, %v97
  %99 = vmatmul.f32.gmra.mxu0 %v15
  %v100 = vpop.f32.mrf.mxu0
  %v101 = vadd.f32 0.0, %v100
  %102 = vmatmul.f32.gmra.mxu0 %v16
  %v103 = vpop.f32.mrf.mxu0
  %v104 = vadd.f32 0.0, %v103
  %105 = vmatmul.f32.gmra.mxu0 %v17
  %v106 = vpop.f32.mrf.mxu0
  %v107 = vadd.f32 0.0, %v106
  %108 = vmatmul.f32.gmra.mxu0 %v18
  %v109 = vpop.f32.mrf.mxu0
  %v110 = vadd.f32 0.0, %v109
  %111 = vmatmul.f32.gmra.mxu0 %v19
  %v112 = vpop.f32.mrf.mxu0
  %v113 = vadd.f32 0.0, %v112
  %114 = vmatmul.f32.gmra.mxu0 %v20
  %v115 = vpop.f32.mrf.mxu0
  %v116 = vadd.f32 0.0, %v115
  %117 = vmatmul.f32.gmra.mxu0 %v21
  %v118 = vpop.f32.mrf.mxu0
  %v119 = vadd.f32 0.0, %v118
  %120 = vmatmul.f32.gmra.mxu0 %v22
  %v121 = vpop.f32.mrf.mxu0
  %v122 = vadd.f32 0.0, %v121
  %123 = vmatmul.f32.gmra.mxu0 %v23
  %v124 = vpop.f32.mrf.mxu0
  %v125 = vadd.f32 0.0, %v124
  %126 = vmatmul.f32.gmra.mxu0 %v24
  %v127 = vpop.f32.mrf.mxu0
  %v128 = vadd.f32 0.0, %v127
  %129 = vmatmul.f32.gmra.mxu0 %v25
  %v130 = vpop.f32.mrf.mxu0
  %v131 = vadd.f32 0.0, %v130
  %132 = vmatmul.f32.gmra.mxu0 %v26
  %v133 = vpop.f32.mrf.mxu0
  %v134 = vadd.f32 0.0, %v133
  %135 = vmatmul.f32.gmra.mxu0 %v27
  %v136 = vpop.f32.mrf.mxu0
  %v137 = vadd.f32 0.0, %v136
  %138 = vmatmul.f32.gmra.mxu0 %v28
  %v139 = vpop.f32.mrf.mxu0
  %v140 = vadd.f32 0.0, %v139
  %141 = vmatmul.f32.gmra.mxu0 %v29
  %v142 = vpop.f32.mrf.mxu0
  %v143 = vadd.f32 0.0, %v142
  %144 = vmatmul.f32.gmra.mxu0 %v30
  %v145 = vpop.f32.mrf.mxu0
  %v146 = vadd.f32 0.0, %v145
  %147 = vmatmul.f32.gmra.mxu0 %v31
  %v148 = vpop.f32.mrf.mxu0
  %v149 = vadd.f32 0.0, %v148
  %150 = vmatmul.f32.gmra.mxu0 %v32
  %v151 = vpop.f32.mrf.mxu0
  %v152 = vadd.f32 0.0, %v151
  %153 = vmatmul.f32.gmra.mxu0 %v33
  %v154 = vpop.f32.mrf.mxu0
  %v155 = vadd.f32 0.0, %v154
  %156 = vmatmul.f32.gmra.mxu0 %v34
  %v157 = vpop.f32.mrf.mxu0
  %v158 = vadd.f32 0.0, %v157
  %159 = vmatmul.f32.gmra.mxu0 %v35
  %v160 = vpop.f32.mrf.mxu0
  %v161 = vadd.f32 0.0, %v160
  %162 = vmatmul.f32.gmra.mxu0 %v36
  %v163 = vpop.f32.mrf.mxu0
  %v164 = vadd.f32 0.0, %v163
  %165 = vmatmul.f32.gmra.mxu0 %v37
  %v166 = vpop.f32.mrf.mxu0
  %v167 = vadd.f32 0.0, %v166
  %168 = vmatmul.f32.gmra.mxu0 %v38
  %v169 = vpop.f32.mrf.mxu0
  %v170 = vadd.f32 0.0, %v169
  %171 = vmatmul.f32.gmra.mxu0 %v39
  %v172 = vpop.f32.mrf.mxu0
  %v173 = vadd.f32 0.0, %v172
  %174 = vmatmul.f32.gmra.mxu0 %v40
  %v175 = vpop.f32.mrf.mxu0
  %v176 = vadd.f32 0.0, %v175
  %177 = vmatmul.f32.gmra.mxu0 %v41
  %v178 = vpop.f32.mrf.mxu0
  %v179 = vadd.f32 0.0, %v178
  %180 = vmatmul.f32.gmra.mxu0 %v42
  %v181 = vpop.f32.mrf.mxu0
  %v182 = vadd.f32 0.0, %v181
  %183 = vmatmul.f32.gmra.mxu0 %v43
  %v184 = vpop.f32.mrf.mxu0
  %v185 = vadd.f32 0.0, %v184
  %186 = vmatmul.f32.gmra.mxu0 %v44
  %v187 = vpop.f32.mrf.mxu0
  %v188 = vadd.f32 0.0, %v187
  %189 = vdwg.mxu0
  %190 = vmatpush.msra.mxu0 %v76
  %191 = vmatpush.msra.mxu0 %v74
  %192 = vmatpush.msra.mxu0 %v72
  %193 = vmatpush.msra.mxu0 %v70
  %194 = vmatpush.msra.mxu0 %v68
  %195 = vmatpush.msra.mxu0 %v66
  %196 = vmatpush.msra.mxu0 %v64
  %197 = vmatpush.msra.mxu0 %v62
  %198 = vmatpush.msra.mxu0 %v60
  %199 = vmatpush.msra.mxu0 %v58
  %200 = vmatpush.msra.mxu0 %v56
  %201 = vmatpush.msra.mxu0 %v54
  %202 = vmatpush.msra.mxu0 %v52
  %203 = vmatpush.msra.mxu0 %v50
  %204 = vmatpush.msra.mxu0 %v48
  %205 = vmatpush.msra.mxu0 %v46
  %206 = vmatmul.f32.gmra.mxu0 %v13
  %v207 = vpop.f32.mrf.mxu0
  %v208 = vadd.f32 0.0, %v207
  %209 = vmatmul.f32.gmra.mxu0 %v14
  %v210 = vpop.f32.mrf.mxu0
  %v211 = vadd.f32 0.0, %v210
  %212 = vmatmul.f32.gmra.mxu0 %v15
  %v213 = vpop.f32.mrf.mxu0
  %v214 = vadd.f32 0.0, %v213
  %215 = vmatmul.f32.gmra.mxu0 %v16
  %v216 = vpop.f32.mrf.mxu0
  %v217 = vadd.f32 0.0, %v216
  %218 = vmatmul.f32.gmra.mxu0 %v17
  %v219 = vpop.f32.mrf.mxu0
  %v220 = vadd.f32 0.0, %v219
  %221 = vmatmul.f32.gmra.mxu0 %v18
  %v222 = vpop.f32.mrf.mxu0
  %v223 = vadd.f32 0.0, %v222
  %224 = vmatmul.f32.gmra.mxu0 %v19
  %v225 = vpop.f32.mrf.mxu0
  %v226 = vadd.f32 0.0, %v225
  %227 = vmatmul.f32.gmra.mxu0 %v20
  %v228 = vpop.f32.mrf.mxu0
  %v229 = vadd.f32 0.0, %v228
  %230 = vmatmul.f32.gmra.mxu0 %v21
  %v231 = vpop.f32.mrf.mxu0
  %v232 = vadd.f32 0.0, %v231
  %233 = vmatmul.f32.gmra.mxu0 %v22
  %v234 = vpop.f32.mrf.mxu0
  %v235 = vadd.f32 0.0, %v234
  %236 = vmatmul.f32.gmra.mxu0 %v23
  %v237 = vpop.f32.mrf.mxu0
  %v238 = vadd.f32 0.0, %v237
  %239 = vmatmul.f32.gmra.mxu0 %v24
  %v240 = vpop.f32.mrf.mxu0
  %v241 = vadd.f32 0.0, %v240
  %242 = vmatmul.f32.gmra.mxu0 %v25
  %v243 = vpop.f32.mrf.mxu0
  %v244 = vadd.f32 0.0, %v243
  %245 = vmatmul.f32.gmra.mxu0 %v26
  %v246 = vpop.f32.mrf.mxu0
  %v247 = vadd.f32 0.0, %v246
  %248 = vmatmul.f32.gmra.mxu0 %v27
  %v249 = vpop.f32.mrf.mxu0
  %v250 = vadd.f32 0.0, %v249
  %251 = vmatmul.f32.gmra.mxu0 %v28
  %v252 = vpop.f32.mrf.mxu0
  %v253 = vadd.f32 0.0, %v252
  %254 = vmatmul.f32.gmra.mxu0 %v29
  %v255 = vpop.f32.mrf.mxu0
  %v256 = vadd.f32 0.0, %v255
  %257 = vmatmul.f32.gmra.mxu0 %v30
  %v258 = vpop.f32.mrf.mxu0
  %v259 = vadd.f32 0.0, %v258
  %260 = vmatmul.f32.gmra.mxu0 %v31
  %v261 = vpop.f32.mrf.mxu0
  %v262 = vadd.f32 0.0, %v261
  %263 = vmatmul.f32.gmra.mxu0 %v32
  %v264 = vpop.f32.mrf.mxu0
  %v265 = vadd.f32 0.0, %v264
  %266 = vmatmul.f32.gmra.mxu0 %v33
  %v267 = vpop.f32.mrf.mxu0
  %v268 = vadd.f32 0.0, %v267
  %269 = vmatmul.f32.gmra.mxu0 %v34
  %v270 = vpop.f32.mrf.mxu0
  %v271 = vadd.f32 0.0, %v270
  %272 = vmatmul.f32.gmra.mxu0 %v35
  %v273 = vpop.f32.mrf.mxu0
  %v274 = vadd.f32 0.0, %v273
  %275 = vmatmul.f32.gmra.mxu0 %v36
  %v276 = vpop.f32.mrf.mxu0
  %v277 = vadd.f32 0.0, %v276
  %278 = vmatmul.f32.gmra.mxu0 %v37
  %v279 = vpop.f32.mrf.mxu0
  %v280 = vadd.f32 0.0, %v279
  %281 = vmatmul.f32.gmra.mxu0 %v38
  %v282 = vpop.f32.mrf.mxu0
  %v283 = vadd.f32 0.0, %v282
  %284 = vmatmul.f32.gmra.mxu0 %v39
  %v285 = vpop.f32.mrf.mxu0
  %v286 = vadd.f32 0.0, %v285
  %287 = vmatmul.f32.gmra.mxu0 %v40
  %v288 = vpop.f32.mrf.mxu0
  %v289 = vadd.f32 0.0, %v288
  %290 = vmatmul.f32.gmra.mxu0 %v41
  %v291 = vpop.f32.mrf.mxu0
  %v292 = vadd.f32 0.0, %v291
  %293 = vmatmul.f32.gmra.mxu0 %v42
  %v294 = vpop.f32.mrf.mxu0
  %v295 = vadd.f32 0.0, %v294
  %296 = vmatmul.f32.gmra.mxu0 %v43
  %v297 = vpop.f32.mrf.mxu0
  %v298 = vadd.f32 0.0, %v297
  %299 = vmatmul.f32.gmra.mxu0 %v44
  %v300 = vpop.f32.mrf.mxu0
  %v301 = vadd.f32 0.0, %v300
  %302 = vdwg.mxu0
  %v303 = vpack.c.bf16 %v95, %v95
  %v304 = vpack.c.bf16 %v98, %v98
  %v305 = vpack.c.bf16 %v101, %v101
  %v306 = vpack.c.bf16 %v104, %v104
  %v307 = vpack.c.bf16 %v107, %v107
  %v308 = vpack.c.bf16 %v110, %v110
  %v309 = vpack.c.bf16 %v113, %v113
  %v310 = vpack.c.bf16 %v116, %v116
  %v311 = vpack.c.bf16 %v119, %v119
  %v312 = vpack.c.bf16 %v122, %v122
  %v313 = vpack.c.bf16 %v125, %v125
  %v314 = vpack.c.bf16 %v128, %v128
  %v315 = vpack.c.bf16 %v131, %v131
  %v316 = vpack.c.bf16 %v134, %v134
  %v317 = vpack.c.bf16 %v137, %v137
  %v318 = vpack.c.bf16 %v140, %v140
  %v319 = vpack.c.bf16 %v143, %v143
  %v320 = vpack.c.bf16 %v146, %v146
  %v321 = vpack.c.bf16 %v149, %v149
  %v322 = vpack.c.bf16 %v152, %v152
  %v323 = vpack.c.bf16 %v155, %v155
  %v324 = vpack.c.bf16 %v158, %v158
  %v325 = vpack.c.bf16 %v161, %v161
  %v326 = vpack.c.bf16 %v164, %v164
  %v327 = vpack.c.bf16 %v167, %v167
  %v328 = vpack.c.bf16 %v170, %v170
  %v329 = vpack.c.bf16 %v173, %v173
  %v330 = vpack.c.bf16 %v176, %v176
  %v331 = vpack.c.bf16 %v179, %v179
  %v332 = vpack.c.bf16 %v182, %v182
  %v333 = vpack.c.bf16 %v185, %v185
  %v334 = vpack.c.bf16 %v188, %v188
  %335 = vst [vmem:[%s2] sm:$0xf] %v303
  %336 = vst [vmem:[%s2 + $0x4] sm:$0xf] %v304
  %337 = vst [vmem:[%s2 + $0x8] sm:$0xf] %v305
  %338 = vst [vmem:[%s2 + $0xc] sm:$0xf] %v306
  %339 = vst [vmem:[%s2 + $0x10] sm:$0xf] %v307
  %340 = vst [vmem:[%s2 + $0x14] sm:$0xf] %v308
  %341 = vst [vmem:[%s2 + $0x18] sm:$0xf] %v309
  %342 = vst [vmem:[%s2 + $0x1c] sm:$0xf] %v310
  %343 = vst [vmem:[%s2 + $0x20] sm:$0xf] %v311
  %344 = vst [vmem:[%s2 + $0x24] sm:$0xf] %v312
  %345 = vst [vmem:[%s2 + $0x28] sm:$0xf] %v313
  %346 = vst [vmem:[%s2 + $0x2c] sm:$0xf] %v314
  %347 = vst [vmem:[%s2 + $0x30] sm:$0xf] %v315
  %348 = vst [vmem:[%s2 + $0x34] sm:$0xf] %v316
  %349 = vst [vmem:[%s2 + $0x38] sm:$0xf] %v317
  %350 = vst [vmem:[%s2 + $0x3c] sm:$0xf] %v318
  %351 = vst [vmem:[%s2 + $0x40] sm:$0xf] %v319
  %352 = vst [vmem:[%s2 + $0x44] sm:$0xf] %v320
  %353 = vst [vmem:[%s2 + $0x48] sm:$0xf] %v321
  %354 = vst [vmem:[%s2 + $0x4c] sm:$0xf] %v322
  %355 = vst [vmem:[%s2 + $0x50] sm:$0xf] %v323
  %356 = vst [vmem:[%s2 + $0x54] sm:$0xf] %v324
  %357 = vst [vmem:[%s2 + $0x58] sm:$0xf] %v325
  %358 = vst [vmem:[%s2 + $0x5c] sm:$0xf] %v326
  %359 = vst [vmem:[%s2 + $0x60] sm:$0xf] %v327
  %360 = vst [vmem:[%s2 + $0x64] sm:$0xf] %v328
  %361 = vst [vmem:[%s2 + $0x68] sm:$0xf] %v329
  %362 = vst [vmem:[%s2 + $0x6c] sm:$0xf] %v330
  %363 = vst [vmem:[%s2 + $0x70] sm:$0xf] %v331
  %364 = vst [vmem:[%s2 + $0x74] sm:$0xf] %v332
  %365 = vst [vmem:[%s2 + $0x78] sm:$0xf] %v333
  %366 = vst [vmem:[%s2 + $0x7c] sm:$0xf] %v334
  %367 = vst [vmem:[%s3] sm:$0xff] %v208
  %368 = vst [vmem:[%s3 + $0x8] sm:$0xff] %v211
  %369 = vst [vmem:[%s3 + $0x10] sm:$0xff] %v214
  %370 = vst [vmem:[%s3 + $0x18] sm:$0xff] %v217
  %371 = vst [vmem:[%s3 + $0x20] sm:$0xff] %v220
  %372 = vst [vmem:[%s3 + $0x28] sm:$0xff] %v223
  %373 = vst [vmem:[%s3 + $0x30] sm:$0xff] %v226
  %374 = vst [vmem:[%s3 + $0x38] sm:$0xff] %v229
  %375 = vst [vmem:[%s3 + $0x40] sm:$0xff] %v232
  %376 = vst [vmem:[%s3 + $0x48] sm:$0xff] %v235
  %377 = vst [vmem:[%s3 + $0x50] sm:$0xff] %v238
  %378 = vst [vmem:[%s3 + $0x58] sm:$0xff] %v241
  %379 = vst [vmem:[%s3 + $0x60] sm:$0xff] %v244
  %380 = vst [vmem:[%s3 + $0x68] sm:$0xff] %v247
  %381 = vst [vmem:[%s3 + $0x70] sm:$0xff] %v250
  %382 = vst [vmem:[%s3 + $0x78] sm:$0xff] %v253
  %383 = vst [vmem:[%s3 + $0x80] sm:$0xff] %v256
  %384 = vst [vmem:[%s3 + $0x88] sm:$0xff] %v259
  %385 = vst [vmem:[%s3 + $0x90] sm:$0xff] %v262
  %386 = vst [vmem:[%s3 + $0x98] sm:$0xff] %v265
  %387 = vst [vmem:[%s3 + $0xa0] sm:$0xff] %v268
  %388 = vst [vmem:[%s3 + $0xa8] sm:$0xff] %v271
  %389 = vst [vmem:[%s3 + $0xb0] sm:$0xff] %v274
  %390 = vst [vmem:[%s3 + $0xb8] sm:$0xff] %v277
  %391 = vst [vmem:[%s3 + $0xc0] sm:$0xff] %v280
  %392 = vst [vmem:[%s3 + $0xc8] sm:$0xff] %v283
  %393 = vst [vmem:[%s3 + $0xd0] sm:$0xff] %v286
  %394 = vst [vmem:[%s3 + $0xd8] sm:$0xff] %v289
  %395 = vst [vmem:[%s3 + $0xe0] sm:$0xff] %v292
  %396 = vst [vmem:[%s3 + $0xe8] sm:$0xff] %v295
  %397 = vst [vmem:[%s3 + $0xf0] sm:$0xff] %v298
  %398 = vst [vmem:[%s3 + $0xf8] sm:$0xff] %v301
  // Predicated region
  $region10: #{gcn_nc_forward.4} parent=0 // pred_check
    _
  $region11: #{gcn_nc_forward.4} parent=0 // pred_check_branch
    %400 = sbr.rel (0) target = $region13
  $region12: #{gcn_nc_forward.4} parent=0 // pred_region
    _
  $region13: #{gcn_nc_forward.4} parent=0 // pred_fallthru
    _
  // Predicated region
  $region14: #{gcn_nc_forward.4} parent=0 // pred_check
    _
  $region15: #{gcn_nc_forward.4} parent=0 // pred_check_branch
    %402 = sbr.rel (0) target = $region17
  $region16: #{gcn_nc_forward.4} parent=0 // pred_region
    _
  $region17: #{gcn_nc_forward.4} parent=0 // pred_fallthru
    _
  // Predicated region
  $region18: #{gcn_nc_forward.4} parent=0 // pred_check
    _
  $region19: #{gcn_nc_forward.4} parent=0 // pred_check_branch
    %404 = sbr.rel (0) target = $region21
  $region20: #{gcn_nc_forward.4} parent=0 // pred_region
    _
  $region21: #{gcn_nc_forward.4} parent=0 // pred_fallthru
    _
  // Predicated region
  $region22: #{gcn_nc_forward.4} parent=0 // pred_check
    _
  $region23: #{gcn_nc_forward.4} parent=0 // pred_check_branch
    %406 = sbr.rel (0) target = $region25
  $region24: #{gcn_nc_forward.4} parent=0 // pred_region
    _
  $region25: #{gcn_nc_forward.4} parent=0 // pred_fallthru
    _

// kernel: gcn_nc_forward.7
$region0: #{gcn_nc_forward.7}
  #allocation0 [shape = 'u32[]', space=smem, size = 0x4, offset = 0x4, fixed_abs, tag = 'smem constant byte address 0x4 - core index']
  #allocation1 [shape = 'u32[72,128]{1,0:T(1,128)}', space=vmem, size = 0x9000, scoped, tag = 'internal scratch']
  #allocation2 [shape = 'f32[256,128]{1,0:T(8,128)}', space=vmem, size = 0x20000, scoped, tag = 'scratch operand']
  %s0 = inlined_call_operand.vmem [shape: bf16[256,256], index: 0, kind: input, shape index: {}]
  %s1 = inlined_call_operand.vmem [shape: bf16[256,128], index: 1, kind: input, shape index: {}]
  %s2 = inlined_call_operand.vmem [shape: f32[1,128], index: 2, kind: input, shape index: {}]
  %s3 = inlined_call_operand.vmem [shape: f32[256,128], index: 3, kind: output, shape index: {}]
  %s4 = sld [smem:[#allocation0]]
  $region30: #{gcn_nc_forward.7} parent=0
    _
  %s6 = ssub.s32 1, %s4
  %s7 = scalar_select 0, %s6, %s4
  // Predicated region
  $region2: #{gcn_nc_forward.7} parent=0 // pred_check
    _
  $region3: #{gcn_nc_forward.7} parent=0 // pred_check_branch
    %9 = sbr.rel (0) target = $region5
  $region4: #{gcn_nc_forward.7} parent=0 // pred_region
    _
  $region5: #{gcn_nc_forward.7} parent=0 // pred_fallthru
    _
  // Predicated region
  $region6: #{gcn_nc_forward.7} parent=0 // pred_check
    _
  $region7: #{gcn_nc_forward.7} parent=0 // pred_check_branch
    %11 = sbr.rel (0) target = $region9
  $region8: #{gcn_nc_forward.7} parent=0 // pred_region
    _
  $region9: #{gcn_nc_forward.7} parent=0 // pred_fallthru
    _
  // Predicated region
  $region10: #{gcn_nc_forward.7} parent=0 // pred_check
    _
  $region11: #{gcn_nc_forward.7} parent=0 // pred_check_branch
    %13 = sbr.rel (0) target = $region13
  $region12: #{gcn_nc_forward.7} parent=0 // pred_region
    _
  $region13: #{gcn_nc_forward.7} parent=0 // pred_fallthru
    _
  %p14 = scmp.eq.s32.totalorder 0, 0
  // Predicated region
  $region14: #{gcn_nc_forward.7} parent=0 // pred_check
    %p15 = pneg %p14
  $region15: #{gcn_nc_forward.7} parent=0 // pred_check_branch
    %17 = sbr.rel (%p15) target = $region17
  $region16: #{gcn_nc_forward.7} parent=0 // pred_region
    %18 = vst [vmem:[#allocation2] sm:$0xff] 0.0
    %19 = vst [vmem:[#allocation2 + $0x8] sm:$0xff] 0.0
    %20 = vst [vmem:[#allocation2 + $0x10] sm:$0xff] 0.0
    %21 = vst [vmem:[#allocation2 + $0x18] sm:$0xff] 0.0
    %22 = vst [vmem:[#allocation2 + $0x20] sm:$0xff] 0.0
    %23 = vst [vmem:[#allocation2 + $0x28] sm:$0xff] 0.0
    %24 = vst [vmem:[#allocation2 + $0x30] sm:$0xff] 0.0
    %25 = vst [vmem:[#allocation2 + $0x38] sm:$0xff] 0.0
    %26 = vst [vmem:[#allocation2 + $0x40] sm:$0xff] 0.0
    %27 = vst [vmem:[#allocation2 + $0x48] sm:$0xff] 0.0
    %28 = vst [vmem:[#allocation2 + $0x50] sm:$0xff] 0.0
    %29 = vst [vmem:[#allocation2 + $0x58] sm:$0xff] 0.0
    %30 = vst [vmem:[#allocation2 + $0x60] sm:$0xff] 0.0
    %31 = vst [vmem:[#allocation2 + $0x68] sm:$0xff] 0.0
    %32 = vst [vmem:[#allocation2 + $0x70] sm:$0xff] 0.0
    %33 = vst [vmem:[#allocation2 + $0x78] sm:$0xff] 0.0
    %34 = vst [vmem:[#allocation2 + $0x80] sm:$0xff] 0.0
    %35 = vst [vmem:[#allocation2 + $0x88] sm:$0xff] 0.0
    %36 = vst [vmem:[#allocation2 + $0x90] sm:$0xff] 0.0
    %37 = vst [vmem:[#allocation2 + $0x98] sm:$0xff] 0.0
    %38 = vst [vmem:[#allocation2 + $0xa0] sm:$0xff] 0.0
    %39 = vst [vmem:[#allocation2 + $0xa8] sm:$0xff] 0.0
    %40 = vst [vmem:[#allocation2 + $0xb0] sm:$0xff] 0.0
    %41 = vst [vmem:[#allocation2 + $0xb8] sm:$0xff] 0.0
    %42 = vst [vmem:[#allocation2 + $0xc0] sm:$0xff] 0.0
    %43 = vst [vmem:[#allocation2 + $0xc8] sm:$0xff] 0.0
    %44 = vst [vmem:[#allocation2 + $0xd0] sm:$0xff] 0.0
    %45 = vst [vmem:[#allocation2 + $0xd8] sm:$0xff] 0.0
    %46 = vst [vmem:[#allocation2 + $0xe0] sm:$0xff] 0.0
    %47 = vst [vmem:[#allocation2 + $0xe8] sm:$0xff] 0.0
    %48 = vst [vmem:[#allocation2 + $0xf0] sm:$0xff] 0.0
    %49 = vst [vmem:[#allocation2 + $0xf8] sm:$0xff] 0.0
  $region17: #{gcn_nc_forward.7} parent=0 // pred_fallthru
    _
  %v50 = vld [vmem:[#allocation2] sm:$0xff]
  %v51 = vld [vmem:[#allocation2 + $0x8] sm:$0xff]
  %v52 = vld [vmem:[#allocation2 + $0x10] sm:$0xff]
  %v53 = vld [vmem:[#allocation2 + $0x18] sm:$0xff]
  %v54 = vld [vmem:[#allocation2 + $0x20] sm:$0xff]
  %v55 = vld [vmem:[#allocation2 + $0x28] sm:$0xff]
  %v56 = vld [vmem:[#allocation2 + $0x30] sm:$0xff]
  %v57 = vld [vmem:[#allocation2 + $0x38] sm:$0xff]
  %v58 = vld [vmem:[#allocation2 + $0x40] sm:$0xff]
  %v59 = vld [vmem:[#allocation2 + $0x48] sm:$0xff]
  %v60 = vld [vmem:[#allocation2 + $0x50] sm:$0xff]
  %v61 = vld [vmem:[#allocation2 + $0x58] sm:$0xff]
  %v62 = vld [vmem:[#allocation2 + $0x60] sm:$0xff]
  %v63 = vld [vmem:[#allocation2 + $0x68] sm:$0xff]
  %v64 = vld [vmem:[#allocation2 + $0x70] sm:$0xff]
  %v65 = vld [vmem:[#allocation2 + $0x78] sm:$0xff]
  %v66 = vld [vmem:[#allocation2 + $0x80] sm:$0xff]
  %v67 = vld [vmem:[#allocation2 + $0x88] sm:$0xff]
  %v68 = vld [vmem:[#allocation2 + $0x90] sm:$0xff]
  %v69 = vld [vmem:[#allocation2 + $0x98] sm:$0xff]
  %v70 = vld [vmem:[#allocation2 + $0xa0] sm:$0xff]
  %v71 = vld [vmem:[#allocation2 + $0xa8] sm:$0xff]
  %v72 = vld [vmem:[#allocation2 + $0xb0] sm:$0xff]
  %v73 = vld [vmem:[#allocation2 + $0xb8] sm:$0xff]
  %v74 = vld [vmem:[#allocation2 + $0xc0] sm:$0xff]
  %v75 = vld [vmem:[#allocation2 + $0xc8] sm:$0xff]
  %v76 = vld [vmem:[#allocation2 + $0xd0] sm:$0xff]
  %v77 = vld [vmem:[#allocation2 + $0xd8] sm:$0xff]
  %v78 = vld [vmem:[#allocation2 + $0xe0] sm:$0xff]
  %v79 = vld [vmem:[#allocation2 + $0xe8] sm:$0xff]
  %v80 = vld [vmem:[#allocation2 + $0xf0] sm:$0xff]
  %v81 = vld [vmem:[#allocation2 + $0xf8] sm:$0xff]
  %v82 = vld [vmem:[%s0] sm:$0xff]
  %v83 = vld [vmem:[%s0 + $0x8] sm:$0xff]
  %v84 = vld [vmem:[%s0 + $0x10] sm:$0xff]
  %v85 = vld [vmem:[%s0 + $0x18] sm:$0xff]
  %v86 = vld [vmem:[%s0 + $0x20] sm:$0xff]
  %v87 = vld [vmem:[%s0 + $0x28] sm:$0xff]
  %v88 = vld [vmem:[%s0 + $0x30] sm:$0xff]
  %v89 = vld [vmem:[%s0 + $0x38] sm:$0xff]
  %v90 = vld [vmem:[%s0 + $0x40] sm:$0xff]
  %v91 = vld [vmem:[%s0 + $0x48] sm:$0xff]
  %v92 = vld [vmem:[%s0 + $0x50] sm:$0xff]
  %v93 = vld [vmem:[%s0 + $0x58] sm:$0xff]
  %v94 = vld [vmem:[%s0 + $0x60] sm:$0xff]
  %v95 = vld [vmem:[%s0 + $0x68] sm:$0xff]
  %v96 = vld [vmem:[%s0 + $0x70] sm:$0xff]
  %v97 = vld [vmem:[%s0 + $0x78] sm:$0xff]
  %v98 = vld [vmem:[%s0 + $0x80] sm:$0xff]
  %v99 = vld [vmem:[%s0 + $0x88] sm:$0xff]
  %v100 = vld [vmem:[%s0 + $0x90] sm:$0xff]
  %v101 = vld [vmem:[%s0 + $0x98] sm:$0xff]
  %v102 = vld [vmem:[%s0 + $0xa0] sm:$0xff]
  %v103 = vld [vmem:[%s0 + $0xa8] sm:$0xff]
  %v104 = vld [vmem:[%s0 + $0xb0] sm:$0xff]
  %v105 = vld [vmem:[%s0 + $0xb8] sm:$0xff]
  %v106 = vld [vmem:[%s0 + $0xc0] sm:$0xff]
  %v107 = vld [vmem:[%s0 + $0xc8] sm:$0xff]
  %v108 = vld [vmem:[%s0 + $0xd0] sm:$0xff]
  %v109 = vld [vmem:[%s0 + $0xd8] sm:$0xff]
  %v110 = vld [vmem:[%s0 + $0xe0] sm:$0xff]
  %v111 = vld [vmem:[%s0 + $0xe8] sm:$0xff]
  %v112 = vld [vmem:[%s0 + $0xf0] sm:$0xff]
  %v113 = vld [vmem:[%s0 + $0xf8] sm:$0xff]
  %v114 = vld [vmem:[%s1] sm:$0xf]
  %v115 = vld [vmem:[%s1 + $0x4] sm:$0xf]
  %v116 = vld [vmem:[%s1 + $0x8] sm:$0xf]
  %v117 = vld [vmem:[%s1 + $0xc] sm:$0xf]
  %v118 = vld [vmem:[%s1 + $0x10] sm:$0xf]
  %v119 = vld [vmem:[%s1 + $0x14] sm:$0xf]
  %v120 = vld [vmem:[%s1 + $0x18] sm:$0xf]
  %v121 = vld [vmem:[%s1 + $0x1c] sm:$0xf]
  %v122 = vld [vmem:[%s1 + $0x20] sm:$0xf]
  %v123 = vld [vmem:[%s1 + $0x24] sm:$0xf]
  %v124 = vld [vmem:[%s1 + $0x28] sm:$0xf]
  %v125 = vld [vmem:[%s1 + $0x2c] sm:$0xf]
  %v126 = vld [vmem:[%s1 + $0x30] sm:$0xf]
  %v127 = vld [vmem:[%s1 + $0x34] sm:$0xf]
  %v128 = vld [vmem:[%s1 + $0x38] sm:$0xf]
  %v129 = vld [vmem:[%s1 + $0x3c] sm:$0xf]
  %v130 = vld [vmem:[%s1 + $0x40] sm:$0xf]
  %v131 = vld [vmem:[%s1 + $0x44] sm:$0xf]
  %v132 = vld [vmem:[%s1 + $0x48] sm:$0xf]
  %v133 = vld [vmem:[%s1 + $0x4c] sm:$0xf]
  %v134 = vld [vmem:[%s1 + $0x50] sm:$0xf]
  %v135 = vld [vmem:[%s1 + $0x54] sm:$0xf]
  %v136 = vld [vmem:[%s1 + $0x58] sm:$0xf]
  %v137 = vld [vmem:[%s1 + $0x5c] sm:$0xf]
  %v138 = vld [vmem:[%s1 + $0x60] sm:$0xf]
  %v139 = vld [vmem:[%s1 + $0x64] sm:$0xf]
  %v140 = vld [vmem:[%s1 + $0x68] sm:$0xf]
  %v141 = vld [vmem:[%s1 + $0x6c] sm:$0xf]
  %v142 = vld [vmem:[%s1 + $0x70] sm:$0xf]
  %v143 = vld [vmem:[%s1 + $0x74] sm:$0xf]
  %v144 = vld [vmem:[%s1 + $0x78] sm:$0xf]
  %v145 = vld [vmem:[%s1 + $0x7c] sm:$0xf]
  %v178 = vunpack.c.l.b16 %v82
  %v179 = vunpack.c.h.b16 %v82
  %v180 = vunpack.c.l.b16 %v83
  %v181 = vunpack.c.h.b16 %v83
  %v182 = vunpack.c.l.b16 %v84
  %v183 = vunpack.c.h.b16 %v84
  %v184 = vunpack.c.l.b16 %v85
  %v185 = vunpack.c.h.b16 %v85
  %v186 = vunpack.c.l.b16 %v86
  %v187 = vunpack.c.h.b16 %v86
  %v188 = vunpack.c.l.b16 %v87
  %v189 = vunpack.c.h.b16 %v87
  %v190 = vunpack.c.l.b16 %v88
  %v191 = vunpack.c.h.b16 %v88
  %v192 = vunpack.c.l.b16 %v89
  %v193 = vunpack.c.h.b16 %v89
  %v194 = vunpack.c.l.b16 %v90
  %v195 = vunpack.c.h.b16 %v90
  %v196 = vunpack.c.l.b16 %v91
  %v197 = vunpack.c.h.b16 %v91
  %v198 = vunpack.c.l.b16 %v92
  %v199 = vunpack.c.h.b16 %v92
  %v200 = vunpack.c.l.b16 %v93
  %v201 = vunpack.c.h.b16 %v93
  %v202 = vunpack.c.l.b16 %v94
  %v203 = vunpack.c.h.b16 %v94
  %v204 = vunpack.c.l.b16 %v95
  %v205 = vunpack.c.h.b16 %v95
  %v206 = vunpack.c.l.b16 %v96
  %v207 = vunpack.c.h.b16 %v96
  %v208 = vunpack.c.l.b16 %v97
  %v209 = vunpack.c.h.b16 %v97
  %v210 = vunpack.c.l.b16 %v98
  %v211 = vunpack.c.h.b16 %v98
  %v212 = vunpack.c.l.b16 %v99
  %v213 = vunpack.c.h.b16 %v99
  %v214 = vunpack.c.l.b16 %v100
  %v215 = vunpack.c.h.b16 %v100
  %v216 = vunpack.c.l.b16 %v101
  %v217 = vunpack.c.h.b16 %v101
  %v218 = vunpack.c.l.b16 %v102
  %v219 = vunpack.c.h.b16 %v102
  %v220 = vunpack.c.l.b16 %v103
  %v221 = vunpack.c.h.b16 %v103
  %v222 = vunpack.c.l.b16 %v104
  %v223 = vunpack.c.h.b16 %v104
  %v224 = vunpack.c.l.b16 %v105
  %v225 = vunpack.c.h.b16 %v105
  %v226 = vunpack.c.l.b16 %v106
  %v227 = vunpack.c.h.b16 %v106
  %v228 = vunpack.c.l.b16 %v107
  %v229 = vunpack.c.h.b16 %v107
  %v230 = vunpack.c.l.b16 %v108
  %v231 = vunpack.c.h.b16 %v108
  %v232 = vunpack.c.l.b16 %v109
  %v233 = vunpack.c.h.b16 %v109
  %v234 = vunpack.c.l.b16 %v110
  %v235 = vunpack.c.h.b16 %v110
  %v236 = vunpack.c.l.b16 %v111
  %v237 = vunpack.c.h.b16 %v111
  %v238 = vunpack.c.l.b16 %v112
  %v239 = vunpack.c.h.b16 %v112
  %v240 = vunpack.c.l.b16 %v113
  %v241 = vunpack.c.h.b16 %v113
  %v242 = vpack.c.b16 %v180, %v178
  %v243 = vpack.c.b16 %v181, %v179
  %v244 = vpack.c.b16 %v184, %v182
  %v245 = vpack.c.b16 %v185, %v183
  %v246 = vpack.c.b16 %v188, %v186
  %v247 = vpack.c.b16 %v189, %v187
  %v248 = vpack.c.b16 %v192, %v190
  %v249 = vpack.c.b16 %v193, %v191
  %v250 = vpack.c.b16 %v196, %v194
  %v251 = vpack.c.b16 %v197, %v195
  %v252 = vpack.c.b16 %v200, %v198
  %v253 = vpack.c.b16 %v201, %v199
  %v254 = vpack.c.b16 %v204, %v202
  %v255 = vpack.c.b16 %v205, %v203
  %v256 = vpack.c.b16 %v208, %v206
  %v257 = vpack.c.b16 %v209, %v207
  %v258 = vpack.c.b16 %v212, %v210
  %v259 = vpack.c.b16 %v213, %v211
  %v260 = vpack.c.b16 %v216, %v214
  %v261 = vpack.c.b16 %v217, %v215
  %v262 = vpack.c.b16 %v220, %v218
  %v263 = vpack.c.b16 %v221, %v219
  %v264 = vpack.c.b16 %v224, %v222
  %v265 = vpack.c.b16 %v225, %v223
  %v266 = vpack.c.b16 %v228, %v226
  %v267 = vpack.c.b16 %v229, %v227
  %v268 = vpack.c.b16 %v232, %v230
  %v269 = vpack.c.b16 %v233, %v231
  %v270 = vpack.c.b16 %v236, %v234
  %v271 = vpack.c.b16 %v237, %v235
  %v272 = vpack.c.b16 %v240, %v238
  %v273 = vpack.c.b16 %v241, %v239
  %v338 = vunpack.c.l.b16 %v114
  %v339 = vunpack.c.l.b16 %v115
  %v340 = vunpack.c.l.b16 %v116
  %v341 = vunpack.c.l.b16 %v117
  %v342 = vunpack.c.l.b16 %v118
  %v343 = vunpack.c.l.b16 %v119
  %v344 = vunpack.c.l.b16 %v120
  %v345 = vunpack.c.l.b16 %v121
  %v346 = vunpack.c.l.b16 %v122
  %v347 = vunpack.c.l.b16 %v123
  %v348 = vunpack.c.l.b16 %v124
  %v349 = vunpack.c.l.b16 %v125
  %v350 = vunpack.c.l.b16 %v126
  %v351 = vunpack.c.l.b16 %v127
  %v352 = vunpack.c.l.b16 %v128
  %v353 = vunpack.c.l.b16 %v129
  %v354 = vunpack.c.l.b16 %v130
  %v355 = vunpack.c.l.b16 %v131
  %v356 = vunpack.c.l.b16 %v132
  %v357 = vunpack.c.l.b16 %v133
  %v358 = vunpack.c.l.b16 %v134
  %v359 = vunpack.c.l.b16 %v135
  %v360 = vunpack.c.l.b16 %v136
  %v361 = vunpack.c.l.b16 %v137
  %v362 = vunpack.c.l.b16 %v138
  %v363 = vunpack.c.l.b16 %v139
  %v364 = vunpack.c.l.b16 %v140
  %v365 = vunpack.c.l.b16 %v141
  %v366 = vunpack.c.l.b16 %v142
  %v367 = vunpack.c.l.b16 %v143
  %v368 = vunpack.c.l.b16 %v144
  %v369 = vunpack.c.l.b16 %v145
  %v370 = vpack.c.b16 %v339, %v338
  %v371 = vpack.c.b16 %v341, %v340
  %v372 = vpack.c.b16 %v343, %v342
  %v373 = vpack.c.b16 %v345, %v344
  %v374 = vpack.c.b16 %v347, %v346
  %v375 = vpack.c.b16 %v349, %v348
  %v376 = vpack.c.b16 %v351, %v350
  %v377 = vpack.c.b16 %v353, %v352
  %v378 = vpack.c.b16 %v355, %v354
  %v379 = vpack.c.b16 %v357, %v356
  %v380 = vpack.c.b16 %v359, %v358
  %v381 = vpack.c.b16 %v361, %v360
  %v382 = vpack.c.b16 %v363, %v362
  %v383 = vpack.c.b16 %v365, %v364
  %v384 = vpack.c.b16 %v367, %v366
  %v385 = vpack.c.b16 %v369, %v368
  %402 = vmatpush.bf16.msra.mxu0 %v377
  %403 = vmatpush.bf16.msra.mxu0 %v376
  %404 = vmatpush.bf16.msra.mxu0 %v375
  %405 = vmatpush.bf16.msra.mxu0 %v374
  %406 = vmatpush.bf16.msra.mxu0 %v373
  %407 = vmatpush.bf16.msra.mxu0 %v372
  %408 = vmatpush.bf16.msra.mxu0 %v371
  %409 = vmatpush.bf16.msra.mxu0 %v370
  %410 = vmatmul.bf16.gmra.mxu0 %v242
  %v411 = vpop.f32.mrf.mxu0
  %v412 = vadd.f32 0.0, %v411
  %v413 = vpop.f32.mrf.mxu0
  %v414 = vadd.f32 0.0, %v413
  %415 = vmatmul.bf16.gmra.mxu0 %v244
  %v416 = vpop.f32.mrf.mxu0
  %v417 = vadd.f32 0.0, %v416
  %v418 = vpop.f32.mrf.mxu0
  %v419 = vadd.f32 0.0, %v418
  %420 = vmatmul.bf16.gmra.mxu0 %v246
  %v421 = vpop.f32.mrf.mxu0
  %v422 = vadd.f32 0.0, %v421
  %v423 = vpop.f32.mrf.mxu0
  %v424 = vadd.f32 0.0, %v423
  %425 = vmatmul.bf16.gmra.mxu0 %v248
  %v426 = vpop.f32.mrf.mxu0
  %v427 = vadd.f32 0.0, %v426
  %v428 = vpop.f32.mrf.mxu0
  %v429 = vadd.f32 0.0, %v428
  %430 = vmatmul.bf16.gmra.mxu0 %v250
  %v431 = vpop.f32.mrf.mxu0
  %v432 = vadd.f32 0.0, %v431
  %v433 = vpop.f32.mrf.mxu0
  %v434 = vadd.f32 0.0, %v433
  %435 = vmatmul.bf16.gmra.mxu0 %v252
  %v436 = vpop.f32.mrf.mxu0
  %v437 = vadd.f32 0.0, %v436
  %v438 = vpop.f32.mrf.mxu0
  %v439 = vadd.f32 0.0, %v438
  %440 = vmatmul.bf16.gmra.mxu0 %v254
  %v441 = vpop.f32.mrf.mxu0
  %v442 = vadd.f32 0.0, %v441
  %v443 = vpop.f32.mrf.mxu0
  %v444 = vadd.f32 0.0, %v443
  %445 = vmatmul.bf16.gmra.mxu0 %v256
  %v446 = vpop.f32.mrf.mxu0
  %v447 = vadd.f32 0.0, %v446
  %v448 = vpop.f32.mrf.mxu0
  %v449 = vadd.f32 0.0, %v448
  %450 = vmatmul.bf16.gmra.mxu0 %v258
  %v451 = vpop.f32.mrf.mxu0
  %v452 = vadd.f32 0.0, %v451
  %v453 = vpop.f32.mrf.mxu0
  %v454 = vadd.f32 0.0, %v453
  %455 = vmatmul.bf16.gmra.mxu0 %v260
  %v456 = vpop.f32.mrf.mxu0
  %v457 = vadd.f32 0.0, %v456
  %v458 = vpop.f32.mrf.mxu0
  %v459 = vadd.f32 0.0, %v458
  %460 = vmatmul.bf16.gmra.mxu0 %v262
  %v461 = vpop.f32.mrf.mxu0
  %v462 = vadd.f32 0.0, %v461
  %v463 = vpop.f32.mrf.mxu0
  %v464 = vadd.f32 0.0, %v463
  %465 = vmatmul.bf16.gmra.mxu0 %v264
  %v466 = vpop.f32.mrf.mxu0
  %v467 = vadd.f32 0.0, %v466
  %v468 = vpop.f32.mrf.mxu0
  %v469 = vadd.f32 0.0, %v468
  %470 = vmatmul.bf16.gmra.mxu0 %v266
  %v471 = vpop.f32.mrf.mxu0
  %v472 = vadd.f32 0.0, %v471
  %v473 = vpop.f32.mrf.mxu0
  %v474 = vadd.f32 0.0, %v473
  %475 = vmatmul.bf16.gmra.mxu0 %v268
  %v476 = vpop.f32.mrf.mxu0
  %v477 = vadd.f32 0.0, %v476
  %v478 = vpop.f32.mrf.mxu0
  %v479 = vadd.f32 0.0, %v478
  %480 = vmatmul.bf16.gmra.mxu0 %v270
  %v481 = vpop.f32.mrf.mxu0
  %v482 = vadd.f32 0.0, %v481
  %v483 = vpop.f32.mrf.mxu0
  %v484 = vadd.f32 0.0, %v483
  %485 = vmatmul.bf16.gmra.mxu0 %v272
  %v486 = vpop.f32.mrf.mxu0
  %v487 = vadd.f32 0.0, %v486
  %v488 = vpop.f32.mrf.mxu0
  %v489 = vadd.f32 0.0, %v488
  %490 = vdwg.mxu0
  %491 = vmatpush.bf16.msra.mxu0 %v385
  %492 = vmatpush.bf16.msra.mxu0 %v384
  %493 = vmatpush.bf16.msra.mxu0 %v383
  %494 = vmatpush.bf16.msra.mxu0 %v382
  %495 = vmatpush.bf16.msra.mxu0 %v381
  %496 = vmatpush.bf16.msra.mxu0 %v380
  %497 = vmatpush.bf16.msra.mxu0 %v379
  %498 = vmatpush.bf16.msra.mxu0 %v378
  %499 = vmatmul.bf16.gmra.mxu0 %v243
  %v500 = vpop.f32.mrf.mxu0
  %v501 = vadd.f32 %v412, %v500
  %v502 = vpop.f32.mrf.mxu0
  %v503 = vadd.f32 %v414, %v502
  %504 = vmatmul.bf16.gmra.mxu0 %v245
  %v505 = vpop.f32.mrf.mxu0
  %v506 = vadd.f32 %v417, %v505
  %v507 = vpop.f32.mrf.mxu0
  %v508 = vadd.f32 %v419, %v507
  %509 = vmatmul.bf16.gmra.mxu0 %v247
  %v510 = vpop.f32.mrf.mxu0
  %v511 = vadd.f32 %v422, %v510
  %v512 = vpop.f32.mrf.mxu0
  %v513 = vadd.f32 %v424, %v512
  %514 = vmatmul.bf16.gmra.mxu0 %v249
  %v515 = vpop.f32.mrf.mxu0
  %v516 = vadd.f32 %v427, %v515
  %v517 = vpop.f32.mrf.mxu0
  %v518 = vadd.f32 %v429, %v517
  %519 = vmatmul.bf16.gmra.mxu0 %v251
  %v520 = vpop.f32.mrf.mxu0
  %v521 = vadd.f32 %v432, %v520
  %v522 = vpop.f32.mrf.mxu0
  %v523 = vadd.f32 %v434, %v522
  %524 = vmatmul.bf16.gmra.mxu0 %v253
  %v525 = vpop.f32.mrf.mxu0
  %v526 = vadd.f32 %v437, %v525
  %v527 = vpop.f32.mrf.mxu0
  %v528 = vadd.f32 %v439, %v527
  %529 = vmatmul.bf16.gmra.mxu0 %v255
  %v530 = vpop.f32.mrf.mxu0
  %v531 = vadd.f32 %v442, %v530
  %v532 = vpop.f32.mrf.mxu0
  %v533 = vadd.f32 %v444, %v532
  %534 = vmatmul.bf16.gmra.mxu0 %v257
  %v535 = vpop.f32.mrf.mxu0
  %v536 = vadd.f32 %v447, %v535
  %v537 = vpop.f32.mrf.mxu0
  %v538 = vadd.f32 %v449, %v537
  %539 = vmatmul.bf16.gmra.mxu0 %v259
  %v540 = vpop.f32.mrf.mxu0
  %v541 = vadd.f32 %v452, %v540
  %v542 = vpop.f32.mrf.mxu0
  %v543 = vadd.f32 %v454, %v542
  %544 = vmatmul.bf16.gmra.mxu0 %v261
  %v545 = vpop.f32.mrf.mxu0
  %v546 = vadd.f32 %v457, %v545
  %v547 = vpop.f32.mrf.mxu0
  %v548 = vadd.f32 %v459, %v547
  %549 = vmatmul.bf16.gmra.mxu0 %v263
  %v550 = vpop.f32.mrf.mxu0
  %v551 = vadd.f32 %v462, %v550
  %v552 = vpop.f32.mrf.mxu0
  %v553 = vadd.f32 %v464, %v552
  %554 = vmatmul.bf16.gmra.mxu0 %v265
  %v555 = vpop.f32.mrf.mxu0
  %v556 = vadd.f32 %v467, %v555
  %v557 = vpop.f32.mrf.mxu0
  %v558 = vadd.f32 %v469, %v557
  %559 = vmatmul.bf16.gmra.mxu0 %v267
  %v560 = vpop.f32.mrf.mxu0
  %v561 = vadd.f32 %v472, %v560
  %v562 = vpop.f32.mrf.mxu0
  %v563 = vadd.f32 %v474, %v562
  %564 = vmatmul.bf16.gmra.mxu0 %v269
  %v565 = vpop.f32.mrf.mxu0
  %v566 = vadd.f32 %v477, %v565
  %v567 = vpop.f32.mrf.mxu0
  %v568 = vadd.f32 %v479, %v567
  %569 = vmatmul.bf16.gmra.mxu0 %v271
  %v570 = vpop.f32.mrf.mxu0
  %v571 = vadd.f32 %v482, %v570
  %v572 = vpop.f32.mrf.mxu0
  %v573 = vadd.f32 %v484, %v572
  %574 = vmatmul.bf16.gmra.mxu0 %v273
  %v575 = vpop.f32.mrf.mxu0
  %v576 = vadd.f32 %v487, %v575
  %v577 = vpop.f32.mrf.mxu0
  %v578 = vadd.f32 %v489, %v577
  %579 = vdwg.mxu0
  %v580 = vadd.f32 %v50, %v501
  %v581 = vadd.f32 %v51, %v503
  %v582 = vadd.f32 %v52, %v506
  %v583 = vadd.f32 %v53, %v508
  %v584 = vadd.f32 %v54, %v511
  %v585 = vadd.f32 %v55, %v513
  %v586 = vadd.f32 %v56, %v516
  %v587 = vadd.f32 %v57, %v518
  %v588 = vadd.f32 %v58, %v521
  %v589 = vadd.f32 %v59, %v523
  %v590 = vadd.f32 %v60, %v526
  %v591 = vadd.f32 %v61, %v528
  %v592 = vadd.f32 %v62, %v531
  %v593 = vadd.f32 %v63, %v533
  %v594 = vadd.f32 %v64, %v536
  %v595 = vadd.f32 %v65, %v538
  %v596 = vadd.f32 %v66, %v541
  %v597 = vadd.f32 %v67, %v543
  %v598 = vadd.f32 %v68, %v546
  %v599 = vadd.f32 %v69, %v548
  %v600 = vadd.f32 %v70, %v551
  %v601 = vadd.f32 %v71, %v553
  %v602 = vadd.f32 %v72, %v556
  %v603 = vadd.f32 %v73, %v558
  %v604 = vadd.f32 %v74, %v561
  %v605 = vadd.f32 %v75, %v563
  %v606 = vadd.f32 %v76, %v566
  %v607 = vadd.f32 %v77, %v568
  %v608 = vadd.f32 %v78, %v571
  %v609 = vadd.f32 %v79, %v573
  %v610 = vadd.f32 %v80, %v576
  %v611 = vadd.f32 %v81, %v578
  %612 = vst [vmem:[#allocation2] sm:$0xff] %v580
  %613 = vst [vmem:[#allocation2 + $0x8] sm:$0xff] %v581
  %614 = vst [vmem:[#allocation2 + $0x10] sm:$0xff] %v582
  %615 = vst [vmem:[#allocation2 + $0x18] sm:$0xff] %v583
  %616 = vst [vmem:[#allocation2 + $0x20] sm:$0xff] %v584
  %617 = vst [vmem:[#allocation2 + $0x28] sm:$0xff] %v585
  %618 = vst [vmem:[#allocation2 + $0x30] sm:$0xff] %v586
  %619 = vst [vmem:[#allocation2 + $0x38] sm:$0xff] %v587
  %620 = vst [vmem:[#allocation2 + $0x40] sm:$0xff] %v588
  %621 = vst [vmem:[#allocation2 + $0x48] sm:$0xff] %v589
  %622 = vst [vmem:[#allocation2 + $0x50] sm:$0xff] %v590
  %623 = vst [vmem:[#allocation2 + $0x58] sm:$0xff] %v591
  %624 = vst [vmem:[#allocation2 + $0x60] sm:$0xff] %v592
  %625 = vst [vmem:[#allocation2 + $0x68] sm:$0xff] %v593
  %626 = vst [vmem:[#allocation2 + $0x70] sm:$0xff] %v594
  %627 = vst [vmem:[#allocation2 + $0x78] sm:$0xff] %v595
  %628 = vst [vmem:[#allocation2 + $0x80] sm:$0xff] %v596
  %629 = vst [vmem:[#allocation2 + $0x88] sm:$0xff] %v597
  %630 = vst [vmem:[#allocation2 + $0x90] sm:$0xff] %v598
  %631 = vst [vmem:[#allocation2 + $0x98] sm:$0xff] %v599
  %632 = vst [vmem:[#allocation2 + $0xa0] sm:$0xff] %v600
  %633 = vst [vmem:[#allocation2 + $0xa8] sm:$0xff] %v601
  %634 = vst [vmem:[#allocation2 + $0xb0] sm:$0xff] %v602
  %635 = vst [vmem:[#allocation2 + $0xb8] sm:$0xff] %v603
  %636 = vst [vmem:[#allocation2 + $0xc0] sm:$0xff] %v604
  %637 = vst [vmem:[#allocation2 + $0xc8] sm:$0xff] %v605
  %638 = vst [vmem:[#allocation2 + $0xd0] sm:$0xff] %v606
  %639 = vst [vmem:[#allocation2 + $0xd8] sm:$0xff] %v607
  %640 = vst [vmem:[#allocation2 + $0xe0] sm:$0xff] %v608
  %641 = vst [vmem:[#allocation2 + $0xe8] sm:$0xff] %v609
  %642 = vst [vmem:[#allocation2 + $0xf0] sm:$0xff] %v610
  %643 = vst [vmem:[#allocation2 + $0xf8] sm:$0xff] %v611
  // Predicated region
  $region18: #{gcn_nc_forward.7} parent=0 // pred_check
    %p644 = pneg %p14
  $region19: #{gcn_nc_forward.7} parent=0 // pred_check_branch
    %646 = sbr.rel (%p644) target = $region21
  $region20: #{gcn_nc_forward.7} parent=0 // pred_region
    %v647 = vld [vmem:[#allocation2] sm:$0xff]
    %v648 = vld [vmem:[#allocation2 + $0x8] sm:$0xff]
    %v649 = vld [vmem:[#allocation2 + $0x10] sm:$0xff]
    %v650 = vld [vmem:[#allocation2 + $0x18] sm:$0xff]
    %v651 = vld [vmem:[#allocation2 + $0x20] sm:$0xff]
    %v652 = vld [vmem:[#allocation2 + $0x28] sm:$0xff]
    %v653 = vld [vmem:[#allocation2 + $0x30] sm:$0xff]
    %v654 = vld [vmem:[#allocation2 + $0x38] sm:$0xff]
    %v655 = vld [vmem:[#allocation2 + $0x40] sm:$0xff]
    %v656 = vld [vmem:[#allocation2 + $0x48] sm:$0xff]
    %v657 = vld [vmem:[#allocation2 + $0x50] sm:$0xff]
    %v658 = vld [vmem:[#allocation2 + $0x58] sm:$0xff]
    %v659 = vld [vmem:[#allocation2 + $0x60] sm:$0xff]
    %v660 = vld [vmem:[#allocation2 + $0x68] sm:$0xff]
    %v661 = vld [vmem:[#allocation2 + $0x70] sm:$0xff]
    %v662 = vld [vmem:[#allocation2 + $0x78] sm:$0xff]
    %v663 = vld [vmem:[#allocation2 + $0x80] sm:$0xff]
    %v664 = vld [vmem:[#allocation2 + $0x88] sm:$0xff]
    %v665 = vld [vmem:[#allocation2 + $0x90] sm:$0xff]
    %v666 = vld [vmem:[#allocation2 + $0x98] sm:$0xff]
    %v667 = vld [vmem:[#allocation2 + $0xa0] sm:$0xff]
    %v668 = vld [vmem:[#allocation2 + $0xa8] sm:$0xff]
    %v669 = vld [vmem:[#allocation2 + $0xb0] sm:$0xff]
    %v670 = vld [vmem:[#allocation2 + $0xb8] sm:$0xff]
    %v671 = vld [vmem:[#allocation2 + $0xc0] sm:$0xff]
    %v672 = vld [vmem:[#allocation2 + $0xc8] sm:$0xff]
    %v673 = vld [vmem:[#allocation2 + $0xd0] sm:$0xff]
    %v674 = vld [vmem:[#allocation2 + $0xd8] sm:$0xff]
    %v675 = vld [vmem:[#allocation2 + $0xe0] sm:$0xff]
    %v676 = vld [vmem:[#allocation2 + $0xe8] sm:$0xff]
    %v677 = vld [vmem:[#allocation2 + $0xf0] sm:$0xff]
    %v678 = vld [vmem:[#allocation2 + $0xf8] sm:$0xff]
    %v679 = vld [vmem:[%s2] sm:$0x1]
    %v681 = vperm.slane %v679, 0
    %v683 = vadd.f32 %v647, %v681
    %v684 = vadd.f32 %v648, %v681
    %v685 = vadd.f32 %v649, %v681
    %v686 = vadd.f32 %v650, %v681
    %v687 = vadd.f32 %v651, %v681
    %v688 = vadd.f32 %v652, %v681
    %v689 = vadd.f32 %v653, %v681
    %v690 = vadd.f32 %v654, %v681
    %v691 = vadd.f32 %v655, %v681
    %v692 = vadd.f32 %v656, %v681
    %v693 = vadd.f32 %v657, %v681
    %v694 = vadd.f32 %v658, %v681
    %v695 = vadd.f32 %v659, %v681
    %v696 = vadd.f32 %v660, %v681
    %v697 = vadd.f32 %v661, %v681
    %v698 = vadd.f32 %v662, %v681
    %v699 = vadd.f32 %v663, %v681
    %v700 = vadd.f32 %v664, %v681
    %v701 = vadd.f32 %v665, %v681
    %v702 = vadd.f32 %v666, %v681
    %v703 = vadd.f32 %v667, %v681
    %v704 = vadd.f32 %v668, %v681
    %v705 = vadd.f32 %v669, %v681
    %v706 = vadd.f32 %v670, %v681
    %v707 = vadd.f32 %v671, %v681
    %v708 = vadd.f32 %v672, %v681
    %v709 = vadd.f32 %v673, %v681
    %v710 = vadd.f32 %v674, %v681
    %v711 = vadd.f32 %v675, %v681
    %v712 = vadd.f32 %v676, %v681
    %v713 = vadd.f32 %v677, %v681
    %v714 = vadd.f32 %v678, %v681
    %715 = vst [vmem:[%s3] sm:$0xff] %v683
    %716 = vst [vmem:[%s3 + $0x8] sm:$0xff] %v684
    %717 = vst [vmem:[%s3 + $0x10] sm:$0xff] %v685
    %718 = vst [vmem:[%s3 + $0x18] sm:$0xff] %v686
    %719 = vst [vmem:[%s3 + $0x20] sm:$0xff] %v687
    %720 = vst [vmem:[%s3 + $0x28] sm:$0xff] %v688
    %721 = vst [vmem:[%s3 + $0x30] sm:$0xff] %v689
    %722 = vst [vmem:[%s3 + $0x38] sm:$0xff] %v690
    %723 = vst [vmem:[%s3 + $0x40] sm:$0xff] %v691
    %724 = vst [vmem:[%s3 + $0x48] sm:$0xff] %v692
    %725 = vst [vmem:[%s3 + $0x50] sm:$0xff] %v693
    %726 = vst [vmem:[%s3 + $0x58] sm:$0xff] %v694
    %727 = vst [vmem:[%s3 + $0x60] sm:$0xff] %v695
    %728 = vst [vmem:[%s3 + $0x68] sm:$0xff] %v696
    %729 = vst [vmem:[%s3 + $0x70] sm:$0xff] %v697
    %730 = vst [vmem:[%s3 + $0x78] sm:$0xff] %v698
    %731 = vst [vmem:[%s3 + $0x80] sm:$0xff] %v699
    %732 = vst [vmem:[%s3 + $0x88] sm:$0xff] %v700
    %733 = vst [vmem:[%s3 + $0x90] sm:$0xff] %v701
    %734 = vst [vmem:[%s3 + $0x98] sm:$0xff] %v702
    %735 = vst [vmem:[%s3 + $0xa0] sm:$0xff] %v703
    %736 = vst [vmem:[%s3 + $0xa8] sm:$0xff] %v704
    %737 = vst [vmem:[%s3 + $0xb0] sm:$0xff] %v705
    %738 = vst [vmem:[%s3 + $0xb8] sm:$0xff] %v706
    %739 = vst [vmem:[%s3 + $0xc0] sm:$0xff] %v707
    %740 = vst [vmem:[%s3 + $0xc8] sm:$0xff] %v708
    %741 = vst [vmem:[%s3 + $0xd0] sm:$0xff] %v709
    %742 = vst [vmem:[%s3 + $0xd8] sm:$0xff] %v710
    %743 = vst [vmem:[%s3 + $0xe0] sm:$0xff] %v711
    %744 = vst [vmem:[%s3 + $0xe8] sm:$0xff] %v712
    %745 = vst [vmem:[%s3 + $0xf0] sm:$0xff] %v713
    %746 = vst [vmem:[%s3 + $0xf8] sm:$0xff] %v714
  $region21: #{gcn_nc_forward.7} parent=0 // pred_fallthru
    _
  // Predicated region
  $region22: #{gcn_nc_forward.7} parent=0 // pred_check
    _
  $region23: #{gcn_nc_forward.7} parent=0 // pred_check_branch
    %748 = sbr.rel (0) target = $region25
  $region24: #{gcn_nc_forward.7} parent=0 // pred_region
    _
  $region25: #{gcn_nc_forward.7} parent=0 // pred_fallthru
    _
  // Predicated region
  $region26: #{gcn_nc_forward.7} parent=0 // pred_check
    _
  $region27: #{gcn_nc_forward.7} parent=0 // pred_check_branch
    %750 = sbr.rel (0) target = $region29
  $region28: #{gcn_nc_forward.7} parent=0 // pred_region
    _
  $region29: #{gcn_nc_forward.7} parent=0 // pred_fallthru
    _

// kernel: gcn_nc_forward.5
$region0: #{gcn_nc_forward.5}
  #allocation0 [shape = 'u32[]', space=smem, size = 0x4, offset = 0x4, fixed_abs, tag = 'smem constant byte address 0x4 - core index']
  #allocation1 [shape = 'u32[72,128]{1,0:T(1,128)}', space=vmem, size = 0x9000, scoped, tag = 'internal scratch']
  #allocation2 [shape = 'f32[256,128]{1,0:T(8,128)}', space=vmem, size = 0x20000, scoped, tag = 'scratch operand']
  %s0 = inlined_call_operand.vmem [shape: bf16[256,256], index: 0, kind: input, shape index: {}]
  %s1 = inlined_call_operand.vmem [shape: bf16[256,128], index: 1, kind: input, shape index: {}]
  %s2 = inlined_call_operand.vmem [shape: f32[1,128], index: 2, kind: input, shape index: {}]
  %s3 = inlined_call_operand.vmem [shape: bf16[128,128], index: 3, kind: input, shape index: {}]
  %s4 = inlined_call_operand.hbm [shape: f32[256,128], index: 4, kind: output, shape index: {0}]
  %s5 = inlined_call_operand.vmem [shape: bf16[256,128], index: 5, kind: output, shape index: {1}]
  %6 = xla_tuple %s4, %s5
  %s7 = sld [smem:[#allocation0]]
  $region42: #{gcn_nc_forward.5} parent=0
    _
  %s9 = ssub.s32 1, %s7
  %s10 = scalar_select 0, %s9, %s7
  $region1: #{gcn_nc_forward.5} parent=0
    #allocation3 [shape = 'u8[131072]{0}', space=vmem, size = 0x20000, scoped, tag = 'output window, operand 0, single buffered']
    #allocation4 [shape = 's32[1]{0}', space=sflag, size = 0x4, scoped, tag = 'scoped memory for gcn_nc_forward.5']
    %11 = vsyncpa [#allocation4], 0
    // Predicated region
    $region2: #{gcn_nc_forward.5} parent=1 // pred_check
      _
    $region3: #{gcn_nc_forward.5} parent=1 // pred_check_branch
      %13 = sbr.rel (0) target = $region5
    $region4: #{gcn_nc_forward.5} parent=1 // pred_region
      _
    $region5: #{gcn_nc_forward.5} parent=1 // pred_fallthru
      _
    // Predicated region
    $region6: #{gcn_nc_forward.5} parent=1 // pred_check
      _
    $region7: #{gcn_nc_forward.5} parent=1 // pred_check_branch
      %15 = sbr.rel (0) target = $region9
    $region8: #{gcn_nc_forward.5} parent=1 // pred_region
      _
    $region9: #{gcn_nc_forward.5} parent=1 // pred_fallthru
      _
    // Predicated region
    $region10: #{gcn_nc_forward.5} parent=1 // pred_check
      _
    $region11: #{gcn_nc_forward.5} parent=1 // pred_check_branch
      %17 = sbr.rel (0) target = $region13
    $region12: #{gcn_nc_forward.5} parent=1 // pred_region
      _
    $region13: #{gcn_nc_forward.5} parent=1 // pred_fallthru
      _
    // Predicated region
    $region14: #{gcn_nc_forward.5} parent=1 // pred_check
      _
    $region15: #{gcn_nc_forward.5} parent=1 // pred_check_branch
      %19 = sbr.rel (0) target = $region17
    $region16: #{gcn_nc_forward.5} parent=1 // pred_region
      _
    $region17: #{gcn_nc_forward.5} parent=1 // pred_fallthru
      _
    %p20 = scmp.eq.s32.totalorder 0, 0
    // Predicated region
    $region18: #{gcn_nc_forward.5} parent=1 // pred_check
      %p21 = pneg %p20
    $region19: #{gcn_nc_forward.5} parent=1 // pred_check_branch
      %23 = sbr.rel (%p21) target = $region21
    $region20: #{gcn_nc_forward.5} parent=1 // pred_region
      %24 = vst [vmem:[#allocation2] sm:$0xff] 0.0
      %25 = vst [vmem:[#allocation2 + $0x8] sm:$0xff] 0.0
      %26 = vst [vmem:[#allocation2 + $0x10] sm:$0xff] 0.0
      %27 = vst [vmem:[#allocation2 + $0x18] sm:$0xff] 0.0
      %28 = vst [vmem:[#allocation2 + $0x20] sm:$0xff] 0.0
      %29 = vst [vmem:[#allocation2 + $0x28] sm:$0xff] 0.0
      %30 = vst [vmem:[#allocation2 + $0x30] sm:$0xff] 0.0
      %31 = vst [vmem:[#allocation2 + $0x38] sm:$0xff] 0.0
      %32 = vst [vmem:[#allocation2 + $0x40] sm:$0xff] 0.0
      %33 = vst [vmem:[#allocation2 + $0x48] sm:$0xff] 0.0
      %34 = vst [vmem:[#allocation2 + $0x50] sm:$0xff] 0.0
      %35 = vst [vmem:[#allocation2 + $0x58] sm:$0xff] 0.0
      %36 = vst [vmem:[#allocation2 + $0x60] sm:$0xff] 0.0
      %37 = vst [vmem:[#allocation2 + $0x68] sm:$0xff] 0.0
      %38 = vst [vmem:[#allocation2 + $0x70] sm:$0xff] 0.0
      %39 = vst [vmem:[#allocation2 + $0x78] sm:$0xff] 0.0
      %40 = vst [vmem:[#allocation2 + $0x80] sm:$0xff] 0.0
      %41 = vst [vmem:[#allocation2 + $0x88] sm:$0xff] 0.0
      %42 = vst [vmem:[#allocation2 + $0x90] sm:$0xff] 0.0
      %43 = vst [vmem:[#allocation2 + $0x98] sm:$0xff] 0.0
      %44 = vst [vmem:[#allocation2 + $0xa0] sm:$0xff] 0.0
      %45 = vst [vmem:[#allocation2 + $0xa8] sm:$0xff] 0.0
      %46 = vst [vmem:[#allocation2 + $0xb0] sm:$0xff] 0.0
      %47 = vst [vmem:[#allocation2 + $0xb8] sm:$0xff] 0.0
      %48 = vst [vmem:[#allocation2 + $0xc0] sm:$0xff] 0.0
      %49 = vst [vmem:[#allocation2 + $0xc8] sm:$0xff] 0.0
      %50 = vst [vmem:[#allocation2 + $0xd0] sm:$0xff] 0.0
      %51 = vst [vmem:[#allocation2 + $0xd8] sm:$0xff] 0.0
      %52 = vst [vmem:[#allocation2 + $0xe0] sm:$0xff] 0.0
      %53 = vst [vmem:[#allocation2 + $0xe8] sm:$0xff] 0.0
      %54 = vst [vmem:[#allocation2 + $0xf0] sm:$0xff] 0.0
      %55 = vst [vmem:[#allocation2 + $0xf8] sm:$0xff] 0.0
    $region21: #{gcn_nc_forward.5} parent=1 // pred_fallthru
      _
    %v56 = vld [vmem:[#allocation2] sm:$0xff]
    %v57 = vld [vmem:[#allocation2 + $0x8] sm:$0xff]
    %v58 = vld [vmem:[#allocation2 + $0x10] sm:$0xff]
    %v59 = vld [vmem:[#allocation2 + $0x18] sm:$0xff]
    %v60 = vld [vmem:[#allocation2 + $0x20] sm:$0xff]
    %v61 = vld [vmem:[#allocation2 + $0x28] sm:$0xff]
    %v62 = vld [vmem:[#allocation2 + $0x30] sm:$0xff]
    %v63 = vld [vmem:[#allocation2 + $0x38] sm:$0xff]
    %v64 = vld [vmem:[#allocation2 + $0x40] sm:$0xff]
    %v65 = vld [vmem:[#allocation2 + $0x48] sm:$0xff]
    %v66 = vld [vmem:[#allocation2 + $0x50] sm:$0xff]
    %v67 = vld [vmem:[#allocation2 + $0x58] sm:$0xff]
    %v68 = vld [vmem:[#allocation2 + $0x60] sm:$0xff]
    %v69 = vld [vmem:[#allocation2 + $0x68] sm:$0xff]
    %v70 = vld [vmem:[#allocation2 + $0x70] sm:$0xff]
    %v71 = vld [vmem:[#allocation2 + $0x78] sm:$0xff]
    %v72 = vld [vmem:[#allocation2 + $0x80] sm:$0xff]
    %v73 = vld [vmem:[#allocation2 + $0x88] sm:$0xff]
    %v74 = vld [vmem:[#allocation2 + $0x90] sm:$0xff]
    %v75 = vld [vmem:[#allocation2 + $0x98] sm:$0xff]
    %v76 = vld [vmem:[#allocation2 + $0xa0] sm:$0xff]
    %v77 = vld [vmem:[#allocation2 + $0xa8] sm:$0xff]
    %v78 = vld [vmem:[#allocation2 + $0xb0] sm:$0xff]
    %v79 = vld [vmem:[#allocation2 + $0xb8] sm:$0xff]
    %v80 = vld [vmem:[#allocation2 + $0xc0] sm:$0xff]
    %v81 = vld [vmem:[#allocation2 + $0xc8] sm:$0xff]
    %v82 = vld [vmem:[#allocation2 + $0xd0] sm:$0xff]
    %v83 = vld [vmem:[#allocation2 + $0xd8] sm:$0xff]
    %v84 = vld [vmem:[#allocation2 + $0xe0] sm:$0xff]
    %v85 = vld [vmem:[#allocation2 + $0xe8] sm:$0xff]
    %v86 = vld [vmem:[#allocation2 + $0xf0] sm:$0xff]
    %v87 = vld [vmem:[#allocation2 + $0xf8] sm:$0xff]
    %v88 = vld [vmem:[%s0] sm:$0xff]
    %v89 = vld [vmem:[%s0 + $0x8] sm:$0xff]
    %v90 = vld [vmem:[%s0 + $0x10] sm:$0xff]
    %v91 = vld [vmem:[%s0 + $0x18] sm:$0xff]
    %v92 = vld [vmem:[%s0 + $0x20] sm:$0xff]
    %v93 = vld [vmem:[%s0 + $0x28] sm:$0xff]
    %v94 = vld [vmem:[%s0 + $0x30] sm:$0xff]
    %v95 = vld [vmem:[%s0 + $0x38] sm:$0xff]
    %v96 = vld [vmem:[%s0 + $0x40] sm:$0xff]
    %v97 = vld [vmem:[%s0 + $0x48] sm:$0xff]
    %v98 = vld [vmem:[%s0 + $0x50] sm:$0xff]
    %v99 = vld [vmem:[%s0 + $0x58] sm:$0xff]
    %v100 = vld [vmem:[%s0 + $0x60] sm:$0xff]
    %v101 = vld [vmem:[%s0 + $0x68] sm:$0xff]
    %v102 = vld [vmem:[%s0 + $0x70] sm:$0xff]
    %v103 = vld [vmem:[%s0 + $0x78] sm:$0xff]
    %v104 = vld [vmem:[%s0 + $0x80] sm:$0xff]
    %v105 = vld [vmem:[%s0 + $0x88] sm:$0xff]
    %v106 = vld [vmem:[%s0 + $0x90] sm:$0xff]
    %v107 = vld [vmem:[%s0 + $0x98] sm:$0xff]
    %v108 = vld [vmem:[%s0 + $0xa0] sm:$0xff]
    %v109 = vld [vmem:[%s0 + $0xa8] sm:$0xff]
    %v110 = vld [vmem:[%s0 + $0xb0] sm:$0xff]
    %v111 = vld [vmem:[%s0 + $0xb8] sm:$0xff]
    %v112 = vld [vmem:[%s0 + $0xc0] sm:$0xff]
    %v113 = vld [vmem:[%s0 + $0xc8] sm:$0xff]
    %v114 = vld [vmem:[%s0 + $0xd0] sm:$0xff]
    %v115 = vld [vmem:[%s0 + $0xd8] sm:$0xff]
    %v116 = vld [vmem:[%s0 + $0xe0] sm:$0xff]
    %v117 = vld [vmem:[%s0 + $0xe8] sm:$0xff]
    %v118 = vld [vmem:[%s0 + $0xf0] sm:$0xff]
    %v119 = vld [vmem:[%s0 + $0xf8] sm:$0xff]
    %v120 = vld [vmem:[%s1] sm:$0xf]
    %v121 = vld [vmem:[%s1 + $0x4] sm:$0xf]
    %v122 = vld [vmem:[%s1 + $0x8] sm:$0xf]
    %v123 = vld [vmem:[%s1 + $0xc] sm:$0xf]
    %v124 = vld [vmem:[%s1 + $0x10] sm:$0xf]
    %v125 = vld [vmem:[%s1 + $0x14] sm:$0xf]
    %v126 = vld [vmem:[%s1 + $0x18] sm:$0xf]
    %v127 = vld [vmem:[%s1 + $0x1c] sm:$0xf]
    %v128 = vld [vmem:[%s1 + $0x20] sm:$0xf]
    %v129 = vld [vmem:[%s1 + $0x24] sm:$0xf]
    %v130 = vld [vmem:[%s1 + $0x28] sm:$0xf]
    %v131 = vld [vmem:[%s1 + $0x2c] sm:$0xf]
    %v132 = vld [vmem:[%s1 + $0x30] sm:$0xf]
    %v133 = vld [vmem:[%s1 + $0x34] sm:$0xf]
    %v134 = vld [vmem:[%s1 + $0x38] sm:$0xf]
    %v135 = vld [vmem:[%s1 + $0x3c] sm:$0xf]
    %v136 = vld [vmem:[%s1 + $0x40] sm:$0xf]
    %v137 = vld [vmem:[%s1 + $0x44] sm:$0xf]
    %v138 = vld [vmem:[%s1 + $0x48] sm:$0xf]
    %v139 = vld [vmem:[%s1 + $0x4c] sm:$0xf]
    %v140 = vld [vmem:[%s1 + $0x50] sm:$0xf]
    %v141 = vld [vmem:[%s1 + $0x54] sm:$0xf]
    %v142 = vld [vmem:[%s1 + $0x58] sm:$0xf]
    %v143 = vld [vmem:[%s1 + $0x5c] sm:$0xf]
    %v144 = vld [vmem:[%s1 + $0x60] sm:$0xf]
    %v145 = vld [vmem:[%s1 + $0x64] sm:$0xf]
    %v146 = vld [vmem:[%s1 + $0x68] sm:$0xf]
    %v147 = vld [vmem:[%s1 + $0x6c] sm:$0xf]
    %v148 = vld [vmem:[%s1 + $0x70] sm:$0xf]
    %v149 = vld [vmem:[%s1 + $0x74] sm:$0xf]
    %v150 = vld [vmem:[%s1 + $0x78] sm:$0xf]
    %v151 = vld [vmem:[%s1 + $0x7c] sm:$0xf]
    %v184 = vunpack.c.l.b16 %v88
    %v185 = vunpack.c.h.b16 %v88
    %v186 = vunpack.c.l.b16 %v89
    %v187 = vunpack.c.h.b16 %v89
    %v188 = vunpack.c.l.b16 %v90
    %v189 = vunpack.c.h.b16 %v90
    %v190 = vunpack.c.l.b16 %v91
    %v191 = vunpack.c.h.b16 %v91
    %v192 = vunpack.c.l.b16 %v92
    %v193 = vunpack.c.h.b16 %v92
    %v194 = vunpack.c.l.b16 %v93
    %v195 = vunpack.c.h.b16 %v93
    %v196 = vunpack.c.l.b16 %v94
    %v197 = vunpack.c.h.b16 %v94
    %v198 = vunpack.c.l.b16 %v95
    %v199 = vunpack.c.h.b16 %v95
    %v200 = vunpack.c.l.b16 %v96
    %v201 = vunpack.c.h.b16 %v96
    %v202 = vunpack.c.l.b16 %v97
    %v203 = vunpack.c.h.b16 %v97
    %v204 = vunpack.c.l.b16 %v98
    %v205 = vunpack.c.h.b16 %v98
    %v206 = vunpack.c.l.b16 %v99
    %v207 = vunpack.c.h.b16 %v99
    %v208 = vunpack.c.l.b16 %v100
    %v209 = vunpack.c.h.b16 %v100
    %v210 = vunpack.c.l.b16 %v101
    %v211 = vunpack.c.h.b16 %v101
    %v212 = vunpack.c.l.b16 %v102
    %v213 = vunpack.c.h.b16 %v102
    %v214 = vunpack.c.l.b16 %v103
    %v215 = vunpack.c.h.b16 %v103
    %v216 = vunpack.c.l.b16 %v104
    %v217 = vunpack.c.h.b16 %v104
    %v218 = vunpack.c.l.b16 %v105
    %v219 = vunpack.c.h.b16 %v105
    %v220 = vunpack.c.l.b16 %v106
    %v221 = vunpack.c.h.b16 %v106
    %v222 = vunpack.c.l.b16 %v107
    %v223 = vunpack.c.h.b16 %v107
    %v224 = vunpack.c.l.b16 %v108
    %v225 = vunpack.c.h.b16 %v108
    %v226 = vunpack.c.l.b16 %v109
    %v227 = vunpack.c.h.b16 %v109
    %v228 = vunpack.c.l.b16 %v110
    %v229 = vunpack.c.h.b16 %v110
    %v230 = vunpack.c.l.b16 %v111
    %v231 = vunpack.c.h.b16 %v111
    %v232 = vunpack.c.l.b16 %v112
    %v233 = vunpack.c.h.b16 %v112
    %v234 = vunpack.c.l.b16 %v113
    %v235 = vunpack.c.h.b16 %v113
    %v236 = vunpack.c.l.b16 %v114
    %v237 = vunpack.c.h.b16 %v114
    %v238 = vunpack.c.l.b16 %v115
    %v239 = vunpack.c.h.b16 %v115
    %v240 = vunpack.c.l.b16 %v116
    %v241 = vunpack.c.h.b16 %v116
    %v242 = vunpack.c.l.b16 %v117
    %v243 = vunpack.c.h.b16 %v117
    %v244 = vunpack.c.l.b16 %v118
    %v245 = vunpack.c.h.b16 %v118
    %v246 = vunpack.c.l.b16 %v119
    %v247 = vunpack.c.h.b16 %v119
    %v248 = vpack.c.b16 %v186, %v184
    %v249 = vpack.c.b16 %v187, %v185
    %v250 = vpack.c.b16 %v190, %v188
    %v251 = vpack.c.b16 %v191, %v189
    %v252 = vpack.c.b16 %v194, %v192
    %v253 = vpack.c.b16 %v195, %v193
    %v254 = vpack.c.b16 %v198, %v196
    %v255 = vpack.c.b16 %v199, %v197
    %v256 = vpack.c.b16 %v202, %v200
    %v257 = vpack.c.b16 %v203, %v201
    %v258 = vpack.c.b16 %v206, %v204
    %v259 = vpack.c.b16 %v207, %v205
    %v260 = vpack.c.b16 %v210, %v208
    %v261 = vpack.c.b16 %v211, %v209
    %v262 = vpack.c.b16 %v214, %v212
    %v263 = vpack.c.b16 %v215, %v213
    %v264 = vpack.c.b16 %v218, %v216
    %v265 = vpack.c.b16 %v219, %v217
    %v266 = vpack.c.b16 %v222, %v220
    %v267 = vpack.c.b16 %v223, %v221
    %v268 = vpack.c.b16 %v226, %v224
    %v269 = vpack.c.b16 %v227, %v225
    %v270 = vpack.c.b16 %v230, %v228
    %v271 = vpack.c.b16 %v231, %v229
    %v272 = vpack.c.b16 %v234, %v232
    %v273 = vpack.c.b16 %v235, %v233
    %v274 = vpack.c.b16 %v238, %v236
    %v275 = vpack.c.b16 %v239, %v237
    %v276 = vpack.c.b16 %v242, %v240
    %v277 = vpack.c.b16 %v243, %v241
    %v278 = vpack.c.b16 %v246, %v244
    %v279 = vpack.c.b16 %v247, %v245
    %v344 = vunpack.c.l.b16 %v120
    %v345 = vunpack.c.l.b16 %v121
    %v346 = vunpack.c.l.b16 %v122
    %v347 = vunpack.c.l.b16 %v123
    %v348 = vunpack.c.l.b16 %v124
    %v349 = vunpack.c.l.b16 %v125
    %v350 = vunpack.c.l.b16 %v126
    %v351 = vunpack.c.l.b16 %v127
    %v352 = vunpack.c.l.b16 %v128
    %v353 = vunpack.c.l.b16 %v129
    %v354 = vunpack.c.l.b16 %v130
    %v355 = vunpack.c.l.b16 %v131
    %v356 = vunpack.c.l.b16 %v132
    %v357 = vunpack.c.l.b16 %v133
    %v358 = vunpack.c.l.b16 %v134
    %v359 = vunpack.c.l.b16 %v135
    %v360 = vunpack.c.l.b16 %v136
    %v361 = vunpack.c.l.b16 %v137
    %v362 = vunpack.c.l.b16 %v138
    %v363 = vunpack.c.l.b16 %v139
    %v364 = vunpack.c.l.b16 %v140
    %v365 = vunpack.c.l.b16 %v141
    %v366 = vunpack.c.l.b16 %v142
    %v367 = vunpack.c.l.b16 %v143
    %v368 = vunpack.c.l.b16 %v144
    %v369 = vunpack.c.l.b16 %v145
    %v370 = vunpack.c.l.b16 %v146
    %v371 = vunpack.c.l.b16 %v147
    %v372 = vunpack.c.l.b16 %v148
    %v373 = vunpack.c.l.b16 %v149
    %v374 = vunpack.c.l.b16 %v150
    %v375 = vunpack.c.l.b16 %v151
    %v376 = vpack.c.b16 %v345, %v344
    %v377 = vpack.c.b16 %v347, %v346
    %v378 = vpack.c.b16 %v349, %v348
    %v379 = vpack.c.b16 %v351, %v350
    %v380 = vpack.c.b16 %v353, %v352
    %v381 = vpack.c.b16 %v355, %v354
    %v382 = vpack.c.b16 %v357, %v356
    %v383 = vpack.c.b16 %v359, %v358
    %v384 = vpack.c.b16 %v361, %v360
    %v385 = vpack.c.b16 %v363, %v362
    %v386 = vpack.c.b16 %v365, %v364
    %v387 = vpack.c.b16 %v367, %v366
    %v388 = vpack.c.b16 %v369, %v368
    %v389 = vpack.c.b16 %v371, %v370
    %v390 = vpack.c.b16 %v373, %v372
    %v391 = vpack.c.b16 %v375, %v374
    %408 = vmatpush.bf16.msra.mxu0 %v383
    %409 = vmatpush.bf16.msra.mxu0 %v382
    %410 = vmatpush.bf16.msra.mxu0 %v381
    %411 = vmatpush.bf16.msra.mxu0 %v380
    %412 = vmatpush.bf16.msra.mxu0 %v379
    %413 = vmatpush.bf16.msra.mxu0 %v378
    %414 = vmatpush.bf16.msra.mxu0 %v377
    %415 = vmatpush.bf16.msra.mxu0 %v376
    %416 = vmatmul.bf16.gmra.mxu0 %v248
    %v417 = vpop.f32.mrf.mxu0
    %v418 = vadd.f32 0.0, %v417
    %v419 = vpop.f32.mrf.mxu0
    %v420 = vadd.f32 0.0, %v419
    %421 = vmatmul.bf16.gmra.mxu0 %v250
    %v422 = vpop.f32.mrf.mxu0
    %v423 = vadd.f32 0.0, %v422
    %v424 = vpop.f32.mrf.mxu0
    %v425 = vadd.f32 0.0, %v424
    %426 = vmatmul.bf16.gmra.mxu0 %v252
    %v427 = vpop.f32.mrf.mxu0
    %v428 = vadd.f32 0.0, %v427
    %v429 = vpop.f32.mrf.mxu0
    %v430 = vadd.f32 0.0, %v429
    %431 = vmatmul.bf16.gmra.mxu0 %v254
    %v432 = vpop.f32.mrf.mxu0
    %v433 = vadd.f32 0.0, %v432
    %v434 = vpop.f32.mrf.mxu0
    %v435 = vadd.f32 0.0, %v434
    %436 = vmatmul.bf16.gmra.mxu0 %v256
    %v437 = vpop.f32.mrf.mxu0
    %v438 = vadd.f32 0.0, %v437
    %v439 = vpop.f32.mrf.mxu0
    %v440 = vadd.f32 0.0, %v439
    %441 = vmatmul.bf16.gmra.mxu0 %v258
    %v442 = vpop.f32.mrf.mxu0
    %v443 = vadd.f32 0.0, %v442
    %v444 = vpop.f32.mrf.mxu0
    %v445 = vadd.f32 0.0, %v444
    %446 = vmatmul.bf16.gmra.mxu0 %v260
    %v447 = vpop.f32.mrf.mxu0
    %v448 = vadd.f32 0.0, %v447
    %v449 = vpop.f32.mrf.mxu0
    %v450 = vadd.f32 0.0, %v449
    %451 = vmatmul.bf16.gmra.mxu0 %v262
    %v452 = vpop.f32.mrf.mxu0
    %v453 = vadd.f32 0.0, %v452
    %v454 = vpop.f32.mrf.mxu0
    %v455 = vadd.f32 0.0, %v454
    %456 = vmatmul.bf16.gmra.mxu0 %v264
    %v457 = vpop.f32.mrf.mxu0
    %v458 = vadd.f32 0.0, %v457
    %v459 = vpop.f32.mrf.mxu0
    %v460 = vadd.f32 0.0, %v459
    %461 = vmatmul.bf16.gmra.mxu0 %v266
    %v462 = vpop.f32.mrf.mxu0
    %v463 = vadd.f32 0.0, %v462
    %v464 = vpop.f32.mrf.mxu0
    %v465 = vadd.f32 0.0, %v464
    %466 = vmatmul.bf16.gmra.mxu0 %v268
    %v467 = vpop.f32.mrf.mxu0
    %v468 = vadd.f32 0.0, %v467
    %v469 = vpop.f32.mrf.mxu0
    %v470 = vadd.f32 0.0, %v469
    %471 = vmatmul.bf16.gmra.mxu0 %v270
    %v472 = vpop.f32.mrf.mxu0
    %v473 = vadd.f32 0.0, %v472
    %v474 = vpop.f32.mrf.mxu0
    %v475 = vadd.f32 0.0, %v474
    %476 = vmatmul.bf16.gmra.mxu0 %v272
    %v477 = vpop.f32.mrf.mxu0
    %v478 = vadd.f32 0.0, %v477
    %v479 = vpop.f32.mrf.mxu0
    %v480 = vadd.f32 0.0, %v479
    %481 = vmatmul.bf16.gmra.mxu0 %v274
    %v482 = vpop.f32.mrf.mxu0
    %v483 = vadd.f32 0.0, %v482
    %v484 = vpop.f32.mrf.mxu0
    %v485 = vadd.f32 0.0, %v484
    %486 = vmatmul.bf16.gmra.mxu0 %v276
    %v487 = vpop.f32.mrf.mxu0
    %v488 = vadd.f32 0.0, %v487
    %v489 = vpop.f32.mrf.mxu0
    %v490 = vadd.f32 0.0, %v489
    %491 = vmatmul.bf16.gmra.mxu0 %v278
    %v492 = vpop.f32.mrf.mxu0
    %v493 = vadd.f32 0.0, %v492
    %v494 = vpop.f32.mrf.mxu0
    %v495 = vadd.f32 0.0, %v494
    %496 = vdwg.mxu0
    %497 = vmatpush.bf16.msra.mxu0 %v391
    %498 = vmatpush.bf16.msra.mxu0 %v390
    %499 = vmatpush.bf16.msra.mxu0 %v389
    %500 = vmatpush.bf16.msra.mxu0 %v388
    %501 = vmatpush.bf16.msra.mxu0 %v387
    %502 = vmatpush.bf16.msra.mxu0 %v386
    %503 = vmatpush.bf16.msra.mxu0 %v385
    %504 = vmatpush.bf16.msra.mxu0 %v384
    %505 = vmatmul.bf16.gmra.mxu0 %v249
    %v506 = vpop.f32.mrf.mxu0
    %v507 = vadd.f32 %v418, %v506
    %v508 = vpop.f32.mrf.mxu0
    %v509 = vadd.f32 %v420, %v508
    %510 = vmatmul.bf16.gmra.mxu0 %v251
    %v511 = vpop.f32.mrf.mxu0
    %v512 = vadd.f32 %v423, %v511
    %v513 = vpop.f32.mrf.mxu0
    %v514 = vadd.f32 %v425, %v513
    %515 = vmatmul.bf16.gmra.mxu0 %v253
    %v516 = vpop.f32.mrf.mxu0
    %v517 = vadd.f32 %v428, %v516
    %v518 = vpop.f32.mrf.mxu0
    %v519 = vadd.f32 %v430, %v518
    %520 = vmatmul.bf16.gmra.mxu0 %v255
    %v521 = vpop.f32.mrf.mxu0
    %v522 = vadd.f32 %v433, %v521
    %v523 = vpop.f32.mrf.mxu0
    %v524 = vadd.f32 %v435, %v523
    %525 = vmatmul.bf16.gmra.mxu0 %v257
    %v526 = vpop.f32.mrf.mxu0
    %v527 = vadd.f32 %v438, %v526
    %v528 = vpop.f32.mrf.mxu0
    %v529 = vadd.f32 %v440, %v528
    %530 = vmatmul.bf16.gmra.mxu0 %v259
    %v531 = vpop.f32.mrf.mxu0
    %v532 = vadd.f32 %v443, %v531
    %v533 = vpop.f32.mrf.mxu0
    %v534 = vadd.f32 %v445, %v533
    %535 = vmatmul.bf16.gmra.mxu0 %v261
    %v536 = vpop.f32.mrf.mxu0
    %v537 = vadd.f32 %v448, %v536
    %v538 = vpop.f32.mrf.mxu0
    %v539 = vadd.f32 %v450, %v538
    %540 = vmatmul.bf16.gmra.mxu0 %v263
    %v541 = vpop.f32.mrf.mxu0
    %v542 = vadd.f32 %v453, %v541
    %v543 = vpop.f32.mrf.mxu0
    %v544 = vadd.f32 %v455, %v543
    %545 = vmatmul.bf16.gmra.mxu0 %v265
    %v546 = vpop.f32.mrf.mxu0
    %v547 = vadd.f32 %v458, %v546
    %v548 = vpop.f32.mrf.mxu0
    %v549 = vadd.f32 %v460, %v548
    %550 = vmatmul.bf16.gmra.mxu0 %v267
    %v551 = vpop.f32.mrf.mxu0
    %v552 = vadd.f32 %v463, %v551
    %v553 = vpop.f32.mrf.mxu0
    %v554 = vadd.f32 %v465, %v553
    %555 = vmatmul.bf16.gmra.mxu0 %v269
    %v556 = vpop.f32.mrf.mxu0
    %v557 = vadd.f32 %v468, %v556
    %v558 = vpop.f32.mrf.mxu0
    %v559 = vadd.f32 %v470, %v558
    %560 = vmatmul.bf16.gmra.mxu0 %v271
    %v561 = vpop.f32.mrf.mxu0
    %v562 = vadd.f32 %v473, %v561
    %v563 = vpop.f32.mrf.mxu0
    %v564 = vadd.f32 %v475, %v563
    %565 = vmatmul.bf16.gmra.mxu0 %v273
    %v566 = vpop.f32.mrf.mxu0
    %v567 = vadd.f32 %v478, %v566
    %v568 = vpop.f32.mrf.mxu0
    %v569 = vadd.f32 %v480, %v568
    %570 = vmatmul.bf16.gmra.mxu0 %v275
    %v571 = vpop.f32.mrf.mxu0
    %v572 = vadd.f32 %v483, %v571
    %v573 = vpop.f32.mrf.mxu0
    %v574 = vadd.f32 %v485, %v573
    %575 = vmatmul.bf16.gmra.mxu0 %v277
    %v576 = vpop.f32.mrf.mxu0
    %v577 = vadd.f32 %v488, %v576
    %v578 = vpop.f32.mrf.mxu0
    %v579 = vadd.f32 %v490, %v578
    %580 = vmatmul.bf16.gmra.mxu0 %v279
    %v581 = vpop.f32.mrf.mxu0
    %v582 = vadd.f32 %v493, %v581
    %v583 = vpop.f32.mrf.mxu0
    %v584 = vadd.f32 %v495, %v583
    %585 = vdwg.mxu0
    %v586 = vadd.f32 %v56, %v507
    %v587 = vadd.f32 %v57, %v509
    %v588 = vadd.f32 %v58, %v512
    %v589 = vadd.f32 %v59, %v514
    %v590 = vadd.f32 %v60, %v517
    %v591 = vadd.f32 %v61, %v519
    %v592 = vadd.f32 %v62, %v522
    %v593 = vadd.f32 %v63, %v524
    %v594 = vadd.f32 %v64, %v527
    %v595 = vadd.f32 %v65, %v529
    %v596 = vadd.f32 %v66, %v532
    %v597 = vadd.f32 %v67, %v534
    %v598 = vadd.f32 %v68, %v537
    %v599 = vadd.f32 %v69, %v539
    %v600 = vadd.f32 %v70, %v542
    %v601 = vadd.f32 %v71, %v544
    %v602 = vadd.f32 %v72, %v547
    %v603 = vadd.f32 %v73, %v549
    %v604 = vadd.f32 %v74, %v552
    %v605 = vadd.f32 %v75, %v554
    %v606 = vadd.f32 %v76, %v557
    %v607 = vadd.f32 %v77, %v559
    %v608 = vadd.f32 %v78, %v562
    %v609 = vadd.f32 %v79, %v564
    %v610 = vadd.f32 %v80, %v567
    %v611 = vadd.f32 %v81, %v569
    %v612 = vadd.f32 %v82, %v572
    %v613 = vadd.f32 %v83, %v574
    %v614 = vadd.f32 %v84, %v577
    %v615 = vadd.f32 %v85, %v579
    %v616 = vadd.f32 %v86, %v582
    %v617 = vadd.f32 %v87, %v584
    %618 = vst [vmem:[#allocation2] sm:$0xff] %v586
    %619 = vst [vmem:[#allocation2 + $0x8] sm:$0xff] %v587
    %620 = vst [vmem:[#allocation2 + $0x10] sm:$0xff] %v588
    %621 = vst [vmem:[#allocation2 + $0x18] sm:$0xff] %v589
    %622 = vst [vmem:[#allocation2 + $0x20] sm:$0xff] %v590
    %623 = vst [vmem:[#allocation2 + $0x28] sm:$0xff] %v591
    %624 = vst [vmem:[#allocation2 + $0x30] sm:$0xff] %v592
    %625 = vst [vmem:[#allocation2 + $0x38] sm:$0xff] %v593
    %626 = vst [vmem:[#allocation2 + $0x40] sm:$0xff] %v594
    %627 = vst [vmem:[#allocation2 + $0x48] sm:$0xff] %v595
    %628 = vst [vmem:[#allocation2 + $0x50] sm:$0xff] %v596
    %629 = vst [vmem:[#allocation2 + $0x58] sm:$0xff] %v597
    %630 = vst [vmem:[#allocation2 + $0x60] sm:$0xff] %v598
    %631 = vst [vmem:[#allocation2 + $0x68] sm:$0xff] %v599
    %632 = vst [vmem:[#allocation2 + $0x70] sm:$0xff] %v600
    %633 = vst [vmem:[#allocation2 + $0x78] sm:$0xff] %v601
    %634 = vst [vmem:[#allocation2 + $0x80] sm:$0xff] %v602
    %635 = vst [vmem:[#allocation2 + $0x88] sm:$0xff] %v603
    %636 = vst [vmem:[#allocation2 + $0x90] sm:$0xff] %v604
    %637 = vst [vmem:[#allocation2 + $0x98] sm:$0xff] %v605
    %638 = vst [vmem:[#allocation2 + $0xa0] sm:$0xff] %v606
    %639 = vst [vmem:[#allocation2 + $0xa8] sm:$0xff] %v607
    %640 = vst [vmem:[#allocation2 + $0xb0] sm:$0xff] %v608
    %641 = vst [vmem:[#allocation2 + $0xb8] sm:$0xff] %v609
    %642 = vst [vmem:[#allocation2 + $0xc0] sm:$0xff] %v610
    %643 = vst [vmem:[#allocation2 + $0xc8] sm:$0xff] %v611
    %644 = vst [vmem:[#allocation2 + $0xd0] sm:$0xff] %v612
    %645 = vst [vmem:[#allocation2 + $0xd8] sm:$0xff] %v613
    %646 = vst [vmem:[#allocation2 + $0xe0] sm:$0xff] %v614
    %647 = vst [vmem:[#allocation2 + $0xe8] sm:$0xff] %v615
    %648 = vst [vmem:[#allocation2 + $0xf0] sm:$0xff] %v616
    %649 = vst [vmem:[#allocation2 + $0xf8] sm:$0xff] %v617
    // Predicated region
    $region22: #{gcn_nc_forward.5} parent=1 // pred_check
      %p650 = pneg %p20
    $region23: #{gcn_nc_forward.5} parent=1 // pred_check_branch
      %652 = sbr.rel (%p650) target = $region25
    $region24: #{gcn_nc_forward.5} parent=1 // pred_region
      %v653 = vld [vmem:[#allocation2] sm:$0xff]
      %v654 = vld [vmem:[#allocation2 + $0x8] sm:$0xff]
      %v655 = vld [vmem:[#allocation2 + $0x10] sm:$0xff]
      %v656 = vld [vmem:[#allocation2 + $0x18] sm:$0xff]
      %v657 = vld [vmem:[#allocation2 + $0x20] sm:$0xff]
      %v658 = vld [vmem:[#allocation2 + $0x28] sm:$0xff]
      %v659 = vld [vmem:[#allocation2 + $0x30] sm:$0xff]
      %v660 = vld [vmem:[#allocation2 + $0x38] sm:$0xff]
      %v661 = vld [vmem:[#allocation2 + $0x40] sm:$0xff]
      %v662 = vld [vmem:[#allocation2 + $0x48] sm:$0xff]
      %v663 = vld [vmem:[#allocation2 + $0x50] sm:$0xff]
      %v664 = vld [vmem:[#allocation2 + $0x58] sm:$0xff]
      %v665 = vld [vmem:[#allocation2 + $0x60] sm:$0xff]
      %v666 = vld [vmem:[#allocation2 + $0x68] sm:$0xff]
      %v667 = vld [vmem:[#allocation2 + $0x70] sm:$0xff]
      %v668 = vld [vmem:[#allocation2 + $0x78] sm:$0xff]
      %v669 = vld [vmem:[#allocation2 + $0x80] sm:$0xff]
      %v670 = vld [vmem:[#allocation2 + $0x88] sm:$0xff]
      %v671 = vld [vmem:[#allocation2 + $0x90] sm:$0xff]
      %v672 = vld [vmem:[#allocation2 + $0x98] sm:$0xff]
      %v673 = vld [vmem:[#allocation2 + $0xa0] sm:$0xff]
      %v674 = vld [vmem:[#allocation2 + $0xa8] sm:$0xff]
      %v675 = vld [vmem:[#allocation2 + $0xb0] sm:$0xff]
      %v676 = vld [vmem:[#allocation2 + $0xb8] sm:$0xff]
      %v677 = vld [vmem:[#allocation2 + $0xc0] sm:$0xff]
      %v678 = vld [vmem:[#allocation2 + $0xc8] sm:$0xff]
      %v679 = vld [vmem:[#allocation2 + $0xd0] sm:$0xff]
      %v680 = vld [vmem:[#allocation2 + $0xd8] sm:$0xff]
      %v681 = vld [vmem:[#allocation2 + $0xe0] sm:$0xff]
      %v682 = vld [vmem:[#allocation2 + $0xe8] sm:$0xff]
      %v683 = vld [vmem:[#allocation2 + $0xf0] sm:$0xff]
      %v684 = vld [vmem:[#allocation2 + $0xf8] sm:$0xff]
      %v685 = vld [vmem:[%s2] sm:$0x1]
      %v687 = vperm.slane %v685, 0
      %v689 = vadd.f32 %v653, %v687
      %v690 = vadd.f32 %v654, %v687
      %v691 = vadd.f32 %v655, %v687
      %v692 = vadd.f32 %v656, %v687
      %v693 = vadd.f32 %v657, %v687
      %v694 = vadd.f32 %v658, %v687
      %v695 = vadd.f32 %v659, %v687
      %v696 = vadd.f32 %v660, %v687
      %v697 = vadd.f32 %v661, %v687
      %v698 = vadd.f32 %v662, %v687
      %v699 = vadd.f32 %v663, %v687
      %v700 = vadd.f32 %v664, %v687
      %v701 = vadd.f32 %v665, %v687
      %v702 = vadd.f32 %v666, %v687
      %v703 = vadd.f32 %v667, %v687
      %v704 = vadd.f32 %v668, %v687
      %v705 = vadd.f32 %v669, %v687
      %v706 = vadd.f32 %v670, %v687
      %v707 = vadd.f32 %v671, %v687
      %v708 = vadd.f32 %v672, %v687
      %v709 = vadd.f32 %v673, %v687
      %v710 = vadd.f32 %v674, %v687
      %v711 = vadd.f32 %v675, %v687
      %v712 = vadd.f32 %v676, %v687
      %v713 = vadd.f32 %v677, %v687
      %v714 = vadd.f32 %v678, %v687
      %v715 = vadd.f32 %v679, %v687
      %v716 = vadd.f32 %v680, %v687
      %v717 = vadd.f32 %v681, %v687
      %v718 = vadd.f32 %v682, %v687
      %v719 = vadd.f32 %v683, %v687
      %v720 = vadd.f32 %v684, %v687
      %v721 = vmax.f32 %v689, 0.0
      %v722 = vmax.f32 %v690, 0.0
      %v723 = vmax.f32 %v691, 0.0
      %v724 = vmax.f32 %v692, 0.0
      %v725 = vmax.f32 %v693, 0.0
      %v726 = vmax.f32 %v694, 0.0
      %v727 = vmax.f32 %v695, 0.0
      %v728 = vmax.f32 %v696, 0.0
      %v729 = vmax.f32 %v697, 0.0
      %v730 = vmax.f32 %v698, 0.0
      %v731 = vmax.f32 %v699, 0.0
      %v732 = vmax.f32 %v700, 0.0
      %v733 = vmax.f32 %v701, 0.0
      %v734 = vmax.f32 %v702, 0.0
      %v735 = vmax.f32 %v703, 0.0
      %v736 = vmax.f32 %v704, 0.0
      %v737 = vmax.f32 %v705, 0.0
      %v738 = vmax.f32 %v706, 0.0
      %v739 = vmax.f32 %v707, 0.0
      %v740 = vmax.f32 %v708, 0.0
      %v741 = vmax.f32 %v709, 0.0
      %v742 = vmax.f32 %v710, 0.0
      %v743 = vmax.f32 %v711, 0.0
      %v744 = vmax.f32 %v712, 0.0
      %v745 = vmax.f32 %v713, 0.0
      %v746 = vmax.f32 %v714, 0.0
      %v747 = vmax.f32 %v715, 0.0
      %v748 = vmax.f32 %v716, 0.0
      %v749 = vmax.f32 %v717, 0.0
      %v750 = vmax.f32 %v718, 0.0
      %v751 = vmax.f32 %v719, 0.0
      %v752 = vmax.f32 %v720, 0.0
      %753 = vst [vmem:[#allocation3] sm:$0xff] %v721
      %754 = vst [vmem:[#allocation3 + $0x8] sm:$0xff] %v722
      %755 = vst [vmem:[#allocation3 + $0x10] sm:$0xff] %v723
      %756 = vst [vmem:[#allocation3 + $0x18] sm:$0xff] %v724
      %757 = vst [vmem:[#allocation3 + $0x20] sm:$0xff] %v725
      %758 = vst [vmem:[#allocation3 + $0x28] sm:$0xff] %v726
      %759 = vst [vmem:[#allocation3 + $0x30] sm:$0xff] %v727
      %760 = vst [vmem:[#allocation3 + $0x38] sm:$0xff] %v728
      %761 = vst [vmem:[#allocation3 + $0x40] sm:$0xff] %v729
      %762 = vst [vmem:[#allocation3 + $0x48] sm:$0xff] %v730
      %763 = vst [vmem:[#allocation3 + $0x50] sm:$0xff] %v731
      %764 = vst [vmem:[#allocation3 + $0x58] sm:$0xff] %v732
      %765 = vst [vmem:[#allocation3 + $0x60] sm:$0xff] %v733
      %766 = vst [vmem:[#allocation3 + $0x68] sm:$0xff] %v734
      %767 = vst [vmem:[#allocation3 + $0x70] sm:$0xff] %v735
      %768 = vst [vmem:[#allocation3 + $0x78] sm:$0xff] %v736
      %769 = vst [vmem:[#allocation3 + $0x80] sm:$0xff] %v737
      %770 = vst [vmem:[#allocation3 + $0x88] sm:$0xff] %v738
      %771 = vst [vmem:[#allocation3 + $0x90] sm:$0xff] %v739
      %772 = vst [vmem:[#allocation3 + $0x98] sm:$0xff] %v740
      %773 = vst [vmem:[#allocation3 + $0xa0] sm:$0xff] %v741
      %774 = vst [vmem:[#allocation3 + $0xa8] sm:$0xff] %v742
      %775 = vst [vmem:[#allocation3 + $0xb0] sm:$0xff] %v743
      %776 = vst [vmem:[#allocation3 + $0xb8] sm:$0xff] %v744
      %777 = vst [vmem:[#allocation3 + $0xc0] sm:$0xff] %v745
      %778 = vst [vmem:[#allocation3 + $0xc8] sm:$0xff] %v746
      %779 = vst [vmem:[#allocation3 + $0xd0] sm:$0xff] %v747
      %780 = vst [vmem:[#allocation3 + $0xd8] sm:$0xff] %v748
      %781 = vst [vmem:[#allocation3 + $0xe0] sm:$0xff] %v749
      %782 = vst [vmem:[#allocation3 + $0xe8] sm:$0xff] %v750
      %783 = vst [vmem:[#allocation3 + $0xf0] sm:$0xff] %v751
      %784 = vst [vmem:[#allocation3 + $0xf8] sm:$0xff] %v752
      %v785 = vpack.c.bf16 %v722, %v721
      %v786 = vpack.c.bf16 %v724, %v723
      %v787 = vpack.c.bf16 %v726, %v725
      %v788 = vpack.c.bf16 %v728, %v727
      %v789 = vpack.c.bf16 %v730, %v729
      %v790 = vpack.c.bf16 %v732, %v731
      %v791 = vpack.c.bf16 %v734, %v733
      %v792 = vpack.c.bf16 %v736, %v735
      %v793 = vpack.c.bf16 %v738, %v737
      %v794 = vpack.c.bf16 %v740, %v739
      %v795 = vpack.c.bf16 %v742, %v741
      %v796 = vpack.c.bf16 %v744, %v743
      %v797 = vpack.c.bf16 %v746, %v745
      %v798 = vpack.c.bf16 %v748, %v747
      %v799 = vpack.c.bf16 %v750, %v749
      %v800 = vpack.c.bf16 %v752, %v751
      %v801 = vld [vmem:[%s3] sm:$0xf]
      %v802 = vld [vmem:[%s3 + $0x4] sm:$0xf]
      %v803 = vld [vmem:[%s3 + $0x8] sm:$0xf]
      %v804 = vld [vmem:[%s3 + $0xc] sm:$0xf]
      %v805 = vld [vmem:[%s3 + $0x10] sm:$0xf]
      %v806 = vld [vmem:[%s3 + $0x14] sm:$0xf]
      %v807 = vld [vmem:[%s3 + $0x18] sm:$0xf]
      %v808 = vld [vmem:[%s3 + $0x1c] sm:$0xf]
      %v809 = vld [vmem:[%s3 + $0x20] sm:$0xf]
      %v810 = vld [vmem:[%s3 + $0x24] sm:$0xf]
      %v811 = vld [vmem:[%s3 + $0x28] sm:$0xf]
      %v812 = vld [vmem:[%s3 + $0x2c] sm:$0xf]
      %v813 = vld [vmem:[%s3 + $0x30] sm:$0xf]
      %v814 = vld [vmem:[%s3 + $0x34] sm:$0xf]
      %v815 = vld [vmem:[%s3 + $0x38] sm:$0xf]
      %v816 = vld [vmem:[%s3 + $0x3c] sm:$0xf]
      %v833 = vunpack.c.l.b16 %v801
      %v834 = vunpack.c.l.b16 %v802
      %v835 = vunpack.c.l.b16 %v803
      %v836 = vunpack.c.l.b16 %v804
      %v837 = vunpack.c.l.b16 %v805
      %v838 = vunpack.c.l.b16 %v806
      %v839 = vunpack.c.l.b16 %v807
      %v840 = vunpack.c.l.b16 %v808
      %v841 = vunpack.c.l.b16 %v809
      %v842 = vunpack.c.l.b16 %v810
      %v843 = vunpack.c.l.b16 %v811
      %v844 = vunpack.c.l.b16 %v812
      %v845 = vunpack.c.l.b16 %v813
      %v846 = vunpack.c.l.b16 %v814
      %v847 = vunpack.c.l.b16 %v815
      %v848 = vunpack.c.l.b16 %v816
      %v849 = vpack.c.b16 %v834, %v833
      %v850 = vpack.c.b16 %v836, %v835
      %v851 = vpack.c.b16 %v838, %v837
      %v852 = vpack.c.b16 %v840, %v839
      %v853 = vpack.c.b16 %v842, %v841
      %v854 = vpack.c.b16 %v844, %v843
      %v855 = vpack.c.b16 %v846, %v845
      %v856 = vpack.c.b16 %v848, %v847
      %865 = vmatpush.bf16.msra.mxu0 %v856
      %866 = vmatpush.bf16.msra.mxu0 %v855
      %867 = vmatpush.bf16.msra.mxu0 %v854
      %868 = vmatpush.bf16.msra.mxu0 %v853
      %869 = vmatpush.bf16.msra.mxu0 %v852
      %870 = vmatpush.bf16.msra.mxu0 %v851
      %871 = vmatpush.bf16.msra.mxu0 %v850
      %872 = vmatpush.bf16.msra.mxu0 %v849
      %873 = vmatmul.bf16.gmra.mxu0 %v785
      %v874 = vpop.f32.mrf.mxu0
      %v875 = vadd.f32 0.0, %v874
      %v876 = vpop.f32.mrf.mxu0
      %v877 = vadd.f32 0.0, %v876
      %878 = vmatmul.bf16.gmra.mxu0 %v786
      %v879 = vpop.f32.mrf.mxu0
      %v880 = vadd.f32 0.0, %v879
      %v881 = vpop.f32.mrf.mxu0
      %v882 = vadd.f32 0.0, %v881
      %883 = vmatmul.bf16.gmra.mxu0 %v787
      %v884 = vpop.f32.mrf.mxu0
      %v885 = vadd.f32 0.0, %v884
      %v886 = vpop.f32.mrf.mxu0
      %v887 = vadd.f32 0.0, %v886
      %888 = vmatmul.bf16.gmra.mxu0 %v788
      %v889 = vpop.f32.mrf.mxu0
      %v890 = vadd.f32 0.0, %v889
      %v891 = vpop.f32.mrf.mxu0
      %v892 = vadd.f32 0.0, %v891
      %893 = vmatmul.bf16.gmra.mxu0 %v789
      %v894 = vpop.f32.mrf.mxu0
      %v895 = vadd.f32 0.0, %v894
      %v896 = vpop.f32.mrf.mxu0
      %v897 = vadd.f32 0.0, %v896
      %898 = vmatmul.bf16.gmra.mxu0 %v790
      %v899 = vpop.f32.mrf.mxu0
      %v900 = vadd.f32 0.0, %v899
      %v901 = vpop.f32.mrf.mxu0
      %v902 = vadd.f32 0.0, %v901
      %903 = vmatmul.bf16.gmra.mxu0 %v791
      %v904 = vpop.f32.mrf.mxu0
      %v905 = vadd.f32 0.0, %v904
      %v906 = vpop.f32.mrf.mxu0
      %v907 = vadd.f32 0.0, %v906
      %908 = vmatmul.bf16.gmra.mxu0 %v792
      %v909 = vpop.f32.mrf.mxu0
      %v910 = vadd.f32 0.0, %v909
      %v911 = vpop.f32.mrf.mxu0
      %v912 = vadd.f32 0.0, %v911
      %913 = vmatmul.bf16.gmra.mxu0 %v793
      %v914 = vpop.f32.mrf.mxu0
      %v915 = vadd.f32 0.0, %v914
      %v916 = vpop.f32.mrf.mxu0
      %v917 = vadd.f32 0.0, %v916
      %918 = vmatmul.bf16.gmra.mxu0 %v794
      %v919 = vpop.f32.mrf.mxu0
      %v920 = vadd.f32 0.0, %v919
      %v921 = vpop.f32.mrf.mxu0
      %v922 = vadd.f32 0.0, %v921
      %923 = vmatmul.bf16.gmra.mxu0 %v795
      %v924 = vpop.f32.mrf.mxu0
      %v925 = vadd.f32 0.0, %v924
      %v926 = vpop.f32.mrf.mxu0
      %v927 = vadd.f32 0.0, %v926
      %928 = vmatmul.bf16.gmra.mxu0 %v796
      %v929 = vpop.f32.mrf.mxu0
      %v930 = vadd.f32 0.0, %v929
      %v931 = vpop.f32.mrf.mxu0
      %v932 = vadd.f32 0.0, %v931
      %933 = vmatmul.bf16.gmra.mxu0 %v797
      %v934 = vpop.f32.mrf.mxu0
      %v935 = vadd.f32 0.0, %v934
      %v936 = vpop.f32.mrf.mxu0
      %v937 = vadd.f32 0.0, %v936
      %938 = vmatmul.bf16.gmra.mxu0 %v798
      %v939 = vpop.f32.mrf.mxu0
      %v940 = vadd.f32 0.0, %v939
      %v941 = vpop.f32.mrf.mxu0
      %v942 = vadd.f32 0.0, %v941
      %943 = vmatmul.bf16.gmra.mxu0 %v799
      %v944 = vpop.f32.mrf.mxu0
      %v945 = vadd.f32 0.0, %v944
      %v946 = vpop.f32.mrf.mxu0
      %v947 = vadd.f32 0.0, %v946
      %948 = vmatmul.bf16.gmra.mxu0 %v800
      %v949 = vpop.f32.mrf.mxu0
      %v950 = vadd.f32 0.0, %v949
      %v951 = vpop.f32.mrf.mxu0
      %v952 = vadd.f32 0.0, %v951
      %953 = vdwg.mxu0
      %v954 = vpack.c.bf16 %v875, %v875
      %v955 = vpack.c.bf16 %v877, %v877
      %v956 = vpack.c.bf16 %v880, %v880
      %v957 = vpack.c.bf16 %v882, %v882
      %v958 = vpack.c.bf16 %v885, %v885
      %v959 = vpack.c.bf16 %v887, %v887
      %v960 = vpack.c.bf16 %v890, %v890
      %v961 = vpack.c.bf16 %v892, %v892
      %v962 = vpack.c.bf16 %v895, %v895
      %v963 = vpack.c.bf16 %v897, %v897
      %v964 = vpack.c.bf16 %v900, %v900
      %v965 = vpack.c.bf16 %v902, %v902
      %v966 = vpack.c.bf16 %v905, %v905
      %v967 = vpack.c.bf16 %v907, %v907
      %v968 = vpack.c.bf16 %v910, %v910
      %v969 = vpack.c.bf16 %v912, %v912
      %v970 = vpack.c.bf16 %v915, %v915
      %v971 = vpack.c.bf16 %v917, %v917
      %v972 = vpack.c.bf16 %v920, %v920
      %v973 = vpack.c.bf16 %v922, %v922
      %v974 = vpack.c.bf16 %v925, %v925
      %v975 = vpack.c.bf16 %v927, %v927
      %v976 = vpack.c.bf16 %v930, %v930
      %v977 = vpack.c.bf16 %v932, %v932
      %v978 = vpack.c.bf16 %v935, %v935
      %v979 = vpack.c.bf16 %v937, %v937
      %v980 = vpack.c.bf16 %v940, %v940
      %v981 = vpack.c.bf16 %v942, %v942
      %v982 = vpack.c.bf16 %v945, %v945
      %v983 = vpack.c.bf16 %v947, %v947
      %v984 = vpack.c.bf16 %v950, %v950
      %v985 = vpack.c.bf16 %v952, %v952
      %986 = vst [vmem:[%s5] sm:$0xf] %v954
      %987 = vst [vmem:[%s5 + $0x4] sm:$0xf] %v955
      %988 = vst [vmem:[%s5 + $0x8] sm:$0xf] %v956
      %989 = vst [vmem:[%s5 + $0xc] sm:$0xf] %v957
      %990 = vst [vmem:[%s5 + $0x10] sm:$0xf] %v958
      %991 = vst [vmem:[%s5 + $0x14] sm:$0xf] %v959
      %992 = vst [vmem:[%s5 + $0x18] sm:$0xf] %v960
      %993 = vst [vmem:[%s5 + $0x1c] sm:$0xf] %v961
      %994 = vst [vmem:[%s5 + $0x20] sm:$0xf] %v962
      %995 = vst [vmem:[%s5 + $0x24] sm:$0xf] %v963
      %996 = vst [vmem:[%s5 + $0x28] sm:$0xf] %v964
      %997 = vst [vmem:[%s5 + $0x2c] sm:$0xf] %v965
      %998 = vst [vmem:[%s5 + $0x30] sm:$0xf] %v966
      %999 = vst [vmem:[%s5 + $0x34] sm:$0xf] %v967
      %1000 = vst [vmem:[%s5 + $0x38] sm:$0xf] %v968
      %1001 = vst [vmem:[%s5 + $0x3c] sm:$0xf] %v969
      %1002 = vst [vmem:[%s5 + $0x40] sm:$0xf] %v970
      %1003 = vst [vmem:[%s5 + $0x44] sm:$0xf] %v971
      %1004 = vst [vmem:[%s5 + $0x48] sm:$0xf] %v972
      %1005 = vst [vmem:[%s5 + $0x4c] sm:$0xf] %v973
      %1006 = vst [vmem:[%s5 + $0x50] sm:$0xf] %v974
      %1007 = vst [vmem:[%s5 + $0x54] sm:$0xf] %v975
      %1008 = vst [vmem:[%s5 + $0x58] sm:$0xf] %v976
      %1009 = vst [vmem:[%s5 + $0x5c] sm:$0xf] %v977
      %1010 = vst [vmem:[%s5 + $0x60] sm:$0xf] %v978
      %1011 = vst [vmem:[%s5 + $0x64] sm:$0xf] %v979
      %1012 = vst [vmem:[%s5 + $0x68] sm:$0xf] %v980
      %1013 = vst [vmem:[%s5 + $0x6c] sm:$0xf] %v981
      %1014 = vst [vmem:[%s5 + $0x70] sm:$0xf] %v982
      %1015 = vst [vmem:[%s5 + $0x74] sm:$0xf] %v983
      %1016 = vst [vmem:[%s5 + $0x78] sm:$0xf] %v984
      %1017 = vst [vmem:[%s5 + $0x7c] sm:$0xf] %v985
    $region25: #{gcn_nc_forward.5} parent=1 // pred_fallthru
      _
    // Predicated region
    $region26: #{gcn_nc_forward.5} parent=1 // pred_check
      _
    $region27: #{gcn_nc_forward.5} parent=1 // pred_check_branch
      %1019 = sbr.rel (0) target = $region29
    $region28: #{gcn_nc_forward.5} parent=1 // pred_region
      %1021 = vsyncadd [#allocation4], 0
      %s1022 = sshll.u32 [#allocation3], 4
      %s1023 = int_to_ptr.vmem [resolvable:$true] %s1022
      %s1024 = sshll.u32 %s4, 4
      %s1025 = int_to_ptr.hbm [resolvable:$true] %s1024
      %1030 = dma.vmem_to_hbm [thread:$0]  %s1023, 4096, %s1025, [#allocation4], 128, 128, 8
    $region29: #{gcn_nc_forward.5} parent=1 // pred_fallthru
      _
    // Predicated region
    $region30: #{gcn_nc_forward.5} parent=1 // pred_check
      _
    $region31: #{gcn_nc_forward.5} parent=1 // pred_check_branch
      %1032 = sbr.rel (0) target = $region33
    $region32: #{gcn_nc_forward.5} parent=1 // pred_region
      _
    $region33: #{gcn_nc_forward.5} parent=1 // pred_fallthru
      _
    // Predicated region
    $region34: #{gcn_nc_forward.5} parent=1 // pred_check
      _
    $region35: #{gcn_nc_forward.5} parent=1 // pred_check_branch
      %1034 = sbr.rel (0) target = $region37
    $region36: #{gcn_nc_forward.5} parent=1 // pred_region
      %1036 = dma.done [#allocation4], 4096
    $region37: #{gcn_nc_forward.5} parent=1 // pred_fallthru
      _
    // Predicated region
    $region38: #{gcn_nc_forward.5} parent=1 // pred_check
      _
    $region39: #{gcn_nc_forward.5} parent=1 // pred_check_branch
      %1038 = sbr.rel (0) target = $region41
    $region40: #{gcn_nc_forward.5} parent=1 // pred_region
      _
    $region41: #{gcn_nc_forward.5} parent=1 // pred_fallthru
      _
    %1039 = vsyncpa [#allocation4], 1

// kernel: gcn_nc_forward.6
$region0: #{gcn_nc_forward.6}
  #allocation0 [shape = 'u32[]', space=smem, size = 0x4, offset = 0x4, fixed_abs, tag = 'smem constant byte address 0x4 - core index']
  #allocation1 [shape = 'u32[72,128]{1,0:T(1,128)}', space=vmem, size = 0x9000, scoped, tag = 'internal scratch']
  #allocation2 [shape = 'f32[256,128]{1,0:T(8,128)}', space=vmem, size = 0x20000, scoped, tag = 'scratch operand']
  %s0 = inlined_call_operand.vmem [shape: bf16[256,256], index: 0, kind: input, shape index: {}]
  %s1 = inlined_call_operand.vmem [shape: bf16[256,128], index: 1, kind: input, shape index: {}]
  %s2 = inlined_call_operand.vmem [shape: f32[1,128], index: 2, kind: input, shape index: {}]
  %s3 = inlined_call_operand.vmem [shape: bf16[128,128], index: 3, kind: input, shape index: {}]
  %s4 = inlined_call_operand.vmem [shape: f32[256,128], index: 4, kind: output, shape index: {0}]
  %s5 = inlined_call_operand.vmem [shape: bf16[256,128], index: 5, kind: output, shape index: {1}]
  %6 = xla_tuple %s4, %s5
  %s7 = sld [smem:[#allocation0]]
  $region42: #{gcn_nc_forward.6} parent=0
    _
  %s9 = ssub.s32 1, %s7
  %s10 = scalar_select 0, %s9, %s7
  // Predicated region
  $region2: #{gcn_nc_forward.6} parent=0 // pred_check
    _
  $region3: #{gcn_nc_forward.6} parent=0 // pred_check_branch
    %12 = sbr.rel (0) target = $region5
  $region4: #{gcn_nc_forward.6} parent=0 // pred_region
    _
  $region5: #{gcn_nc_forward.6} parent=0 // pred_fallthru
    _
  // Predicated region
  $region6: #{gcn_nc_forward.6} parent=0 // pred_check
    _
  $region7: #{gcn_nc_forward.6} parent=0 // pred_check_branch
    %14 = sbr.rel (0) target = $region9
  $region8: #{gcn_nc_forward.6} parent=0 // pred_region
    _
  $region9: #{gcn_nc_forward.6} parent=0 // pred_fallthru
    _
  // Predicated region
  $region10: #{gcn_nc_forward.6} parent=0 // pred_check
    _
  $region11: #{gcn_nc_forward.6} parent=0 // pred_check_branch
    %16 = sbr.rel (0) target = $region13
  $region12: #{gcn_nc_forward.6} parent=0 // pred_region
    _
  $region13: #{gcn_nc_forward.6} parent=0 // pred_fallthru
    _
  // Predicated region
  $region14: #{gcn_nc_forward.6} parent=0 // pred_check
    _
  $region15: #{gcn_nc_forward.6} parent=0 // pred_check_branch
    %18 = sbr.rel (0) target = $region17
  $region16: #{gcn_nc_forward.6} parent=0 // pred_region
    _
  $region17: #{gcn_nc_forward.6} parent=0 // pred_fallthru
    _
  %p19 = scmp.eq.s32.totalorder 0, 0
  // Predicated region
  $region18: #{gcn_nc_forward.6} parent=0 // pred_check
    %p20 = pneg %p19
  $region19: #{gcn_nc_forward.6} parent=0 // pred_check_branch
    %22 = sbr.rel (%p20) target = $region21
  $region20: #{gcn_nc_forward.6} parent=0 // pred_region
    %23 = vst [vmem:[#allocation2] sm:$0xff] 0.0
    %24 = vst [vmem:[#allocation2 + $0x8] sm:$0xff] 0.0
    %25 = vst [vmem:[#allocation2 + $0x10] sm:$0xff] 0.0
    %26 = vst [vmem:[#allocation2 + $0x18] sm:$0xff] 0.0
    %27 = vst [vmem:[#allocation2 + $0x20] sm:$0xff] 0.0
    %28 = vst [vmem:[#allocation2 + $0x28] sm:$0xff] 0.0
    %29 = vst [vmem:[#allocation2 + $0x30] sm:$0xff] 0.0
    %30 = vst [vmem:[#allocation2 + $0x38] sm:$0xff] 0.0
    %31 = vst [vmem:[#allocation2 + $0x40] sm:$0xff] 0.0
    %32 = vst [vmem:[#allocation2 + $0x48] sm:$0xff] 0.0
    %33 = vst [vmem:[#allocation2 + $0x50] sm:$0xff] 0.0
    %34 = vst [vmem:[#allocation2 + $0x58] sm:$0xff] 0.0
    %35 = vst [vmem:[#allocation2 + $0x60] sm:$0xff] 0.0
    %36 = vst [vmem:[#allocation2 + $0x68] sm:$0xff] 0.0
    %37 = vst [vmem:[#allocation2 + $0x70] sm:$0xff] 0.0
    %38 = vst [vmem:[#allocation2 + $0x78] sm:$0xff] 0.0
    %39 = vst [vmem:[#allocation2 + $0x80] sm:$0xff] 0.0
    %40 = vst [vmem:[#allocation2 + $0x88] sm:$0xff] 0.0
    %41 = vst [vmem:[#allocation2 + $0x90] sm:$0xff] 0.0
    %42 = vst [vmem:[#allocation2 + $0x98] sm:$0xff] 0.0
    %43 = vst [vmem:[#allocation2 + $0xa0] sm:$0xff] 0.0
    %44 = vst [vmem:[#allocation2 + $0xa8] sm:$0xff] 0.0
    %45 = vst [vmem:[#allocation2 + $0xb0] sm:$0xff] 0.0
    %46 = vst [vmem:[#allocation2 + $0xb8] sm:$0xff] 0.0
    %47 = vst [vmem:[#allocation2 + $0xc0] sm:$0xff] 0.0
    %48 = vst [vmem:[#allocation2 + $0xc8] sm:$0xff] 0.0
    %49 = vst [vmem:[#allocation2 + $0xd0] sm:$0xff] 0.0
    %50 = vst [vmem:[#allocation2 + $0xd8] sm:$0xff] 0.0
    %51 = vst [vmem:[#allocation2 + $0xe0] sm:$0xff] 0.0
    %52 = vst [vmem:[#allocation2 + $0xe8] sm:$0xff] 0.0
    %53 = vst [vmem:[#allocation2 + $0xf0] sm:$0xff] 0.0
    %54 = vst [vmem:[#allocation2 + $0xf8] sm:$0xff] 0.0
  $region21: #{gcn_nc_forward.6} parent=0 // pred_fallthru
    _
  %v55 = vld [vmem:[#allocation2] sm:$0xff]
  %v56 = vld [vmem:[#allocation2 + $0x8] sm:$0xff]
  %v57 = vld [vmem:[#allocation2 + $0x10] sm:$0xff]
  %v58 = vld [vmem:[#allocation2 + $0x18] sm:$0xff]
  %v59 = vld [vmem:[#allocation2 + $0x20] sm:$0xff]
  %v60 = vld [vmem:[#allocation2 + $0x28] sm:$0xff]
  %v61 = vld [vmem:[#allocation2 + $0x30] sm:$0xff]
  %v62 = vld [vmem:[#allocation2 + $0x38] sm:$0xff]
  %v63 = vld [vmem:[#allocation2 + $0x40] sm:$0xff]
  %v64 = vld [vmem:[#allocation2 + $0x48] sm:$0xff]
  %v65 = vld [vmem:[#allocation2 + $0x50] sm:$0xff]
  %v66 = vld [vmem:[#allocation2 + $0x58] sm:$0xff]
  %v67 = vld [vmem:[#allocation2 + $0x60] sm:$0xff]
  %v68 = vld [vmem:[#allocation2 + $0x68] sm:$0xff]
  %v69 = vld [vmem:[#allocation2 + $0x70] sm:$0xff]
  %v70 = vld [vmem:[#allocation2 + $0x78] sm:$0xff]
  %v71 = vld [vmem:[#allocation2 + $0x80] sm:$0xff]
  %v72 = vld [vmem:[#allocation2 + $0x88] sm:$0xff]
  %v73 = vld [vmem:[#allocation2 + $0x90] sm:$0xff]
  %v74 = vld [vmem:[#allocation2 + $0x98] sm:$0xff]
  %v75 = vld [vmem:[#allocation2 + $0xa0] sm:$0xff]
  %v76 = vld [vmem:[#allocation2 + $0xa8] sm:$0xff]
  %v77 = vld [vmem:[#allocation2 + $0xb0] sm:$0xff]
  %v78 = vld [vmem:[#allocation2 + $0xb8] sm:$0xff]
  %v79 = vld [vmem:[#allocation2 + $0xc0] sm:$0xff]
  %v80 = vld [vmem:[#allocation2 + $0xc8] sm:$0xff]
  %v81 = vld [vmem:[#allocation2 + $0xd0] sm:$0xff]
  %v82 = vld [vmem:[#allocation2 + $0xd8] sm:$0xff]
  %v83 = vld [vmem:[#allocation2 + $0xe0] sm:$0xff]
  %v84 = vld [vmem:[#allocation2 + $0xe8] sm:$0xff]
  %v85 = vld [vmem:[#allocation2 + $0xf0] sm:$0xff]
  %v86 = vld [vmem:[#allocation2 + $0xf8] sm:$0xff]
  %v87 = vld [vmem:[%s0] sm:$0xff]
  %v88 = vld [vmem:[%s0 + $0x8] sm:$0xff]
  %v89 = vld [vmem:[%s0 + $0x10] sm:$0xff]
  %v90 = vld [vmem:[%s0 + $0x18] sm:$0xff]
  %v91 = vld [vmem:[%s0 + $0x20] sm:$0xff]
  %v92 = vld [vmem:[%s0 + $0x28] sm:$0xff]
  %v93 = vld [vmem:[%s0 + $0x30] sm:$0xff]
  %v94 = vld [vmem:[%s0 + $0x38] sm:$0xff]
  %v95 = vld [vmem:[%s0 + $0x40] sm:$0xff]
  %v96 = vld [vmem:[%s0 + $0x48] sm:$0xff]
  %v97 = vld [vmem:[%s0 + $0x50] sm:$0xff]
  %v98 = vld [vmem:[%s0 + $0x58] sm:$0xff]
  %v99 = vld [vmem:[%s0 + $0x60] sm:$0xff]
  %v100 = vld [vmem:[%s0 + $0x68] sm:$0xff]
  %v101 = vld [vmem:[%s0 + $0x70] sm:$0xff]
  %v102 = vld [vmem:[%s0 + $0x78] sm:$0xff]
  %v103 = vld [vmem:[%s0 + $0x80] sm:$0xff]
  %v104 = vld [vmem:[%s0 + $0x88] sm:$0xff]
  %v105 = vld [vmem:[%s0 + $0x90] sm:$0xff]
  %v106 = vld [vmem:[%s0 + $0x98] sm:$0xff]
  %v107 = vld [vmem:[%s0 + $0xa0] sm:$0xff]
  %v108 = vld [vmem:[%s0 + $0xa8] sm:$0xff]
  %v109 = vld [vmem:[%s0 + $0xb0] sm:$0xff]
  %v110 = vld [vmem:[%s0 + $0xb8] sm:$0xff]
  %v111 = vld [vmem:[%s0 + $0xc0] sm:$0xff]
  %v112 = vld [vmem:[%s0 + $0xc8] sm:$0xff]
  %v113 = vld [vmem:[%s0 + $0xd0] sm:$0xff]
  %v114 = vld [vmem:[%s0 + $0xd8] sm:$0xff]
  %v115 = vld [vmem:[%s0 + $0xe0] sm:$0xff]
  %v116 = vld [vmem:[%s0 + $0xe8] sm:$0xff]
  %v117 = vld [vmem:[%s0 + $0xf0] sm:$0xff]
  %v118 = vld [vmem:[%s0 + $0xf8] sm:$0xff]
  %v119 = vld [vmem:[%s1] sm:$0xf]
  %v120 = vld [vmem:[%s1 + $0x4] sm:$0xf]
  %v121 = vld [vmem:[%s1 + $0x8] sm:$0xf]
  %v122 = vld [vmem:[%s1 + $0xc] sm:$0xf]
  %v123 = vld [vmem:[%s1 + $0x10] sm:$0xf]
  %v124 = vld [vmem:[%s1 + $0x14] sm:$0xf]
  %v125 = vld [vmem:[%s1 + $0x18] sm:$0xf]
  %v126 = vld [vmem:[%s1 + $0x1c] sm:$0xf]
  %v127 = vld [vmem:[%s1 + $0x20] sm:$0xf]
  %v128 = vld [vmem:[%s1 + $0x24] sm:$0xf]
  %v129 = vld [vmem:[%s1 + $0x28] sm:$0xf]
  %v130 = vld [vmem:[%s1 + $0x2c] sm:$0xf]
  %v131 = vld [vmem:[%s1 + $0x30] sm:$0xf]
  %v132 = vld [vmem:[%s1 + $0x34] sm:$0xf]
  %v133 = vld [vmem:[%s1 + $0x38] sm:$0xf]
  %v134 = vld [vmem:[%s1 + $0x3c] sm:$0xf]
  %v135 = vld [vmem:[%s1 + $0x40] sm:$0xf]
  %v136 = vld [vmem:[%s1 + $0x44] sm:$0xf]
  %v137 = vld [vmem:[%s1 + $0x48] sm:$0xf]
  %v138 = vld [vmem:[%s1 + $0x4c] sm:$0xf]
  %v139 = vld [vmem:[%s1 + $0x50] sm:$0xf]
  %v140 = vld [vmem:[%s1 + $0x54] sm:$0xf]
  %v141 = vld [vmem:[%s1 + $0x58] sm:$0xf]
  %v142 = vld [vmem:[%s1 + $0x5c] sm:$0xf]
  %v143 = vld [vmem:[%s1 + $0x60] sm:$0xf]
  %v144 = vld [vmem:[%s1 + $0x64] sm:$0xf]
  %v145 = vld [vmem:[%s1 + $0x68] sm:$0xf]
  %v146 = vld [vmem:[%s1 + $0x6c] sm:$0xf]
  %v147 = vld [vmem:[%s1 + $0x70] sm:$0xf]
  %v148 = vld [vmem:[%s1 + $0x74] sm:$0xf]
  %v149 = vld [vmem:[%s1 + $0x78] sm:$0xf]
  %v150 = vld [vmem:[%s1 + $0x7c] sm:$0xf]
  %v183 = vunpack.c.l.b16 %v87
  %v184 = vunpack.c.h.b16 %v87
  %v185 = vunpack.c.l.b16 %v88
  %v186 = vunpack.c.h.b16 %v88
  %v187 = vunpack.c.l.b16 %v89
  %v188 = vunpack.c.h.b16 %v89
  %v189 = vunpack.c.l.b16 %v90
  %v190 = vunpack.c.h.b16 %v90
  %v191 = vunpack.c.l.b16 %v91
  %v192 = vunpack.c.h.b16 %v91
  %v193 = vunpack.c.l.b16 %v92
  %v194 = vunpack.c.h.b16 %v92
  %v195 = vunpack.c.l.b16 %v93
  %v196 = vunpack.c.h.b16 %v93
  %v197 = vunpack.c.l.b16 %v94
  %v198 = vunpack.c.h.b16 %v94
  %v199 = vunpack.c.l.b16 %v95
  %v200 = vunpack.c.h.b16 %v95
  %v201 = vunpack.c.l.b16 %v96
  %v202 = vunpack.c.h.b16 %v96
  %v203 = vunpack.c.l.b16 %v97
  %v204 = vunpack.c.h.b16 %v97
  %v205 = vunpack.c.l.b16 %v98
  %v206 = vunpack.c.h.b16 %v98
  %v207 = vunpack.c.l.b16 %v99
  %v208 = vunpack.c.h.b16 %v99
  %v209 = vunpack.c.l.b16 %v100
  %v210 = vunpack.c.h.b16 %v100
  %v211 = vunpack.c.l.b16 %v101
  %v212 = vunpack.c.h.b16 %v101
  %v213 = vunpack.c.l.b16 %v102
  %v214 = vunpack.c.h.b16 %v102
  %v215 = vunpack.c.l.b16 %v103
  %v216 = vunpack.c.h.b16 %v103
  %v217 = vunpack.c.l.b16 %v104
  %v218 = vunpack.c.h.b16 %v104
  %v219 = vunpack.c.l.b16 %v105
  %v220 = vunpack.c.h.b16 %v105
  %v221 = vunpack.c.l.b16 %v106
  %v222 = vunpack.c.h.b16 %v106
  %v223 = vunpack.c.l.b16 %v107
  %v224 = vunpack.c.h.b16 %v107
  %v225 = vunpack.c.l.b16 %v108
  %v226 = vunpack.c.h.b16 %v108
  %v227 = vunpack.c.l.b16 %v109
  %v228 = vunpack.c.h.b16 %v109
  %v229 = vunpack.c.l.b16 %v110
  %v230 = vunpack.c.h.b16 %v110
  %v231 = vunpack.c.l.b16 %v111
  %v232 = vunpack.c.h.b16 %v111
  %v233 = vunpack.c.l.b16 %v112
  %v234 = vunpack.c.h.b16 %v112
  %v235 = vunpack.c.l.b16 %v113
  %v236 = vunpack.c.h.b16 %v113
  %v237 = vunpack.c.l.b16 %v114
  %v238 = vunpack.c.h.b16 %v114
  %v239 = vunpack.c.l.b16 %v115
  %v240 = vunpack.c.h.b16 %v115
  %v241 = vunpack.c.l.b16 %v116
  %v242 = vunpack.c.h.b16 %v116
  %v243 = vunpack.c.l.b16 %v117
  %v244 = vunpack.c.h.b16 %v117
  %v245 = vunpack.c.l.b16 %v118
  %v246 = vunpack.c.h.b16 %v118
  %v247 = vpack.c.b16 %v185, %v183
  %v248 = vpack.c.b16 %v186, %v184
  %v249 = vpack.c.b16 %v189, %v187
  %v250 = vpack.c.b16 %v190, %v188
  %v251 = vpack.c.b16 %v193, %v191
  %v252 = vpack.c.b16 %v194, %v192
  %v253 = vpack.c.b16 %v197, %v195
  %v254 = vpack.c.b16 %v198, %v196
  %v255 = vpack.c.b16 %v201, %v199
  %v256 = vpack.c.b16 %v202, %v200
  %v257 = vpack.c.b16 %v205, %v203
  %v258 = vpack.c.b16 %v206, %v204
  %v259 = vpack.c.b16 %v209, %v207
  %v260 = vpack.c.b16 %v210, %v208
  %v261 = vpack.c.b16 %v213, %v211
  %v262 = vpack.c.b16 %v214, %v212
  %v263 = vpack.c.b16 %v217, %v215
  %v264 = vpack.c.b16 %v218, %v216
  %v265 = vpack.c.b16 %v221, %v219
  %v266 = vpack.c.b16 %v222, %v220
  %v267 = vpack.c.b16 %v225, %v223
  %v268 = vpack.c.b16 %v226, %v224
  %v269 = vpack.c.b16 %v229, %v227
  %v270 = vpack.c.b16 %v230, %v228
  %v271 = vpack.c.b16 %v233, %v231
  %v272 = vpack.c.b16 %v234, %v232
  %v273 = vpack.c.b16 %v237, %v235
  %v274 = vpack.c.b16 %v238, %v236
  %v275 = vpack.c.b16 %v241, %v239
  %v276 = vpack.c.b16 %v242, %v240
  %v277 = vpack.c.b16 %v245, %v243
  %v278 = vpack.c.b16 %v246, %v244
  %v343 = vunpack.c.l.b16 %v119
  %v344 = vunpack.c.l.b16 %v120
  %v345 = vunpack.c.l.b16 %v121
  %v346 = vunpack.c.l.b16 %v122
  %v347 = vunpack.c.l.b16 %v123
  %v348 = vunpack.c.l.b16 %v124
  %v349 = vunpack.c.l.b16 %v125
  %v350 = vunpack.c.l.b16 %v126
  %v351 = vunpack.c.l.b16 %v127
  %v352 = vunpack.c.l.b16 %v128
  %v353 = vunpack.c.l.b16 %v129
  %v354 = vunpack.c.l.b16 %v130
  %v355 = vunpack.c.l.b16 %v131
  %v356 = vunpack.c.l.b16 %v132
  %v357 = vunpack.c.l.b16 %v133
  %v358 = vunpack.c.l.b16 %v134
  %v359 = vunpack.c.l.b16 %v135
  %v360 = vunpack.c.l.b16 %v136
  %v361 = vunpack.c.l.b16 %v137
  %v362 = vunpack.c.l.b16 %v138
  %v363 = vunpack.c.l.b16 %v139
  %v364 = vunpack.c.l.b16 %v140
  %v365 = vunpack.c.l.b16 %v141
  %v366 = vunpack.c.l.b16 %v142
  %v367 = vunpack.c.l.b16 %v143
  %v368 = vunpack.c.l.b16 %v144
  %v369 = vunpack.c.l.b16 %v145
  %v370 = vunpack.c.l.b16 %v146
  %v371 = vunpack.c.l.b16 %v147
  %v372 = vunpack.c.l.b16 %v148
  %v373 = vunpack.c.l.b16 %v149
  %v374 = vunpack.c.l.b16 %v150
  %v375 = vpack.c.b16 %v344, %v343
  %v376 = vpack.c.b16 %v346, %v345
  %v377 = vpack.c.b16 %v348, %v347
  %v378 = vpack.c.b16 %v350, %v349
  %v379 = vpack.c.b16 %v352, %v351
  %v380 = vpack.c.b16 %v354, %v353
  %v381 = vpack.c.b16 %v356, %v355
  %v382 = vpack.c.b16 %v358, %v357
  %v383 = vpack.c.b16 %v360, %v359
  %v384 = vpack.c.b16 %v362, %v361
  %v385 = vpack.c.b16 %v364, %v363
  %v386 = vpack.c.b16 %v366, %v365
  %v387 = vpack.c.b16 %v368, %v367
  %v388 = vpack.c.b16 %v370, %v369
  %v389 = vpack.c.b16 %v372, %v371
  %v390 = vpack.c.b16 %v374, %v373
  %407 = vmatpush.bf16.msra.mxu0 %v382
  %408 = vmatpush.bf16.msra.mxu0 %v381
  %409 = vmatpush.bf16.msra.mxu0 %v380
  %410 = vmatpush.bf16.msra.mxu0 %v379
  %411 = vmatpush.bf16.msra.mxu0 %v378
  %412 = vmatpush.bf16.msra.mxu0 %v377
  %413 = vmatpush.bf16.msra.mxu0 %v376
  %414 = vmatpush.bf16.msra.mxu0 %v375
  %415 = vmatmul.bf16.gmra.mxu0 %v247
  %v416 = vpop.f32.mrf.mxu0
  %v417 = vadd.f32 0.0, %v416
  %v418 = vpop.f32.mrf.mxu0
  %v419 = vadd.f32 0.0, %v418
  %420 = vmatmul.bf16.gmra.mxu0 %v249
  %v421 = vpop.f32.mrf.mxu0
  %v422 = vadd.f32 0.0, %v421
  %v423 = vpop.f32.mrf.mxu0
  %v424 = vadd.f32 0.0, %v423
  %425 = vmatmul.bf16.gmra.mxu0 %v251
  %v426 = vpop.f32.mrf.mxu0
  %v427 = vadd.f32 0.0, %v426
  %v428 = vpop.f32.mrf.mxu0
  %v429 = vadd.f32 0.0, %v428
  %430 = vmatmul.bf16.gmra.mxu0 %v253
  %v431 = vpop.f32.mrf.mxu0
  %v432 = vadd.f32 0.0, %v431
  %v433 = vpop.f32.mrf.mxu0
  %v434 = vadd.f32 0.0, %v433
  %435 = vmatmul.bf16.gmra.mxu0 %v255
  %v436 = vpop.f32.mrf.mxu0
  %v437 = vadd.f32 0.0, %v436
  %v438 = vpop.f32.mrf.mxu0
  %v439 = vadd.f32 0.0, %v438
  %440 = vmatmul.bf16.gmra.mxu0 %v257
  %v441 = vpop.f32.mrf.mxu0
  %v442 = vadd.f32 0.0, %v441
  %v443 = vpop.f32.mrf.mxu0
  %v444 = vadd.f32 0.0, %v443
  %445 = vmatmul.bf16.gmra.mxu0 %v259
  %v446 = vpop.f32.mrf.mxu0
  %v447 = vadd.f32 0.0, %v446
  %v448 = vpop.f32.mrf.mxu0
  %v449 = vadd.f32 0.0, %v448
  %450 = vmatmul.bf16.gmra.mxu0 %v261
  %v451 = vpop.f32.mrf.mxu0
  %v452 = vadd.f32 0.0, %v451
  %v453 = vpop.f32.mrf.mxu0
  %v454 = vadd.f32 0.0, %v453
  %455 = vmatmul.bf16.gmra.mxu0 %v263
  %v456 = vpop.f32.mrf.mxu0
  %v457 = vadd.f32 0.0, %v456
  %v458 = vpop.f32.mrf.mxu0
  %v459 = vadd.f32 0.0, %v458
  %460 = vmatmul.bf16.gmra.mxu0 %v265
  %v461 = vpop.f32.mrf.mxu0
  %v462 = vadd.f32 0.0, %v461
  %v463 = vpop.f32.mrf.mxu0
  %v464 = vadd.f32 0.0, %v463
  %465 = vmatmul.bf16.gmra.mxu0 %v267
  %v466 = vpop.f32.mrf.mxu0
  %v467 = vadd.f32 0.0, %v466
  %v468 = vpop.f32.mrf.mxu0
  %v469 = vadd.f32 0.0, %v468
  %470 = vmatmul.bf16.gmra.mxu0 %v269
  %v471 = vpop.f32.mrf.mxu0
  %v472 = vadd.f32 0.0, %v471
  %v473 = vpop.f32.mrf.mxu0
  %v474 = vadd.f32 0.0, %v473
  %475 = vmatmul.bf16.gmra.mxu0 %v271
  %v476 = vpop.f32.mrf.mxu0
  %v477 = vadd.f32 0.0, %v476
  %v478 = vpop.f32.mrf.mxu0
  %v479 = vadd.f32 0.0, %v478
  %480 = vmatmul.bf16.gmra.mxu0 %v273
  %v481 = vpop.f32.mrf.mxu0
  %v482 = vadd.f32 0.0, %v481
  %v483 = vpop.f32.mrf.mxu0
  %v484 = vadd.f32 0.0, %v483
  %485 = vmatmul.bf16.gmra.mxu0 %v275
  %v486 = vpop.f32.mrf.mxu0
  %v487 = vadd.f32 0.0, %v486
  %v488 = vpop.f32.mrf.mxu0
  %v489 = vadd.f32 0.0, %v488
  %490 = vmatmul.bf16.gmra.mxu0 %v277
  %v491 = vpop.f32.mrf.mxu0
  %v492 = vadd.f32 0.0, %v491
  %v493 = vpop.f32.mrf.mxu0
  %v494 = vadd.f32 0.0, %v493
  %495 = vdwg.mxu0
  %496 = vmatpush.bf16.msra.mxu0 %v390
  %497 = vmatpush.bf16.msra.mxu0 %v389
  %498 = vmatpush.bf16.msra.mxu0 %v388
  %499 = vmatpush.bf16.msra.mxu0 %v387
  %500 = vmatpush.bf16.msra.mxu0 %v386
  %501 = vmatpush.bf16.msra.mxu0 %v385
  %502 = vmatpush.bf16.msra.mxu0 %v384
  %503 = vmatpush.bf16.msra.mxu0 %v383
  %504 = vmatmul.bf16.gmra.mxu0 %v248
  %v505 = vpop.f32.mrf.mxu0
  %v506 = vadd.f32 %v417, %v505
  %v507 = vpop.f32.mrf.mxu0
  %v508 = vadd.f32 %v419, %v507
  %509 = vmatmul.bf16.gmra.mxu0 %v250
  %v510 = vpop.f32.mrf.mxu0
  %v511 = vadd.f32 %v422, %v510
  %v512 = vpop.f32.mrf.mxu0
  %v513 = vadd.f32 %v424, %v512
  %514 = vmatmul.bf16.gmra.mxu0 %v252
  %v515 = vpop.f32.mrf.mxu0
  %v516 = vadd.f32 %v427, %v515
  %v517 = vpop.f32.mrf.mxu0
  %v518 = vadd.f32 %v429, %v517
  %519 = vmatmul.bf16.gmra.mxu0 %v254
  %v520 = vpop.f32.mrf.mxu0
  %v521 = vadd.f32 %v432, %v520
  %v522 = vpop.f32.mrf.mxu0
  %v523 = vadd.f32 %v434, %v522
  %524 = vmatmul.bf16.gmra.mxu0 %v256
  %v525 = vpop.f32.mrf.mxu0
  %v526 = vadd.f32 %v437, %v525
  %v527 = vpop.f32.mrf.mxu0
  %v528 = vadd.f32 %v439, %v527
  %529 = vmatmul.bf16.gmra.mxu0 %v258
  %v530 = vpop.f32.mrf.mxu0
  %v531 = vadd.f32 %v442, %v530
  %v532 = vpop.f32.mrf.mxu0
  %v533 = vadd.f32 %v444, %v532
  %534 = vmatmul.bf16.gmra.mxu0 %v260
  %v535 = vpop.f32.mrf.mxu0
  %v536 = vadd.f32 %v447, %v535
  %v537 = vpop.f32.mrf.mxu0
  %v538 = vadd.f32 %v449, %v537
  %539 = vmatmul.bf16.gmra.mxu0 %v262
  %v540 = vpop.f32.mrf.mxu0
  %v541 = vadd.f32 %v452, %v540
  %v542 = vpop.f32.mrf.mxu0
  %v543 = vadd.f32 %v454, %v542
  %544 = vmatmul.bf16.gmra.mxu0 %v264
  %v545 = vpop.f32.mrf.mxu0
  %v546 = vadd.f32 %v457, %v545
  %v547 = vpop.f32.mrf.mxu0
  %v548 = vadd.f32 %v459, %v547
  %549 = vmatmul.bf16.gmra.mxu0 %v266
  %v550 = vpop.f32.mrf.mxu0
  %v551 = vadd.f32 %v462, %v550
  %v552 = vpop.f32.mrf.mxu0
  %v553 = vadd.f32 %v464, %v552
  %554 = vmatmul.bf16.gmra.mxu0 %v268
  %v555 = vpop.f32.mrf.mxu0
  %v556 = vadd.f32 %v467, %v555
  %v557 = vpop.f32.mrf.mxu0
  %v558 = vadd.f32 %v469, %v557
  %559 = vmatmul.bf16.gmra.mxu0 %v270
  %v560 = vpop.f32.mrf.mxu0
  %v561 = vadd.f32 %v472, %v560
  %v562 = vpop.f32.mrf.mxu0
  %v563 = vadd.f32 %v474, %v562
  %564 = vmatmul.bf16.gmra.mxu0 %v272
  %v565 = vpop.f32.mrf.mxu0
  %v566 = vadd.f32 %v477, %v565
  %v567 = vpop.f32.mrf.mxu0
  %v568 = vadd.f32 %v479, %v567
  %569 = vmatmul.bf16.gmra.mxu0 %v274
  %v570 = vpop.f32.mrf.mxu0
  %v571 = vadd.f32 %v482, %v570
  %v572 = vpop.f32.mrf.mxu0
  %v573 = vadd.f32 %v484, %v572
  %574 = vmatmul.bf16.gmra.mxu0 %v276
  %v575 = vpop.f32.mrf.mxu0
  %v576 = vadd.f32 %v487, %v575
  %v577 = vpop.f32.mrf.mxu0
  %v578 = vadd.f32 %v489, %v577
  %579 = vmatmul.bf16.gmra.mxu0 %v278
  %v580 = vpop.f32.mrf.mxu0
  %v581 = vadd.f32 %v492, %v580
  %v582 = vpop.f32.mrf.mxu0
  %v583 = vadd.f32 %v494, %v582
  %584 = vdwg.mxu0
  %v585 = vadd.f32 %v55, %v506
  %v586 = vadd.f32 %v56, %v508
  %v587 = vadd.f32 %v57, %v511
  %v588 = vadd.f32 %v58, %v513
  %v589 = vadd.f32 %v59, %v516
  %v590 = vadd.f32 %v60, %v518
  %v591 = vadd.f32 %v61, %v521
  %v592 = vadd.f32 %v62, %v523
  %v593 = vadd.f32 %v63, %v526
  %v594 = vadd.f32 %v64, %v528
  %v595 = vadd.f32 %v65, %v531
  %v596 = vadd.f32 %v66, %v533
  %v597 = vadd.f32 %v67, %v536
  %v598 = vadd.f32 %v68, %v538
  %v599 = vadd.f32 %v69, %v541
  %v600 = vadd.f32 %v70, %v543
  %v601 = vadd.f32 %v71, %v546
  %v602 = vadd.f32 %v72, %v548
  %v603 = vadd.f32 %v73, %v551
  %v604 = vadd.f32 %v74, %v553
  %v605 = vadd.f32 %v75, %v556
  %v606 = vadd.f32 %v76, %v558
  %v607 = vadd.f32 %v77, %v561
  %v608 = vadd.f32 %v78, %v563
  %v609 = vadd.f32 %v79, %v566
  %v610 = vadd.f32 %v80, %v568
  %v611 = vadd.f32 %v81, %v571
  %v612 = vadd.f32 %v82, %v573
  %v613 = vadd.f32 %v83, %v576
  %v614 = vadd.f32 %v84, %v578
  %v615 = vadd.f32 %v85, %v581
  %v616 = vadd.f32 %v86, %v583
  %617 = vst [vmem:[#allocation2] sm:$0xff] %v585
  %618 = vst [vmem:[#allocation2 + $0x8] sm:$0xff] %v586
  %619 = vst [vmem:[#allocation2 + $0x10] sm:$0xff] %v587
  %620 = vst [vmem:[#allocation2 + $0x18] sm:$0xff] %v588
  %621 = vst [vmem:[#allocation2 + $0x20] sm:$0xff] %v589
  %622 = vst [vmem:[#allocation2 + $0x28] sm:$0xff] %v590
  %623 = vst [vmem:[#allocation2 + $0x30] sm:$0xff] %v591
  %624 = vst [vmem:[#allocation2 + $0x38] sm:$0xff] %v592
  %625 = vst [vmem:[#allocation2 + $0x40] sm:$0xff] %v593
  %626 = vst [vmem:[#allocation2 + $0x48] sm:$0xff] %v594
  %627 = vst [vmem:[#allocation2 + $0x50] sm:$0xff] %v595
  %628 = vst [vmem:[#allocation2 + $0x58] sm:$0xff] %v596
  %629 = vst [vmem:[#allocation2 + $0x60] sm:$0xff] %v597
  %630 = vst [vmem:[#allocation2 + $0x68] sm:$0xff] %v598
  %631 = vst [vmem:[#allocation2 + $0x70] sm:$0xff] %v599
  %632 = vst [vmem:[#allocation2 + $0x78] sm:$0xff] %v600
  %633 = vst [vmem:[#allocation2 + $0x80] sm:$0xff] %v601
  %634 = vst [vmem:[#allocation2 + $0x88] sm:$0xff] %v602
  %635 = vst [vmem:[#allocation2 + $0x90] sm:$0xff] %v603
  %636 = vst [vmem:[#allocation2 + $0x98] sm:$0xff] %v604
  %637 = vst [vmem:[#allocation2 + $0xa0] sm:$0xff] %v605
  %638 = vst [vmem:[#allocation2 + $0xa8] sm:$0xff] %v606
  %639 = vst [vmem:[#allocation2 + $0xb0] sm:$0xff] %v607
  %640 = vst [vmem:[#allocation2 + $0xb8] sm:$0xff] %v608
  %641 = vst [vmem:[#allocation2 + $0xc0] sm:$0xff] %v609
  %642 = vst [vmem:[#allocation2 + $0xc8] sm:$0xff] %v610
  %643 = vst [vmem:[#allocation2 + $0xd0] sm:$0xff] %v611
  %644 = vst [vmem:[#allocation2 + $0xd8] sm:$0xff] %v612
  %645 = vst [vmem:[#allocation2 + $0xe0] sm:$0xff] %v613
  %646 = vst [vmem:[#allocation2 + $0xe8] sm:$0xff] %v614
  %647 = vst [vmem:[#allocation2 + $0xf0] sm:$0xff] %v615
  %648 = vst [vmem:[#allocation2 + $0xf8] sm:$0xff] %v616
  // Predicated region
  $region22: #{gcn_nc_forward.6} parent=0 // pred_check
    %p649 = pneg %p19
  $region23: #{gcn_nc_forward.6} parent=0 // pred_check_branch
    %651 = sbr.rel (%p649) target = $region25
  $region24: #{gcn_nc_forward.6} parent=0 // pred_region
    %v652 = vld [vmem:[#allocation2] sm:$0xff]
    %v653 = vld [vmem:[#allocation2 + $0x8] sm:$0xff]
    %v654 = vld [vmem:[#allocation2 + $0x10] sm:$0xff]
    %v655 = vld [vmem:[#allocation2 + $0x18] sm:$0xff]
    %v656 = vld [vmem:[#allocation2 + $0x20] sm:$0xff]
    %v657 = vld [vmem:[#allocation2 + $0x28] sm:$0xff]
    %v658 = vld [vmem:[#allocation2 + $0x30] sm:$0xff]
    %v659 = vld [vmem:[#allocation2 + $0x38] sm:$0xff]
    %v660 = vld [vmem:[#allocation2 + $0x40] sm:$0xff]
    %v661 = vld [vmem:[#allocation2 + $0x48] sm:$0xff]
    %v662 = vld [vmem:[#allocation2 + $0x50] sm:$0xff]
    %v663 = vld [vmem:[#allocation2 + $0x58] sm:$0xff]
    %v664 = vld [vmem:[#allocation2 + $0x60] sm:$0xff]
    %v665 = vld [vmem:[#allocation2 + $0x68] sm:$0xff]
    %v666 = vld [vmem:[#allocation2 + $0x70] sm:$0xff]
    %v667 = vld [vmem:[#allocation2 + $0x78] sm:$0xff]
    %v668 = vld [vmem:[#allocation2 + $0x80] sm:$0xff]
    %v669 = vld [vmem:[#allocation2 + $0x88] sm:$0xff]
    %v670 = vld [vmem:[#allocation2 + $0x90] sm:$0xff]
    %v671 = vld [vmem:[#allocation2 + $0x98] sm:$0xff]
    %v672 = vld [vmem:[#allocation2 + $0xa0] sm:$0xff]
    %v673 = vld [vmem:[#allocation2 + $0xa8] sm:$0xff]
    %v674 = vld [vmem:[#allocation2 + $0xb0] sm:$0xff]
    %v675 = vld [vmem:[#allocation2 + $0xb8] sm:$0xff]
    %v676 = vld [vmem:[#allocation2 + $0xc0] sm:$0xff]
    %v677 = vld [vmem:[#allocation2 + $0xc8] sm:$0xff]
    %v678 = vld [vmem:[#allocation2 + $0xd0] sm:$0xff]
    %v679 = vld [vmem:[#allocation2 + $0xd8] sm:$0xff]
    %v680 = vld [vmem:[#allocation2 + $0xe0] sm:$0xff]
    %v681 = vld [vmem:[#allocation2 + $0xe8] sm:$0xff]
    %v682 = vld [vmem:[#allocation2 + $0xf0] sm:$0xff]
    %v683 = vld [vmem:[#allocation2 + $0xf8] sm:$0xff]
    %v684 = vld [vmem:[%s2] sm:$0x1]
    %v686 = vperm.slane %v684, 0
    %v688 = vadd.f32 %v652, %v686
    %v689 = vadd.f32 %v653, %v686
    %v690 = vadd.f32 %v654, %v686
    %v691 = vadd.f32 %v655, %v686
    %v692 = vadd.f32 %v656, %v686
    %v693 = vadd.f32 %v657, %v686
    %v694 = vadd.f32 %v658, %v686
    %v695 = vadd.f32 %v659, %v686
    %v696 = vadd.f32 %v660, %v686
    %v697 = vadd.f32 %v661, %v686
    %v698 = vadd.f32 %v662, %v686
    %v699 = vadd.f32 %v663, %v686
    %v700 = vadd.f32 %v664, %v686
    %v701 = vadd.f32 %v665, %v686
    %v702 = vadd.f32 %v666, %v686
    %v703 = vadd.f32 %v667, %v686
    %v704 = vadd.f32 %v668, %v686
    %v705 = vadd.f32 %v669, %v686
    %v706 = vadd.f32 %v670, %v686
    %v707 = vadd.f32 %v671, %v686
    %v708 = vadd.f32 %v672, %v686
    %v709 = vadd.f32 %v673, %v686
    %v710 = vadd.f32 %v674, %v686
    %v711 = vadd.f32 %v675, %v686
    %v712 = vadd.f32 %v676, %v686
    %v713 = vadd.f32 %v677, %v686
    %v714 = vadd.f32 %v678, %v686
    %v715 = vadd.f32 %v679, %v686
    %v716 = vadd.f32 %v680, %v686
    %v717 = vadd.f32 %v681, %v686
    %v718 = vadd.f32 %v682, %v686
    %v719 = vadd.f32 %v683, %v686
    %v720 = vmax.f32 %v688, 0.0
    %v721 = vmax.f32 %v689, 0.0
    %v722 = vmax.f32 %v690, 0.0
    %v723 = vmax.f32 %v691, 0.0
    %v724 = vmax.f32 %v692, 0.0
    %v725 = vmax.f32 %v693, 0.0
    %v726 = vmax.f32 %v694, 0.0
    %v727 = vmax.f32 %v695, 0.0
    %v728 = vmax.f32 %v696, 0.0
    %v729 = vmax.f32 %v697, 0.0
    %v730 = vmax.f32 %v698, 0.0
    %v731 = vmax.f32 %v699, 0.0
    %v732 = vmax.f32 %v700, 0.0
    %v733 = vmax.f32 %v701, 0.0
    %v734 = vmax.f32 %v702, 0.0
    %v735 = vmax.f32 %v703, 0.0
    %v736 = vmax.f32 %v704, 0.0
    %v737 = vmax.f32 %v705, 0.0
    %v738 = vmax.f32 %v706, 0.0
    %v739 = vmax.f32 %v707, 0.0
    %v740 = vmax.f32 %v708, 0.0
    %v741 = vmax.f32 %v709, 0.0
    %v742 = vmax.f32 %v710, 0.0
    %v743 = vmax.f32 %v711, 0.0
    %v744 = vmax.f32 %v712, 0.0
    %v745 = vmax.f32 %v713, 0.0
    %v746 = vmax.f32 %v714, 0.0
    %v747 = vmax.f32 %v715, 0.0
    %v748 = vmax.f32 %v716, 0.0
    %v749 = vmax.f32 %v717, 0.0
    %v750 = vmax.f32 %v718, 0.0
    %v751 = vmax.f32 %v719, 0.0
    %752 = vst [vmem:[%s4] sm:$0xff] %v720
    %753 = vst [vmem:[%s4 + $0x8] sm:$0xff] %v721
    %754 = vst [vmem:[%s4 + $0x10] sm:$0xff] %v722
    %755 = vst [vmem:[%s4 + $0x18] sm:$0xff] %v723
    %756 = vst [vmem:[%s4 + $0x20] sm:$0xff] %v724
    %757 = vst [vmem:[%s4 + $0x28] sm:$0xff] %v725
    %758 = vst [vmem:[%s4 + $0x30] sm:$0xff] %v726
    %759 = vst [vmem:[%s4 + $0x38] sm:$0xff] %v727
    %760 = vst [vmem:[%s4 + $0x40] sm:$0xff] %v728
    %761 = vst [vmem:[%s4 + $0x48] sm:$0xff] %v729
    %762 = vst [vmem:[%s4 + $0x50] sm:$0xff] %v730
    %763 = vst [vmem:[%s4 + $0x58] sm:$0xff] %v731
    %764 = vst [vmem:[%s4 + $0x60] sm:$0xff] %v732
    %765 = vst [vmem:[%s4 + $0x68] sm:$0xff] %v733
    %766 = vst [vmem:[%s4 + $0x70] sm:$0xff] %v734
    %767 = vst [vmem:[%s4 + $0x78] sm:$0xff] %v735
    %768 = vst [vmem:[%s4 + $0x80] sm:$0xff] %v736
    %769 = vst [vmem:[%s4 + $0x88] sm:$0xff] %v737
    %770 = vst [vmem:[%s4 + $0x90] sm:$0xff] %v738
    %771 = vst [vmem:[%s4 + $0x98] sm:$0xff] %v739
    %772 = vst [vmem:[%s4 + $0xa0] sm:$0xff] %v740
    %773 = vst [vmem:[%s4 + $0xa8] sm:$0xff] %v741
    %774 = vst [vmem:[%s4 + $0xb0] sm:$0xff] %v742
    %775 = vst [vmem:[%s4 + $0xb8] sm:$0xff] %v743
    %776 = vst [vmem:[%s4 + $0xc0] sm:$0xff] %v744
    %777 = vst [vmem:[%s4 + $0xc8] sm:$0xff] %v745
    %778 = vst [vmem:[%s4 + $0xd0] sm:$0xff] %v746
    %779 = vst [vmem:[%s4 + $0xd8] sm:$0xff] %v747
    %780 = vst [vmem:[%s4 + $0xe0] sm:$0xff] %v748
    %781 = vst [vmem:[%s4 + $0xe8] sm:$0xff] %v749
    %782 = vst [vmem:[%s4 + $0xf0] sm:$0xff] %v750
    %783 = vst [vmem:[%s4 + $0xf8] sm:$0xff] %v751
    %v784 = vpack.c.bf16 %v721, %v720
    %v785 = vpack.c.bf16 %v723, %v722
    %v786 = vpack.c.bf16 %v725, %v724
    %v787 = vpack.c.bf16 %v727, %v726
    %v788 = vpack.c.bf16 %v729, %v728
    %v789 = vpack.c.bf16 %v731, %v730
    %v790 = vpack.c.bf16 %v733, %v732
    %v791 = vpack.c.bf16 %v735, %v734
    %v792 = vpack.c.bf16 %v737, %v736
    %v793 = vpack.c.bf16 %v739, %v738
    %v794 = vpack.c.bf16 %v741, %v740
    %v795 = vpack.c.bf16 %v743, %v742
    %v796 = vpack.c.bf16 %v745, %v744
    %v797 = vpack.c.bf16 %v747, %v746
    %v798 = vpack.c.bf16 %v749, %v748
    %v799 = vpack.c.bf16 %v751, %v750
    %v800 = vld [vmem:[%s3] sm:$0xf]
    %v801 = vld [vmem:[%s3 + $0x4] sm:$0xf]
    %v802 = vld [vmem:[%s3 + $0x8] sm:$0xf]
    %v803 = vld [vmem:[%s3 + $0xc] sm:$0xf]
    %v804 = vld [vmem:[%s3 + $0x10] sm:$0xf]
    %v805 = vld [vmem:[%s3 + $0x14] sm:$0xf]
    %v806 = vld [vmem:[%s3 + $0x18] sm:$0xf]
    %v807 = vld [vmem:[%s3 + $0x1c] sm:$0xf]
    %v808 = vld [vmem:[%s3 + $0x20] sm:$0xf]
    %v809 = vld [vmem:[%s3 + $0x24] sm:$0xf]
    %v810 = vld [vmem:[%s3 + $0x28] sm:$0xf]
    %v811 = vld [vmem:[%s3 + $0x2c] sm:$0xf]
    %v812 = vld [vmem:[%s3 + $0x30] sm:$0xf]
    %v813 = vld [vmem:[%s3 + $0x34] sm:$0xf]
    %v814 = vld [vmem:[%s3 + $0x38] sm:$0xf]
    %v815 = vld [vmem:[%s3 + $0x3c] sm:$0xf]
    %v832 = vunpack.c.l.b16 %v800
    %v833 = vunpack.c.l.b16 %v801
    %v834 = vunpack.c.l.b16 %v802
    %v835 = vunpack.c.l.b16 %v803
    %v836 = vunpack.c.l.b16 %v804
    %v837 = vunpack.c.l.b16 %v805
    %v838 = vunpack.c.l.b16 %v806
    %v839 = vunpack.c.l.b16 %v807
    %v840 = vunpack.c.l.b16 %v808
    %v841 = vunpack.c.l.b16 %v809
    %v842 = vunpack.c.l.b16 %v810
    %v843 = vunpack.c.l.b16 %v811
    %v844 = vunpack.c.l.b16 %v812
    %v845 = vunpack.c.l.b16 %v813
    %v846 = vunpack.c.l.b16 %v814
    %v847 = vunpack.c.l.b16 %v815
    %v848 = vpack.c.b16 %v833, %v832
    %v849 = vpack.c.b16 %v835, %v834
    %v850 = vpack.c.b16 %v837, %v836
    %v851 = vpack.c.b16 %v839, %v838
    %v852 = vpack.c.b16 %v841, %v840
    %v853 = vpack.c.b16 %v843, %v842
    %v854 = vpack.c.b16 %v845, %v844
    %v855 = vpack.c.b16 %v847, %v846
    %864 = vmatpush.bf16.msra.mxu0 %v855
    %865 = vmatpush.bf16.msra.mxu0 %v854
    %866 = vmatpush.bf16.msra.mxu0 %v853
    %867 = vmatpush.bf16.msra.mxu0 %v852
    %868 = vmatpush.bf16.msra.mxu0 %v851
    %869 = vmatpush.bf16.msra.mxu0 %v850
    %870 = vmatpush.bf16.msra.mxu0 %v849
    %871 = vmatpush.bf16.msra.mxu0 %v848
    %872 = vmatmul.bf16.gmra.mxu0 %v784
    %v873 = vpop.f32.mrf.mxu0
    %v874 = vadd.f32 0.0, %v873
    %v875 = vpop.f32.mrf.mxu0
    %v876 = vadd.f32 0.0, %v875
    %877 = vmatmul.bf16.gmra.mxu0 %v785
    %v878 = vpop.f32.mrf.mxu0
    %v879 = vadd.f32 0.0, %v878
    %v880 = vpop.f32.mrf.mxu0
    %v881 = vadd.f32 0.0, %v880
    %882 = vmatmul.bf16.gmra.mxu0 %v786
    %v883 = vpop.f32.mrf.mxu0
    %v884 = vadd.f32 0.0, %v883
    %v885 = vpop.f32.mrf.mxu0
    %v886 = vadd.f32 0.0, %v885
    %887 = vmatmul.bf16.gmra.mxu0 %v787
    %v888 = vpop.f32.mrf.mxu0
    %v889 = vadd.f32 0.0, %v888
    %v890 = vpop.f32.mrf.mxu0
    %v891 = vadd.f32 0.0, %v890
    %892 = vmatmul.bf16.gmra.mxu0 %v788
    %v893 = vpop.f32.mrf.mxu0
    %v894 = vadd.f32 0.0, %v893
    %v895 = vpop.f32.mrf.mxu0
    %v896 = vadd.f32 0.0, %v895
    %897 = vmatmul.bf16.gmra.mxu0 %v789
    %v898 = vpop.f32.mrf.mxu0
    %v899 = vadd.f32 0.0, %v898
    %v900 = vpop.f32.mrf.mxu0
    %v901 = vadd.f32 0.0, %v900
    %902 = vmatmul.bf16.gmra.mxu0 %v790
    %v903 = vpop.f32.mrf.mxu0
    %v904 = vadd.f32 0.0, %v903
    %v905 = vpop.f32.mrf.mxu0
    %v906 = vadd.f32 0.0, %v905
    %907 = vmatmul.bf16.gmra.mxu0 %v791
    %v908 = vpop.f32.mrf.mxu0
    %v909 = vadd.f32 0.0, %v908
    %v910 = vpop.f32.mrf.mxu0
    %v911 = vadd.f32 0.0, %v910
    %912 = vmatmul.bf16.gmra.mxu0 %v792
    %v913 = vpop.f32.mrf.mxu0
    %v914 = vadd.f32 0.0, %v913
    %v915 = vpop.f32.mrf.mxu0
    %v916 = vadd.f32 0.0, %v915
    %917 = vmatmul.bf16.gmra.mxu0 %v793
    %v918 = vpop.f32.mrf.mxu0
    %v919 = vadd.f32 0.0, %v918
    %v920 = vpop.f32.mrf.mxu0
    %v921 = vadd.f32 0.0, %v920
    %922 = vmatmul.bf16.gmra.mxu0 %v794
    %v923 = vpop.f32.mrf.mxu0
    %v924 = vadd.f32 0.0, %v923
    %v925 = vpop.f32.mrf.mxu0
    %v926 = vadd.f32 0.0, %v925
    %927 = vmatmul.bf16.gmra.mxu0 %v795
    %v928 = vpop.f32.mrf.mxu0
    %v929 = vadd.f32 0.0, %v928
    %v930 = vpop.f32.mrf.mxu0
    %v931 = vadd.f32 0.0, %v930
    %932 = vmatmul.bf16.gmra.mxu0 %v796
    %v933 = vpop.f32.mrf.mxu0
    %v934 = vadd.f32 0.0, %v933
    %v935 = vpop.f32.mrf.mxu0
    %v936 = vadd.f32 0.0, %v935
    %937 = vmatmul.bf16.gmra.mxu0 %v797
    %v938 = vpop.f32.mrf.mxu0
    %v939 = vadd.f32 0.0, %v938
    %v940 = vpop.f32.mrf.mxu0
    %v941 = vadd.f32 0.0, %v940
    %942 = vmatmul.bf16.gmra.mxu0 %v798
    %v943 = vpop.f32.mrf.mxu0
    %v944 = vadd.f32 0.0, %v943
    %v945 = vpop.f32.mrf.mxu0
    %v946 = vadd.f32 0.0, %v945
    %947 = vmatmul.bf16.gmra.mxu0 %v799
    %v948 = vpop.f32.mrf.mxu0
    %v949 = vadd.f32 0.0, %v948
    %v950 = vpop.f32.mrf.mxu0
    %v951 = vadd.f32 0.0, %v950
    %952 = vdwg.mxu0
    %v953 = vpack.c.bf16 %v874, %v874
    %v954 = vpack.c.bf16 %v876, %v876
    %v955 = vpack.c.bf16 %v879, %v879
    %v956 = vpack.c.bf16 %v881, %v881
    %v957 = vpack.c.bf16 %v884, %v884
    %v958 = vpack.c.bf16 %v886, %v886
    %v959 = vpack.c.bf16 %v889, %v889
    %v960 = vpack.c.bf16 %v891, %v891
    %v961 = vpack.c.bf16 %v894, %v894
    %v962 = vpack.c.bf16 %v896, %v896
    %v963 = vpack.c.bf16 %v899, %v899
    %v964 = vpack.c.bf16 %v901, %v901
    %v965 = vpack.c.bf16 %v904, %v904
    %v966 = vpack.c.bf16 %v906, %v906
    %v967 = vpack.c.bf16 %v909, %v909
    %v968 = vpack.c.bf16 %v911, %v911
    %v969 = vpack.c.bf16 %v914, %v914
    %v970 = vpack.c.bf16 %v916, %v916
    %v971 = vpack.c.bf16 %v919, %v919
    %v972 = vpack.c.bf16 %v921, %v921
    %v973 = vpack.c.bf16 %v924, %v924
    %v974 = vpack.c.bf16 %v926, %v926
    %v975 = vpack.c.bf16 %v929, %v929
    %v976 = vpack.c.bf16 %v931, %v931
    %v977 = vpack.c.bf16 %v934, %v934
    %v978 = vpack.c.bf16 %v936, %v936
    %v979 = vpack.c.bf16 %v939, %v939
    %v980 = vpack.c.bf16 %v941, %v941
    %v981 = vpack.c.bf16 %v944, %v944
    %v982 = vpack.c.bf16 %v946, %v946
    %v983 = vpack.c.bf16 %v949, %v949
    %v984 = vpack.c.bf16 %v951, %v951
    %985 = vst [vmem:[%s5] sm:$0xf] %v953
    %986 = vst [vmem:[%s5 + $0x4] sm:$0xf] %v954
    %987 = vst [vmem:[%s5 + $0x8] sm:$0xf] %v955
    %988 = vst [vmem:[%s5 + $0xc] sm:$0xf] %v956
    %989 = vst [vmem:[%s5 + $0x10] sm:$0xf] %v957
    %990 = vst [vmem:[%s5 + $0x14] sm:$0xf] %v958
    %991 = vst [vmem:[%s5 + $0x18] sm:$0xf] %v959
    %992 = vst [vmem:[%s5 + $0x1c] sm:$0xf] %v960
    %993 = vst [vmem:[%s5 + $0x20] sm:$0xf] %v961
    %994 = vst [vmem:[%s5 + $0x24] sm:$0xf] %v962
    %995 = vst [vmem:[%s5 + $0x28] sm:$0xf] %v963
    %996 = vst [vmem:[%s5 + $0x2c] sm:$0xf] %v964
    %997 = vst [vmem:[%s5 + $0x30] sm:$0xf] %v965
    %998 = vst [vmem:[%s5 + $0x34] sm:$0xf] %v966
    %999 = vst [vmem:[%s5 + $0x38] sm:$0xf] %v967
    %1000 = vst [vmem:[%s5 + $0x3c] sm:$0xf] %v968
    %1001 = vst [vmem:[%s5 + $0x40] sm:$0xf] %v969
    %1002 = vst [vmem:[%s5 + $0x44] sm:$0xf] %v970
    %1003 = vst [vmem:[%s5 + $0x48] sm:$0xf] %v971
    %1004 = vst [vmem:[%s5 + $0x4c] sm:$0xf] %v972
    %1005 = vst [vmem:[%s5 + $0x50] sm:$0xf] %v973
    %1006 = vst [vmem:[%s5 + $0x54] sm:$0xf] %v974
    %1007 = vst [vmem:[%s5 + $0x58] sm:$0xf] %v975
    %1008 = vst [vmem:[%s5 + $0x5c] sm:$0xf] %v976
    %1009 = vst [vmem:[%s5 + $0x60] sm:$0xf] %v977
    %1010 = vst [vmem:[%s5 + $0x64] sm:$0xf] %v978
    %1011 = vst [vmem:[%s5 + $0x68] sm:$0xf] %v979
    %1012 = vst [vmem:[%s5 + $0x6c] sm:$0xf] %v980
    %1013 = vst [vmem:[%s5 + $0x70] sm:$0xf] %v981
    %1014 = vst [vmem:[%s5 + $0x74] sm:$0xf] %v982
    %1015 = vst [vmem:[%s5 + $0x78] sm:$0xf] %v983
    %1016 = vst [vmem:[%s5 + $0x7c] sm:$0xf] %v984
  $region25: #{gcn_nc_forward.6} parent=0 // pred_fallthru
    _
  // Predicated region
  $region26: #{gcn_nc_forward.6} parent=0 // pred_check
    _
  $region27: #{gcn_nc_forward.6} parent=0 // pred_check_branch
    %1018 = sbr.rel (0) target = $region29
  $region28: #{gcn_nc_forward.6} parent=0 // pred_region
    _
  $region29: #{gcn_nc_forward.6} parent=0 // pred_fallthru
    _
  // Predicated region
  $region30: #{gcn_nc_forward.6} parent=0 // pred_check
    _
  $region31: #{gcn_nc_forward.6} parent=0 // pred_check_branch
    %1020 = sbr.rel (0) target = $region33
  $region32: #{gcn_nc_forward.6} parent=0 // pred_region
    _
  $region33: #{gcn_nc_forward.6} parent=0 // pred_fallthru
    _
  // Predicated region
  $region34: #{gcn_nc_forward.6} parent=0 // pred_check
    _
  $region35: #{gcn_nc_forward.6} parent=0 // pred_check_branch
    %1022 = sbr.rel (0) target = $region37
  $region36: #{gcn_nc_forward.6} parent=0 // pred_region
    _
  $region37: #{gcn_nc_forward.6} parent=0 // pred_fallthru
    _
  // Predicated region
  $region38: #{gcn_nc_forward.6} parent=0 // pred_check
    _
  $region39: #{gcn_nc_forward.6} parent=0 // pred_check_branch
    %1024 = sbr.rel (0) target = $region41
  $region40: #{gcn_nc_forward.6} parent=0 // pred_region
    _
  $region41: #{gcn_nc_forward.6} parent=0 // pred_fallthru
    _

</llo_original>
